<compile_context>
chip_gen: v7x
topology: tpu7x:2x2x1
jax: 0.10.0
libtpu: 0.0.40
codegen_flags: <defaults>
</compile_context>

<pallas_src>
import math
import functools

import numpy as np
import jax
import jax.numpy as jnp
from jax.experimental import pallas as pl
from jax.experimental.pallas import tpu as pltpu


# ----------------------------- helpers --------------------------------------

def _layernorm(x, w, b, eps=1e-5):
    mu = jnp.mean(x, axis=-1, keepdims=True)
    var = jnp.mean((x - mu) ** 2, axis=-1, keepdims=True)
    return (x - mu) * jax.lax.rsqrt(var + eps) * w + b


def _const_spec(arr):
    """Full-array BlockSpec (same block for every grid step)."""
    nd = arr.ndim
    return pl.BlockSpec(arr.shape, lambda *_, _nd=nd: (0,) * _nd)


def positional_encoding(max_len, d_model):
    # matches PositionalEncoding.__init__
    position = np.arange(max_len, dtype=np.float32)[:, None]
    div_term = np.exp(np.arange(0, d_model, 2, dtype=np.float32)
                      * (-math.log(10000.0) / d_model))
    pe = np.zeros((max_len, d_model), dtype=np.float32)
    pe[:, 0::2] = np.sin(position * div_term)
    if d_model % 2 == 0:
        pe[:, 1::2] = np.cos(position * div_term)
    else:
        pe[:, 1::2] = np.cos(position * div_term[-1])
    return jnp.asarray(pe)  # (max_len, d_model)


def build_gap_mats(num_diseases, output_dim):
    """0/1 matrices so that  out = raw @ H + softplus(raw) @ A  implements
    out[:, d*OD + j] = raw[:, d*OD] + sum_{1<=i<=j} softplus(raw[:, d*OD + i])."""
    n = num_diseases * output_dim
    H = np.zeros((n, n), dtype=np.float32)
    A = np.zeros((n, n), dtype=np.float32)
    for d in range(num_diseases):
        b0 = d * output_dim
        for j in range(output_dim):
            H[b0, b0 + j] = 1.0
            for i in range(1, j + 1):
                A[b0 + i, b0 + j] = 1.0
    return jnp.asarray(H), jnp.asarray(A)


# --------------------------- fused Pallas kernel -----------------------------

def fused_forward_kernel(*refs, num_layers, nhead, TB, S, D):
    """Entire DeepQuantReg(TransformerPS) forward for one batch tile of TB rows."""
    x_ref, add_ref, wemb_ref, pnw_ref, pnb_ref = refs[:5]
    pos = 5
    layer_refs = [refs[pos + 12 * l: pos + 12 * (l + 1)] for l in range(num_layers)]
    pos += 12 * num_layers
    wout_ref, bout_ref, whead_ref, bhead_ref, hmat_ref, amat_ref = refs[pos:pos + 6]
    o_ref = refs[pos + 6]
    attn_sc = refs[pos + 7]                  # VMEM scratch (TB, S, D) f32

    N = TB * S
    hd = D // nhead
    scale = 1.0 / math.sqrt(hd)

    # ---- input embed (Linear(1,D)) + [bias + positional encoding] + pre-LN ----
    h = x_ref[...] * wemb_ref[...] + add_ref[...]          # (N, D) f32
    h = _layernorm(h, pnw_ref[...], pnb_ref[...])

    # ---- post-norm transformer encoder layers (unrolled, VMEM-resident) ----
    for l in range(num_layers):
        (wqkv, bqkv, wo, bo, w1, b1, w2, b2,
         ln1w, ln1b, ln2w, ln2b) = layer_refs[l]

        qkv = jnp.dot(h.astype(jnp.bfloat16), wqkv[...],
                      preferred_element_type=jnp.float32) + bqkv[...]   # (N, 3D)
        q = qkv[:, :D].reshape(TB, S, D)
        k = qkv[:, D:2 * D].reshape(TB, S, D)
        v = qkv[:, 2 * D:].reshape(TB, S, D)

        # heads: static loop, but each head is batched over TB via one einsum;
        # results go into scratch slices (no concatenate relayout).
        for hh in range(nhead):
            lo = hh * hd
            qh = q[:, :, lo:lo + hd].astype(jnp.bfloat16)
            kh = k[:, :, lo:lo + hd].astype(jnp.bfloat16)
            vh = v[:, :, lo:lo + hd].astype(jnp.bfloat16)
            scores = jnp.einsum('bqd,bkd->bqk', qh, kh,
                                preferred_element_type=jnp.float32) * scale
            scores = scores - jnp.max(scores, axis=-1, keepdims=True)
            p = jnp.exp(scores)
            p = p * pl.reciprocal(jnp.sum(p, axis=-1, keepdims=True), approx=True)
            oh = jnp.einsum('bqk,bkd->bqd', p.astype(jnp.bfloat16), vh,
                            preferred_element_type=jnp.float32)          # (TB,S,hd)
            attn_sc[:, :, lo:lo + hd] = oh

        attn = attn_sc[...].reshape(N, D)
        attn = jnp.dot(attn.astype(jnp.bfloat16), wo[...],
                       preferred_element_type=jnp.float32) + bo[...]
        y = _layernorm(h + attn, ln1w[...], ln1b[...])

        ff = jnp.dot(y.astype(jnp.bfloat16), w1[...],
                     preferred_element_type=jnp.float32) + b1[...]
        ff = jnp.maximum(ff, 0.0)                                        # relu
        ff = jnp.dot(ff.astype(jnp.bfloat16), w2[...],
                     preferred_element_type=jnp.float32) + b2[...]
        h = _layernorm(y + ff, ln2w[...], ln2b[...])

    # ---- TransformerPS.output_linear on flattened (S*D) features ----
    # computed as a sum of per-token matmuls (avoids a lane-changing reshape).
    h3 = h.reshape(TB, S, D)
    acc = jnp.zeros((TB, D), jnp.float32)
    for s_tok in range(S):
        acc = acc + jnp.dot(h3[:, s_tok, :].astype(jnp.bfloat16), wout_ref[s_tok],
                            preferred_element_type=jnp.float32)
    o1 = jnp.maximum(acc + bout_ref[...], 0.0)                            # DeepQuantReg ReLU

    # ---- DeepQuantReg.output_layer ----
    raw = jnp.dot(o1.astype(jnp.bfloat16), whead_ref[...],
                  preferred_element_type=jnp.float32) + bhead_ref[...]    # (TB, ND*OD)

    # ---- quantile-gap head:  h0 broadcast + cumsum(softplus(gaps)) ----
    # numerically-stable softplus (equals log(1+exp(x)) wherever that is finite)
    sp = jnp.maximum(raw, 0.0) + jnp.log(1.0 + jnp.exp(-jnp.abs(raw)))
    o_ref[...] = (jnp.dot(raw, hmat_ref[...], preferred_element_type=jnp.float32)
                  + jnp.dot(sp, amat_ref[...], preferred_element_type=jnp.float32))


# --------------------------- parameters -------------------------------------

def init_params(key, input_dim, dim_feedforward, layers, output_dim, num_diseases):
    """Random params in PyTorch nn.Linear convention (out_features, in_features)."""
    D = dim_feedforward

    def nxt():
        nonlocal key
        key, sub = jax.random.split(key)
        return sub

    def lin(shape, scale=0.1):
        return jax.random.normal(nxt(), shape, jnp.float32) * scale

    params = {
        "embed_w": lin((D, 1)),                           # nn.Linear(1, D)
        "embed_b": lin((D,)),
        "prenorm_w": jnp.ones((D,), jnp.float32),         # nn.LayerNorm(D)
        "prenorm_b": jnp.zeros((D,), jnp.float32),
        "encoder": [],
        "outlin_w": lin((D, input_dim * D)),              # nn.Linear(S*D, D)
        "outlin_b": lin((D,)),
        "head_w": lin((output_dim * num_diseases, D)),    # nn.Linear(D, OD*ND)
        "head_b": lin((output_dim * num_diseases,)),
    }
    for _ in range(layers):
        params["encoder"].append(dict(
            wqkv=lin((3 * D, D)), bqkv=lin((3 * D,)),
            wo=lin((D, D)), bo=lin((D,)),
            w1=lin((2 * D, D)), b1=lin((2 * D,)),         # dim_feedforward = 2*D
            w2=lin((D, 2 * D)), b2=lin((D,)),
            ln1w=jnp.ones((D,), jnp.float32), ln1b=jnp.zeros((D,), jnp.float32),
            ln2w=jnp.ones((D,), jnp.float32), ln2b=jnp.zeros((D,), jnp.float32),
        ))
    return params


def pack_params(params, input_dim, output_dim, num_diseases):
    """Kernel layout: weights pre-transposed to (in, out) and cast to bf16,
    biases/LN as (1, K) f32, PE + gap matrices precomputed once."""
    D = params["embed_w"].shape[0]
    S = input_dim
    n_out = output_dim * num_diseases

    def t_bf16(w):                       # (out, in) -> (in, out) bf16 for the MXU
        return jnp.asarray(w).T.astype(jnp.bfloat16)

    packed = {
        "w_emb": params["embed_w"].reshape(1, D),
        "prenorm_w": params["prenorm_w"].reshape(1, D),
        "prenorm_b": params["prenorm_b"].reshape(1, D),
        "layers": [],
        "wout3": t_bf16(params["outlin_w"]).reshape(S, D, D),   # (S*D,D) -> (S,D,D)
        "bout": params["outlin_b"].reshape(1, D),
        "whead": t_bf16(params["head_w"]),                      # (D, n_out)
        "bhead": params["head_b"].reshape(1, n_out),
    }
    for lp in params["encoder"]:
        packed["layers"].append(dict(
            wqkv=t_bf16(lp["wqkv"]), bqkv=lp["bqkv"].reshape(1, 3 * D),
            wo=t_bf16(lp["wo"]), bo=lp["bo"].reshape(1, D),
            w1=t_bf16(lp["w1"]), b1=lp["b1"].reshape(1, 2 * D),
            w2=t_bf16(lp["w2"]), b2=lp["b2"].reshape(1, D),
            ln1w=lp["ln1w"].reshape(1, D), ln1b=lp["ln1b"].reshape(1, D),
            ln2w=lp["ln2w"].reshape(1, D), ln2b=lp["ln2b"].reshape(1, D),
        ))
    # positional encoding (static) + embed bias, pre-added:  (S, D)
    pe = positional_encoding(max(D, S), S)                 # (max_len, S)
    pe_t = pe[:D, :S].T                                    # PE as seen in (B,S,D) layout
    packed["emb_add"] = pe_t + params["embed_b"].reshape(1, D)
    # quantile-gap combination matrices
    packed["gap_h"], packed["gap_a"] = build_gap_mats(num_diseases, output_dim)
    return packed


# --------------------------- forward wrapper ---------------------------------

def deep_quant_reg_forward(packed, x, *, nhead, output_dim, num_diseases,
                           batch_tile=None):
    B, S = x.shape
    D = packed["w_emb"].shape[1]
    num_layers = len(packed["layers"])
    n_out = output_dim * num_diseases
    assert D % nhead == 0

    TB = batch_tile if batch_tile is not None else (B if B <= 8 else 8)
    assert B % TB == 0, "batch must be divisible by the batch tile"
    grid = (B // TB,)

    x2 = x.reshape(B * S, 1)                                   # tokens as rows
    emb_add = jnp.tile(packed["emb_add"], (B, 1))              # (B*S, D) bias+PE

    inputs = [x2, emb_add, packed["w_emb"], packed["prenorm_w"], packed["prenorm_b"]]
    for lp in packed["layers"]:
        inputs += [lp["wqkv"], lp["bqkv"], lp["wo"], lp["bo"],
                   lp["w1"], lp["b1"], lp["w2"], lp["b2"],
                   lp["ln1w"], lp["ln1b"], lp["ln2w"], lp["ln2b"]]
    inputs += [packed["wout3"], packed["bout"], packed["whead"], packed["bhead"],
               packed["gap_h"], packed["gap_a"]]

    in_specs = [pl.BlockSpec((TB * S, 1), lambda b: (b, 0)),
                pl.BlockSpec((TB * S, D), lambda b: (b, 0))]
    in_specs += [_const_spec(a) for a in inputs[2:]]

    kernel = functools.partial(fused_forward_kernel, num_layers=num_layers,
                               nhead=nhead, TB=TB, S=S, D=D)

    raw = pl.pallas_call(
        kernel,
        out_shape=jax.ShapeDtypeStruct((B, n_out), jnp.float32),
        grid=grid,
        in_specs=in_specs,
        out_specs=pl.BlockSpec((TB, n_out), lambda b: (b, 0)),
        scratch_shapes=[pltpu.VMEM((TB, S, D), jnp.float32)],
        compiler_params=pltpu.CompilerParams(
            dimension_semantics=("parallel",)),      # shards batch tiles on v7x's 2 TCs
    )(*inputs)

    return raw.reshape(B, num_diseases, output_dim)


# --------------------------- main --------------------------------------------

if __name__ == "__main__":
    B = 2
    input_dim = 8          # S: number of scalar features / tokens
    dim_feedforward = 32   # D: transformer model dim
    nhead = 2
    layers = 2
    output_dim = 4
    num_diseases = 3

    key = jax.random.PRNGKey(0)
    kx, kp = jax.random.split(key)
    x = jax.random.normal(kx, (B, input_dim), jnp.float32)

    params = init_params(kp, input_dim, dim_feedforward, layers, output_dim, num_diseases)
    packed = pack_params(params, input_dim, output_dim, num_diseases)

    fwd = jax.jit(functools.partial(deep_quant_reg_forward, nhead=nhead,
                                    output_dim=output_dim, num_diseases=num_diseases))
    out = fwd(packed, x)
    out = jax.block_until_ready(out)
    assert out.shape == (B, num_diseases, output_dim)
    assert bool(jnp.all(jnp.isfinite(out)))
    print("KERNEL_OK")
</pallas_src>

<mosaic_0001>
module attributes {stable_mosaic.version = 11 : i64} {
  func.func @fused_forward_kernel(%arg0: i32, %arg1: memref<16x1xf32, #tpu.memory_space<vmem>>, %arg2: memref<16x32xf32, #tpu.memory_space<vmem>>, %arg3: memref<1x32xf32, #tpu.memory_space<vmem>>, %arg4: memref<1x32xf32, #tpu.memory_space<vmem>>, %arg5: memref<1x32xf32, #tpu.memory_space<vmem>>, %arg6: memref<32x96xbf16, #tpu.memory_space<vmem>>, %arg7: memref<1x96xf32, #tpu.memory_space<vmem>>, %arg8: memref<32x32xbf16, #tpu.memory_space<vmem>>, %arg9: memref<1x32xf32, #tpu.memory_space<vmem>>, %arg10: memref<32x64xbf16, #tpu.memory_space<vmem>>, %arg11: memref<1x64xf32, #tpu.memory_space<vmem>>, %arg12: memref<64x32xbf16, #tpu.memory_space<vmem>>, %arg13: memref<1x32xf32, #tpu.memory_space<vmem>>, %arg14: memref<1x32xf32, #tpu.memory_space<vmem>>, %arg15: memref<1x32xf32, #tpu.memory_space<vmem>>, %arg16: memref<1x32xf32, #tpu.memory_space<vmem>>, %arg17: memref<1x32xf32, #tpu.memory_space<vmem>>, %arg18: memref<32x96xbf16, #tpu.memory_space<vmem>>, %arg19: memref<1x96xf32, #tpu.memory_space<vmem>>, %arg20: memref<32x32xbf16, #tpu.memory_space<vmem>>, %arg21: memref<1x32xf32, #tpu.memory_space<vmem>>, %arg22: memref<32x64xbf16, #tpu.memory_space<vmem>>, %arg23: memref<1x64xf32, #tpu.memory_space<vmem>>, %arg24: memref<64x32xbf16, #tpu.memory_space<vmem>>, %arg25: memref<1x32xf32, #tpu.memory_space<vmem>>, %arg26: memref<1x32xf32, #tpu.memory_space<vmem>>, %arg27: memref<1x32xf32, #tpu.memory_space<vmem>>, %arg28: memref<1x32xf32, #tpu.memory_space<vmem>>, %arg29: memref<1x32xf32, #tpu.memory_space<vmem>>, %arg30: memref<8x32x32xbf16, #tpu.memory_space<vmem>>, %arg31: memref<1x32xf32, #tpu.memory_space<vmem>>, %arg32: memref<32x12xbf16, #tpu.memory_space<vmem>>, %arg33: memref<1x12xf32, #tpu.memory_space<vmem>>, %arg34: memref<12x12xf32, #tpu.memory_space<vmem>>, %arg35: memref<12x12xf32, #tpu.memory_space<vmem>>, %arg36: memref<2x12xf32, #tpu.memory_space<vmem>>, %arg37: memref<2x8x32xf32, #tpu.memory_space<vmem>>) attributes {dimension_semantics = [#tpu.dimension_semantics<parallel>], iteration_bounds = array<i64: 1>, scalar_prefetch = 0 : i64, scratch_operands = 1 : i64, tpu.core_type = #tpu.core_type<tc>, window_params = [{transform_indices = @transform_0, window_bounds = array<i64: 16, 1>}, {transform_indices = @transform_1, window_bounds = array<i64: 16, 32>}, {pipeline_mode = #tpu.pipeline_mode<synchronous>, transform_indices = @transform_2, window_bounds = array<i64: 1, 32>}, {pipeline_mode = #tpu.pipeline_mode<synchronous>, transform_indices = @transform_3, window_bounds = array<i64: 1, 32>}, {pipeline_mode = #tpu.pipeline_mode<synchronous>, transform_indices = @transform_4, window_bounds = array<i64: 1, 32>}, {pipeline_mode = #tpu.pipeline_mode<synchronous>, transform_indices = @transform_5, window_bounds = array<i64: 32, 96>}, {pipeline_mode = #tpu.pipeline_mode<synchronous>, transform_indices = @transform_6, window_bounds = array<i64: 1, 96>}, {pipeline_mode = #tpu.pipeline_mode<synchronous>, transform_indices = @transform_7, window_bounds = array<i64: 32, 32>}, {pipeline_mode = #tpu.pipeline_mode<synchronous>, transform_indices = @transform_8, window_bounds = array<i64: 1, 32>}, {pipeline_mode = #tpu.pipeline_mode<synchronous>, transform_indices = @transform_9, window_bounds = array<i64: 32, 64>}, {pipeline_mode = #tpu.pipeline_mode<synchronous>, transform_indices = @transform_10, window_bounds = array<i64: 1, 64>}, {pipeline_mode = #tpu.pipeline_mode<synchronous>, transform_indices = @transform_11, window_bounds = array<i64: 64, 32>}, {pipeline_mode = #tpu.pipeline_mode<synchronous>, transform_indices = @transform_12, window_bounds = array<i64: 1, 32>}, {pipeline_mode = #tpu.pipeline_mode<synchronous>, transform_indices = @transform_13, window_bounds = array<i64: 1, 32>}, {pipeline_mode = #tpu.pipeline_mode<synchronous>, transform_indices = @transform_14, window_bounds = array<i64: 1, 32>}, {pipeline_mode = #tpu.pipeline_mode<synchronous>, transform_indices = @transform_15, window_bounds = array<i64: 1, 32>}, {pipeline_mode = #tpu.pipeline_mode<synchronous>, transform_indices = @transform_16, window_bounds = array<i64: 1, 32>}, {pipeline_mode = #tpu.pipeline_mode<synchronous>, transform_indices = @transform_17, window_bounds = array<i64: 32, 96>}, {pipeline_mode = #tpu.pipeline_mode<synchronous>, transform_indices = @transform_18, window_bounds = array<i64: 1, 96>}, {pipeline_mode = #tpu.pipeline_mode<synchronous>, transform_indices = @transform_19, window_bounds = array<i64: 32, 32>}, {pipeline_mode = #tpu.pipeline_mode<synchronous>, transform_indices = @transform_20, window_bounds = array<i64: 1, 32>}, {pipeline_mode = #tpu.pipeline_mode<synchronous>, transform_indices = @transform_21, window_bounds = array<i64: 32, 64>}, {pipeline_mode = #tpu.pipeline_mode<synchronous>, transform_indices = @transform_22, window_bounds = array<i64: 1, 64>}, {pipeline_mode = #tpu.pipeline_mode<synchronous>, transform_indices = @transform_23, window_bounds = array<i64: 64, 32>}, {pipeline_mode = #tpu.pipeline_mode<synchronous>, transform_indices = @transform_24, window_bounds = array<i64: 1, 32>}, {pipeline_mode = #tpu.pipeline_mode<synchronous>, transform_indices = @transform_25, window_bounds = array<i64: 1, 32>}, {pipeline_mode = #tpu.pipeline_mode<synchronous>, transform_indices = @transform_26, window_bounds = array<i64: 1, 32>}, {pipeline_mode = #tpu.pipeline_mode<synchronous>, transform_indices = @transform_27, window_bounds = array<i64: 1, 32>}, {pipeline_mode = #tpu.pipeline_mode<synchronous>, transform_indices = @transform_28, window_bounds = array<i64: 1, 32>}, {pipeline_mode = #tpu.pipeline_mode<synchronous>, transform_indices = @transform_29, window_bounds = array<i64: 8, 32, 32>}, {pipeline_mode = #tpu.pipeline_mode<synchronous>, transform_indices = @transform_30, window_bounds = array<i64: 1, 32>}, {pipeline_mode = #tpu.pipeline_mode<synchronous>, transform_indices = @transform_31, window_bounds = array<i64: 32, 12>}, {pipeline_mode = #tpu.pipeline_mode<synchronous>, transform_indices = @transform_32, window_bounds = array<i64: 1, 12>}, {pipeline_mode = #tpu.pipeline_mode<synchronous>, transform_indices = @transform_33, window_bounds = array<i64: 12, 12>}, {pipeline_mode = #tpu.pipeline_mode<synchronous>, transform_indices = @transform_34, window_bounds = array<i64: 12, 12>}, {transform_indices = @transform_35, window_bounds = array<i64: 2, 12>}]} {
    %c0 = arith.constant 0 : index
    %c0_0 = arith.constant 0 : index
    %0 = vector.load %arg1[%c0, %c0_0] : memref<16x1xf32, #tpu.memory_space<vmem>>, vector<16x1xf32>
    %c0_1 = arith.constant 0 : index
    %c0_2 = arith.constant 0 : index
    %1 = vector.load %arg3[%c0_1, %c0_2] : memref<1x32xf32, #tpu.memory_space<vmem>>, vector<1x32xf32>
    %2 = vector.broadcast %0 : vector<16x1xf32> to vector<16x32xf32>
    %3 = vector.broadcast %1 : vector<1x32xf32> to vector<16x32xf32>
    %4 = arith.mulf %2, %3 : vector<16x32xf32>
    %c0_3 = arith.constant 0 : index
    %c0_4 = arith.constant 0 : index
    %5 = vector.load %arg2[%c0_3, %c0_4] : memref<16x32xf32, #tpu.memory_space<vmem>>, vector<16x32xf32>
    %6 = arith.addf %4, %5 : vector<16x32xf32>
    %c0_5 = arith.constant 0 : index
    %c0_6 = arith.constant 0 : index
    %7 = vector.load %arg4[%c0_5, %c0_6] : memref<1x32xf32, #tpu.memory_space<vmem>>, vector<1x32xf32>
    %c0_7 = arith.constant 0 : index
    %c0_8 = arith.constant 0 : index
    %8 = vector.load %arg5[%c0_7, %c0_8] : memref<1x32xf32, #tpu.memory_space<vmem>>, vector<1x32xf32>
    %cst = arith.constant dense<0.000000e+00> : vector<16xf32>
    %9 = vector.multi_reduction <add>, %6, %cst [1] : vector<16x32xf32> to vector<16xf32>
    %10 = vector.shape_cast %9 : vector<16xf32> to vector<16x1xf32>
    %cst_9 = arith.constant 3.200000e+01 : f32
    %11 = vector.broadcast %cst_9 : f32 to vector<16x1xf32>
    %12 = arith.divf %10, %11 : vector<16x1xf32>
    %13 = vector.broadcast %12 : vector<16x1xf32> to vector<16x32xf32>
    %14 = arith.subf %6, %13 : vector<16x32xf32>
    %15 = arith.mulf %14, %14 : vector<16x32xf32>
    %cst_10 = arith.constant dense<0.000000e+00> : vector<16xf32>
    %16 = vector.multi_reduction <add>, %15, %cst_10 [1] : vector<16x32xf32> to vector<16xf32>
    %17 = vector.shape_cast %16 : vector<16xf32> to vector<16x1xf32>
    %cst_11 = arith.constant 3.200000e+01 : f32
    %18 = vector.broadcast %cst_11 : f32 to vector<16x1xf32>
    %19 = arith.divf %17, %18 : vector<16x1xf32>
    %20 = vector.broadcast %12 : vector<16x1xf32> to vector<16x32xf32>
    %21 = arith.subf %6, %20 : vector<16x32xf32>
    %cst_12 = arith.constant 9.99999974E-6 : f32
    %22 = vector.broadcast %cst_12 : f32 to vector<16x1xf32>
    %23 = arith.addf %19, %22 : vector<16x1xf32>
    %24 = math.rsqrt %23 : vector<16x1xf32>
    %25 = vector.broadcast %24 : vector<16x1xf32> to vector<16x32xf32>
    %26 = arith.mulf %21, %25 : vector<16x32xf32>
    %27 = vector.broadcast %7 : vector<1x32xf32> to vector<16x32xf32>
    %28 = arith.mulf %26, %27 : vector<16x32xf32>
    %29 = vector.broadcast %8 : vector<1x32xf32> to vector<16x32xf32>
    %30 = arith.addf %28, %29 : vector<16x32xf32>
    %31 = arith.truncf %30 : vector<16x32xf32> to vector<16x32xbf16>
    %c0_13 = arith.constant 0 : index
    %c0_14 = arith.constant 0 : index
    %32 = vector.load %arg6[%c0_13, %c0_14] : memref<32x96xbf16, #tpu.memory_space<vmem>>, vector<32x96xbf16>
    %cst_15 = arith.constant dense<0.000000e+00> : vector<16x96xf32>
    %33 = tpu.matmul %31, %32, %cst_15 {dimension_numbers = #tpu.dot_dimension_numbers<[1], [0], [0], [1], [0, 0, 1, 1], [], []>} : vector<16x32xbf16>, vector<32x96xbf16>, vector<16x96xf32> -> vector<16x96xf32>
    %c0_16 = arith.constant 0 : index
    %c0_17 = arith.constant 0 : index
    %34 = vector.load %arg7[%c0_16, %c0_17] : memref<1x96xf32, #tpu.memory_space<vmem>>, vector<1x96xf32>
    %35 = vector.broadcast %34 : vector<1x96xf32> to vector<16x96xf32>
    %36 = arith.addf %33, %35 : vector<16x96xf32>
    %37 = vector.extract_strided_slice %36 {offsets = [0, 0], sizes = [16, 32], strides = [1, 1]} : vector<16x96xf32> to vector<16x32xf32>
    %38 = vector.shape_cast %37 : vector<16x32xf32> to vector<2x8x32xf32>
    %39 = vector.extract_strided_slice %36 {offsets = [0, 32], sizes = [16, 32], strides = [1, 1]} : vector<16x96xf32> to vector<16x32xf32>
    %40 = vector.shape_cast %39 : vector<16x32xf32> to vector<2x8x32xf32>
    %41 = vector.extract_strided_slice %36 {offsets = [0, 64], sizes = [16, 32], strides = [1, 1]} : vector<16x96xf32> to vector<16x32xf32>
    %42 = vector.shape_cast %41 : vector<16x32xf32> to vector<2x8x32xf32>
    %43 = vector.extract_strided_slice %38 {offsets = [0, 0, 0], sizes = [2, 8, 16], strides = [1, 1, 1]} : vector<2x8x32xf32> to vector<2x8x16xf32>
    %44 = arith.truncf %43 : vector<2x8x16xf32> to vector<2x8x16xbf16>
    %45 = vector.extract_strided_slice %40 {offsets = [0, 0, 0], sizes = [2, 8, 16], strides = [1, 1, 1]} : vector<2x8x32xf32> to vector<2x8x16xf32>
    %46 = arith.truncf %45 : vector<2x8x16xf32> to vector<2x8x16xbf16>
    %47 = vector.extract_strided_slice %42 {offsets = [0, 0, 0], sizes = [2, 8, 16], strides = [1, 1, 1]} : vector<2x8x32xf32> to vector<2x8x16xf32>
    %48 = arith.truncf %47 : vector<2x8x16xf32> to vector<2x8x16xbf16>
    "tpu.trace_start"() <{level = 10 : i32, message = "bqd,bkd->bqk"}> : () -> ()
    %cst_18 = arith.constant dense<0.000000e+00> : vector<2x8x8xf32>
    %49 = tpu.matmul %44, %46, %cst_18 {dimension_numbers = #tpu.dot_dimension_numbers<[2], [2], [1], [1], [0, 0, 0, 1, 1, 1], [0], [0]>} : vector<2x8x16xbf16>, vector<2x8x16xbf16>, vector<2x8x8xf32> -> vector<2x8x8xf32>
    "tpu.trace_stop"() : () -> ()
    %cst_19 = arith.constant 2.500000e-01 : f32
    %50 = vector.broadcast %cst_19 : f32 to vector<2x8x8xf32>
    %51 = arith.mulf %49, %50 : vector<2x8x8xf32>
    %cst_20 = arith.constant dense<0xFF800000> : vector<2x8xf32>
    %52 = vector.multi_reduction <maximumf>, %51, %cst_20 [2] : vector<2x8x8xf32> to vector<2x8xf32>
    %53 = vector.shape_cast %52 : vector<2x8xf32> to vector<2x8x1xf32>
    %54 = vector.broadcast %53 : vector<2x8x1xf32> to vector<2x8x8xf32>
    %55 = arith.subf %51, %54 : vector<2x8x8xf32>
    %56 = math.exp %55 : vector<2x8x8xf32>
    %cst_21 = arith.constant dense<0.000000e+00> : vector<2x8xf32>
    %57 = vector.multi_reduction <add>, %56, %cst_21 [2] : vector<2x8x8xf32> to vector<2x8xf32>
    %58 = vector.shape_cast %57 : vector<2x8xf32> to vector<2x8x1xf32>
    %59 = tpu.reciprocal %58 {approx = true} : vector<2x8x1xf32> -> vector<2x8x1xf32>
    %60 = vector.broadcast %59 : vector<2x8x1xf32> to vector<2x8x8xf32>
    %61 = arith.mulf %56, %60 : vector<2x8x8xf32>
    %62 = arith.truncf %61 : vector<2x8x8xf32> to vector<2x8x8xbf16>
    "tpu.trace_start"() <{level = 10 : i32, message = "bqk,bkd->bqd"}> : () -> ()
    %cst_22 = arith.constant dense<0.000000e+00> : vector<2x8x16xf32>
    %63 = tpu.matmul %62, %48, %cst_22 {dimension_numbers = #tpu.dot_dimension_numbers<[2], [1], [1], [2], [0, 0, 0, 1, 1, 2], [0], [0]>} : vector<2x8x8xbf16>, vector<2x8x16xbf16>, vector<2x8x16xf32> -> vector<2x8x16xf32>
    "tpu.trace_stop"() : () -> ()
    %c0_23 = arith.constant 0 : index
    %c0_24 = arith.constant 0 : index
    %c0_25 = arith.constant 0 : index
    %64 = vector.load %arg37[%c0_23, %c0_24, %c0_25] : memref<2x8x32xf32, #tpu.memory_space<vmem>>, vector<2x8x16xf32>
    tpu.vector_store %arg37[%c0_23, %c0_24, %c0_25], %63 {strides = array<i32>} : memref<2x8x32xf32, #tpu.memory_space<vmem>>, vector<2x8x16xf32>,
    %65 = vector.extract_strided_slice %38 {offsets = [0, 0, 16], sizes = [2, 8, 16], strides = [1, 1, 1]} : vector<2x8x32xf32> to vector<2x8x16xf32>
    %66 = arith.truncf %65 : vector<2x8x16xf32> to vector<2x8x16xbf16>
    %67 = vector.extract_strided_slice %40 {offsets = [0, 0, 16], sizes = [2, 8, 16], strides = [1, 1, 1]} : vector<2x8x32xf32> to vector<2x8x16xf32>
    %68 = arith.truncf %67 : vector<2x8x16xf32> to vector<2x8x16xbf16>
    %69 = vector.extract_strided_slice %42 {offsets = [0, 0, 16], sizes = [2, 8, 16], strides = [1, 1, 1]} : vector<2x8x32xf32> to vector<2x8x16xf32>
    %70 = arith.truncf %69 : vector<2x8x16xf32> to vector<2x8x16xbf16>
    "tpu.trace_start"() <{level = 10 : i32, message = "bqd,bkd->bqk"}> : () -> ()
    %cst_26 = arith.constant dense<0.000000e+00> : vector<2x8x8xf32>
    %71 = tpu.matmul %66, %68, %cst_26 {dimension_numbers = #tpu.dot_dimension_numbers<[2], [2], [1], [1], [0, 0, 0, 1, 1, 1], [0], [0]>} : vector<2x8x16xbf16>, vector<2x8x16xbf16>, vector<2x8x8xf32> -> vector<2x8x8xf32>
    "tpu.trace_stop"() : () -> ()
    %cst_27 = arith.constant 2.500000e-01 : f32
    %72 = vector.broadcast %cst_27 : f32 to vector<2x8x8xf32>
    %73 = arith.mulf %71, %72 : vector<2x8x8xf32>
    %cst_28 = arith.constant dense<0xFF800000> : vector<2x8xf32>
    %74 = vector.multi_reduction <maximumf>, %73, %cst_28 [2] : vector<2x8x8xf32> to vector<2x8xf32>
    %75 = vector.shape_cast %74 : vector<2x8xf32> to vector<2x8x1xf32>
    %76 = vector.broadcast %75 : vector<2x8x1xf32> to vector<2x8x8xf32>
    %77 = arith.subf %73, %76 : vector<2x8x8xf32>
    %78 = math.exp %77 : vector<2x8x8xf32>
    %cst_29 = arith.constant dense<0.000000e+00> : vector<2x8xf32>
    %79 = vector.multi_reduction <add>, %78, %cst_29 [2] : vector<2x8x8xf32> to vector<2x8xf32>
    %80 = vector.shape_cast %79 : vector<2x8xf32> to vector<2x8x1xf32>
    %81 = tpu.reciprocal %80 {approx = true} : vector<2x8x1xf32> -> vector<2x8x1xf32>
    %82 = vector.broadcast %81 : vector<2x8x1xf32> to vector<2x8x8xf32>
    %83 = arith.mulf %78, %82 : vector<2x8x8xf32>
    %84 = arith.truncf %83 : vector<2x8x8xf32> to vector<2x8x8xbf16>
    "tpu.trace_start"() <{level = 10 : i32, message = "bqk,bkd->bqd"}> : () -> ()
    %cst_30 = arith.constant dense<0.000000e+00> : vector<2x8x16xf32>
    %85 = tpu.matmul %84, %70, %cst_30 {dimension_numbers = #tpu.dot_dimension_numbers<[2], [1], [1], [2], [0, 0, 0, 1, 1, 2], [0], [0]>} : vector<2x8x8xbf16>, vector<2x8x16xbf16>, vector<2x8x16xf32> -> vector<2x8x16xf32>
    "tpu.trace_stop"() : () -> ()
    %c0_31 = arith.constant 0 : index
    %c0_32 = arith.constant 0 : index
    %c16 = arith.constant 16 : index
    %86 = vector.load %arg37[%c0_31, %c0_32, %c16] : memref<2x8x32xf32, #tpu.memory_space<vmem>>, vector<2x8x16xf32>
    tpu.vector_store %arg37[%c0_31, %c0_32, %c16], %85 {strides = array<i32>} : memref<2x8x32xf32, #tpu.memory_space<vmem>>, vector<2x8x16xf32>,
    %c0_33 = arith.constant 0 : index
    %c0_34 = arith.constant 0 : index
    %c0_35 = arith.constant 0 : index
    %87 = vector.load %arg37[%c0_33, %c0_34, %c0_35] : memref<2x8x32xf32, #tpu.memory_space<vmem>>, vector<2x8x32xf32>
    %88 = vector.shape_cast %87 : vector<2x8x32xf32> to vector<16x32xf32>
    %89 = arith.truncf %88 : vector<16x32xf32> to vector<16x32xbf16>
    %c0_36 = arith.constant 0 : index
    %c0_37 = arith.constant 0 : index
    %90 = vector.load %arg8[%c0_36, %c0_37] : memref<32x32xbf16, #tpu.memory_space<vmem>>, vector<32x32xbf16>
    %cst_38 = arith.constant dense<0.000000e+00> : vector<16x32xf32>
    %91 = tpu.matmul %89, %90, %cst_38 {dimension_numbers = #tpu.dot_dimension_numbers<[1], [0], [0], [1], [0, 0, 1, 1], [], []>} : vector<16x32xbf16>, vector<32x32xbf16>, vector<16x32xf32> -> vector<16x32xf32>
    %c0_39 = arith.constant 0 : index
    %c0_40 = arith.constant 0 : index
    %92 = vector.load %arg9[%c0_39, %c0_40] : memref<1x32xf32, #tpu.memory_space<vmem>>, vector<1x32xf32>
    %93 = vector.broadcast %92 : vector<1x32xf32> to vector<16x32xf32>
    %94 = arith.addf %91, %93 : vector<16x32xf32>
    %95 = arith.addf %30, %94 : vector<16x32xf32>
    %c0_41 = arith.constant 0 : index
    %c0_42 = arith.constant 0 : index
    %96 = vector.load %arg14[%c0_41, %c0_42] : memref<1x32xf32, #tpu.memory_space<vmem>>, vector<1x32xf32>
    %c0_43 = arith.constant 0 : index
    %c0_44 = arith.constant 0 : index
    %97 = vector.load %arg15[%c0_43, %c0_44] : memref<1x32xf32, #tpu.memory_space<vmem>>, vector<1x32xf32>
    %cst_45 = arith.constant dense<0.000000e+00> : vector<16xf32>
    %98 = vector.multi_reduction <add>, %95, %cst_45 [1] : vector<16x32xf32> to vector<16xf32>
    %99 = vector.shape_cast %98 : vector<16xf32> to vector<16x1xf32>
    %cst_46 = arith.constant 3.200000e+01 : f32
    %100 = vector.broadcast %cst_46 : f32 to vector<16x1xf32>
    %101 = arith.divf %99, %100 : vector<16x1xf32>
    %102 = vector.broadcast %101 : vector<16x1xf32> to vector<16x32xf32>
    %103 = arith.subf %95, %102 : vector<16x32xf32>
    %104 = arith.mulf %103, %103 : vector<16x32xf32>
    %cst_47 = arith.constant dense<0.000000e+00> : vector<16xf32>
    %105 = vector.multi_reduction <add>, %104, %cst_47 [1] : vector<16x32xf32> to vector<16xf32>
    %106 = vector.shape_cast %105 : vector<16xf32> to vector<16x1xf32>
    %cst_48 = arith.constant 3.200000e+01 : f32
    %107 = vector.broadcast %cst_48 : f32 to vector<16x1xf32>
    %108 = arith.divf %106, %107 : vector<16x1xf32>
    %109 = vector.broadcast %101 : vector<16x1xf32> to vector<16x32xf32>
    %110 = arith.subf %95, %109 : vector<16x32xf32>
    %cst_49 = arith.constant 9.99999974E-6 : f32
    %111 = vector.broadcast %cst_49 : f32 to vector<16x1xf32>
    %112 = arith.addf %108, %111 : vector<16x1xf32>
    %113 = math.rsqrt %112 : vector<16x1xf32>
    %114 = vector.broadcast %113 : vector<16x1xf32> to vector<16x32xf32>
    %115 = arith.mulf %110, %114 : vector<16x32xf32>
    %116 = vector.broadcast %96 : vector<1x32xf32> to vector<16x32xf32>
    %117 = arith.mulf %115, %116 : vector<16x32xf32>
    %118 = vector.broadcast %97 : vector<1x32xf32> to vector<16x32xf32>
    %119 = arith.addf %117, %118 : vector<16x32xf32>
    %120 = arith.truncf %119 : vector<16x32xf32> to vector<16x32xbf16>
    %c0_50 = arith.constant 0 : index
    %c0_51 = arith.constant 0 : index
    %121 = vector.load %arg10[%c0_50, %c0_51] : memref<32x64xbf16, #tpu.memory_space<vmem>>, vector<32x64xbf16>
    %cst_52 = arith.constant dense<0.000000e+00> : vector<16x64xf32>
    %122 = tpu.matmul %120, %121, %cst_52 {dimension_numbers = #tpu.dot_dimension_numbers<[1], [0], [0], [1], [0, 0, 1, 1], [], []>} : vector<16x32xbf16>, vector<32x64xbf16>, vector<16x64xf32> -> vector<16x64xf32>
    %c0_53 = arith.constant 0 : index
    %c0_54 = arith.constant 0 : index
    %123 = vector.load %arg11[%c0_53, %c0_54] : memref<1x64xf32, #tpu.memory_space<vmem>>, vector<1x64xf32>
    %124 = vector.broadcast %123 : vector<1x64xf32> to vector<16x64xf32>
    %125 = arith.addf %122, %124 : vector<16x64xf32>
    %cst_55 = arith.constant 0.000000e+00 : f32
    %126 = vector.broadcast %cst_55 : f32 to vector<16x64xf32>
    %127 = arith.maximumf %125, %126 : vector<16x64xf32>
    %128 = arith.truncf %127 : vector<16x64xf32> to vector<16x64xbf16>
    %c0_56 = arith.constant 0 : index
    %c0_57 = arith.constant 0 : index
    %129 = vector.load %arg12[%c0_56, %c0_57] : memref<64x32xbf16, #tpu.memory_space<vmem>>, vector<64x32xbf16>
    %cst_58 = arith.constant dense<0.000000e+00> : vector<16x32xf32>
    %130 = tpu.matmul %128, %129, %cst_58 {dimension_numbers = #tpu.dot_dimension_numbers<[1], [0], [0], [1], [0, 0, 1, 1], [], []>} : vector<16x64xbf16>, vector<64x32xbf16>, vector<16x32xf32> -> vector<16x32xf32>
    %c0_59 = arith.constant 0 : index
    %c0_60 = arith.constant 0 : index
    %131 = vector.load %arg13[%c0_59, %c0_60] : memref<1x32xf32, #tpu.memory_space<vmem>>, vector<1x32xf32>
    %132 = vector.broadcast %131 : vector<1x32xf32> to vector<16x32xf32>
    %133 = arith.addf %130, %132 : vector<16x32xf32>
    %134 = arith.addf %119, %133 : vector<16x32xf32>
    %c0_61 = arith.constant 0 : index
    %c0_62 = arith.constant 0 : index
    %135 = vector.load %arg16[%c0_61, %c0_62] : memref<1x32xf32, #tpu.memory_space<vmem>>, vector<1x32xf32>
    %c0_63 = arith.constant 0 : index
    %c0_64 = arith.constant 0 : index
    %136 = vector.load %arg17[%c0_63, %c0_64] : memref<1x32xf32, #tpu.memory_space<vmem>>, vector<1x32xf32>
    %cst_65 = arith.constant dense<0.000000e+00> : vector<16xf32>
    %137 = vector.multi_reduction <add>, %134, %cst_65 [1] : vector<16x32xf32> to vector<16xf32>
    %138 = vector.shape_cast %137 : vector<16xf32> to vector<16x1xf32>
    %cst_66 = arith.constant 3.200000e+01 : f32
    %139 = vector.broadcast %cst_66 : f32 to vector<16x1xf32>
    %140 = arith.divf %138, %139 : vector<16x1xf32>
    %141 = vector.broadcast %140 : vector<16x1xf32> to vector<16x32xf32>
    %142 = arith.subf %134, %141 : vector<16x32xf32>
    %143 = arith.mulf %142, %142 : vector<16x32xf32>
    %cst_67 = arith.constant dense<0.000000e+00> : vector<16xf32>
    %144 = vector.multi_reduction <add>, %143, %cst_67 [1] : vector<16x32xf32> to vector<16xf32>
    %145 = vector.shape_cast %144 : vector<16xf32> to vector<16x1xf32>
    %cst_68 = arith.constant 3.200000e+01 : f32
    %146 = vector.broadcast %cst_68 : f32 to vector<16x1xf32>
    %147 = arith.divf %145, %146 : vector<16x1xf32>
    %148 = vector.broadcast %140 : vector<16x1xf32> to vector<16x32xf32>
    %149 = arith.subf %134, %148 : vector<16x32xf32>
    %cst_69 = arith.constant 9.99999974E-6 : f32
    %150 = vector.broadcast %cst_69 : f32 to vector<16x1xf32>
    %151 = arith.addf %147, %150 : vector<16x1xf32>
    %152 = math.rsqrt %151 : vector<16x1xf32>
    %153 = vector.broadcast %152 : vector<16x1xf32> to vector<16x32xf32>
    %154 = arith.mulf %149, %153 : vector<16x32xf32>
    %155 = vector.broadcast %135 : vector<1x32xf32> to vector<16x32xf32>
    %156 = arith.mulf %154, %155 : vector<16x32xf32>
    %157 = vector.broadcast %136 : vector<1x32xf32> to vector<16x32xf32>
    %158 = arith.addf %156, %157 : vector<16x32xf32>
    %159 = arith.truncf %158 : vector<16x32xf32> to vector<16x32xbf16>
    %c0_70 = arith.constant 0 : index
    %c0_71 = arith.constant 0 : index
    %160 = vector.load %arg18[%c0_70, %c0_71] : memref<32x96xbf16, #tpu.memory_space<vmem>>, vector<32x96xbf16>
    %cst_72 = arith.constant dense<0.000000e+00> : vector<16x96xf32>
    %161 = tpu.matmul %159, %160, %cst_72 {dimension_numbers = #tpu.dot_dimension_numbers<[1], [0], [0], [1], [0, 0, 1, 1], [], []>} : vector<16x32xbf16>, vector<32x96xbf16>, vector<16x96xf32> -> vector<16x96xf32>
    %c0_73 = arith.constant 0 : index
    %c0_74 = arith.constant 0 : index
    %162 = vector.load %arg19[%c0_73, %c0_74] : memref<1x96xf32, #tpu.memory_space<vmem>>, vector<1x96xf32>
    %163 = vector.broadcast %162 : vector<1x96xf32> to vector<16x96xf32>
    %164 = arith.addf %161, %163 : vector<16x96xf32>
    %165 = vector.extract_strided_slice %164 {offsets = [0, 0], sizes = [16, 32], strides = [1, 1]} : vector<16x96xf32> to vector<16x32xf32>
    %166 = vector.shape_cast %165 : vector<16x32xf32> to vector<2x8x32xf32>
    %167 = vector.extract_strided_slice %164 {offsets = [0, 32], sizes = [16, 32], strides = [1, 1]} : vector<16x96xf32> to vector<16x32xf32>
    %168 = vector.shape_cast %167 : vector<16x32xf32> to vector<2x8x32xf32>
    %169 = vector.extract_strided_slice %164 {offsets = [0, 64], sizes = [16, 32], strides = [1, 1]} : vector<16x96xf32> to vector<16x32xf32>
    %170 = vector.shape_cast %169 : vector<16x32xf32> to vector<2x8x32xf32>
    %171 = vector.extract_strided_slice %166 {offsets = [0, 0, 0], sizes = [2, 8, 16], strides = [1, 1, 1]} : vector<2x8x32xf32> to vector<2x8x16xf32>
    %172 = arith.truncf %171 : vector<2x8x16xf32> to vector<2x8x16xbf16>
    %173 = vector.extract_strided_slice %168 {offsets = [0, 0, 0], sizes = [2, 8, 16], strides = [1, 1, 1]} : vector<2x8x32xf32> to vector<2x8x16xf32>
    %174 = arith.truncf %173 : vector<2x8x16xf32> to vector<2x8x16xbf16>
    %175 = vector.extract_strided_slice %170 {offsets = [0, 0, 0], sizes = [2, 8, 16], strides = [1, 1, 1]} : vector<2x8x32xf32> to vector<2x8x16xf32>
    %176 = arith.truncf %175 : vector<2x8x16xf32> to vector<2x8x16xbf16>
    "tpu.trace_start"() <{level = 10 : i32, message = "bqd,bkd->bqk"}> : () -> ()
    %cst_75 = arith.constant dense<0.000000e+00> : vector<2x8x8xf32>
    %177 = tpu.matmul %172, %174, %cst_75 {dimension_numbers = #tpu.dot_dimension_numbers<[2], [2], [1], [1], [0, 0, 0, 1, 1, 1], [0], [0]>} : vector<2x8x16xbf16>, vector<2x8x16xbf16>, vector<2x8x8xf32> -> vector<2x8x8xf32>
    "tpu.trace_stop"() : () -> ()
    %cst_76 = arith.constant 2.500000e-01 : f32
    %178 = vector.broadcast %cst_76 : f32 to vector<2x8x8xf32>
    %179 = arith.mulf %177, %178 : vector<2x8x8xf32>
    %cst_77 = arith.constant dense<0xFF800000> : vector<2x8xf32>
    %180 = vector.multi_reduction <maximumf>, %179, %cst_77 [2] : vector<2x8x8xf32> to vector<2x8xf32>
    %181 = vector.shape_cast %180 : vector<2x8xf32> to vector<2x8x1xf32>
    %182 = vector.broadcast %181 : vector<2x8x1xf32> to vector<2x8x8xf32>
    %183 = arith.subf %179, %182 : vector<2x8x8xf32>
    %184 = math.exp %183 : vector<2x8x8xf32>
    %cst_78 = arith.constant dense<0.000000e+00> : vector<2x8xf32>
    %185 = vector.multi_reduction <add>, %184, %cst_78 [2] : vector<2x8x8xf32> to vector<2x8xf32>
    %186 = vector.shape_cast %185 : vector<2x8xf32> to vector<2x8x1xf32>
    %187 = tpu.reciprocal %186 {approx = true} : vector<2x8x1xf32> -> vector<2x8x1xf32>
    %188 = vector.broadcast %187 : vector<2x8x1xf32> to vector<2x8x8xf32>
    %189 = arith.mulf %184, %188 : vector<2x8x8xf32>
    %190 = arith.truncf %189 : vector<2x8x8xf32> to vector<2x8x8xbf16>
    "tpu.trace_start"() <{level = 10 : i32, message = "bqk,bkd->bqd"}> : () -> ()
    %cst_79 = arith.constant dense<0.000000e+00> : vector<2x8x16xf32>
    %191 = tpu.matmul %190, %176, %cst_79 {dimension_numbers = #tpu.dot_dimension_numbers<[2], [1], [1], [2], [0, 0, 0, 1, 1, 2], [0], [0]>} : vector<2x8x8xbf16>, vector<2x8x16xbf16>, vector<2x8x16xf32> -> vector<2x8x16xf32>
    "tpu.trace_stop"() : () -> ()
    %c0_80 = arith.constant 0 : index
    %c0_81 = arith.constant 0 : index
    %c0_82 = arith.constant 0 : index
    %192 = vector.load %arg37[%c0_80, %c0_81, %c0_82] : memref<2x8x32xf32, #tpu.memory_space<vmem>>, vector<2x8x16xf32>
    tpu.vector_store %arg37[%c0_80, %c0_81, %c0_82], %191 {strides = array<i32>} : memref<2x8x32xf32, #tpu.memory_space<vmem>>, vector<2x8x16xf32>,
    %193 = vector.extract_strided_slice %166 {offsets = [0, 0, 16], sizes = [2, 8, 16], strides = [1, 1, 1]} : vector<2x8x32xf32> to vector<2x8x16xf32>
    %194 = arith.truncf %193 : vector<2x8x16xf32> to vector<2x8x16xbf16>
    %195 = vector.extract_strided_slice %168 {offsets = [0, 0, 16], sizes = [2, 8, 16], strides = [1, 1, 1]} : vector<2x8x32xf32> to vector<2x8x16xf32>
    %196 = arith.truncf %195 : vector<2x8x16xf32> to vector<2x8x16xbf16>
    %197 = vector.extract_strided_slice %170 {offsets = [0, 0, 16], sizes = [2, 8, 16], strides = [1, 1, 1]} : vector<2x8x32xf32> to vector<2x8x16xf32>
    %198 = arith.truncf %197 : vector<2x8x16xf32> to vector<2x8x16xbf16>
    "tpu.trace_start"() <{level = 10 : i32, message = "bqd,bkd->bqk"}> : () -> ()
    %cst_83 = arith.constant dense<0.000000e+00> : vector<2x8x8xf32>
    %199 = tpu.matmul %194, %196, %cst_83 {dimension_numbers = #tpu.dot_dimension_numbers<[2], [2], [1], [1], [0, 0, 0, 1, 1, 1], [0], [0]>} : vector<2x8x16xbf16>, vector<2x8x16xbf16>, vector<2x8x8xf32> -> vector<2x8x8xf32>
    "tpu.trace_stop"() : () -> ()
    %cst_84 = arith.constant 2.500000e-01 : f32
    %200 = vector.broadcast %cst_84 : f32 to vector<2x8x8xf32>
    %201 = arith.mulf %199, %200 : vector<2x8x8xf32>
    %cst_85 = arith.constant dense<0xFF800000> : vector<2x8xf32>
    %202 = vector.multi_reduction <maximumf>, %201, %cst_85 [2] : vector<2x8x8xf32> to vector<2x8xf32>
    %203 = vector.shape_cast %202 : vector<2x8xf32> to vector<2x8x1xf32>
    %204 = vector.broadcast %203 : vector<2x8x1xf32> to vector<2x8x8xf32>
    %205 = arith.subf %201, %204 : vector<2x8x8xf32>
    %206 = math.exp %205 : vector<2x8x8xf32>
    %cst_86 = arith.constant dense<0.000000e+00> : vector<2x8xf32>
    %207 = vector.multi_reduction <add>, %206, %cst_86 [2] : vector<2x8x8xf32> to vector<2x8xf32>
    %208 = vector.shape_cast %207 : vector<2x8xf32> to vector<2x8x1xf32>
    %209 = tpu.reciprocal %208 {approx = true} : vector<2x8x1xf32> -> vector<2x8x1xf32>
    %210 = vector.broadcast %209 : vector<2x8x1xf32> to vector<2x8x8xf32>
    %211 = arith.mulf %206, %210 : vector<2x8x8xf32>
    %212 = arith.truncf %211 : vector<2x8x8xf32> to vector<2x8x8xbf16>
    "tpu.trace_start"() <{level = 10 : i32, message = "bqk,bkd->bqd"}> : () -> ()
    %cst_87 = arith.constant dense<0.000000e+00> : vector<2x8x16xf32>
    %213 = tpu.matmul %212, %198, %cst_87 {dimension_numbers = #tpu.dot_dimension_numbers<[2], [1], [1], [2], [0, 0, 0, 1, 1, 2], [0], [0]>} : vector<2x8x8xbf16>, vector<2x8x16xbf16>, vector<2x8x16xf32> -> vector<2x8x16xf32>
    "tpu.trace_stop"() : () -> ()
    %c0_88 = arith.constant 0 : index
    %c0_89 = arith.constant 0 : index
    %c16_90 = arith.constant 16 : index
    %214 = vector.load %arg37[%c0_88, %c0_89, %c16_90] : memref<2x8x32xf32, #tpu.memory_space<vmem>>, vector<2x8x16xf32>
    tpu.vector_store %arg37[%c0_88, %c0_89, %c16_90], %213 {strides = array<i32>} : memref<2x8x32xf32, #tpu.memory_space<vmem>>, vector<2x8x16xf32>,
    %c0_91 = arith.constant 0 : index
    %c0_92 = arith.constant 0 : index
    %c0_93 = arith.constant 0 : index
    %215 = vector.load %arg37[%c0_91, %c0_92, %c0_93] : memref<2x8x32xf32, #tpu.memory_space<vmem>>, vector<2x8x32xf32>
    %216 = vector.shape_cast %215 : vector<2x8x32xf32> to vector<16x32xf32>
    %217 = arith.truncf %216 : vector<16x32xf32> to vector<16x32xbf16>
    %c0_94 = arith.constant 0 : index
    %c0_95 = arith.constant 0 : index
    %218 = vector.load %arg20[%c0_94, %c0_95] : memref<32x32xbf16, #tpu.memory_space<vmem>>, vector<32x32xbf16>
    %cst_96 = arith.constant dense<0.000000e+00> : vector<16x32xf32>
    %219 = tpu.matmul %217, %218, %cst_96 {dimension_numbers = #tpu.dot_dimension_numbers<[1], [0], [0], [1], [0, 0, 1, 1], [], []>} : vector<16x32xbf16>, vector<32x32xbf16>, vector<16x32xf32> -> vector<16x32xf32>
    %c0_97 = arith.constant 0 : index
    %c0_98 = arith.constant 0 : index
    %220 = vector.load %arg21[%c0_97, %c0_98] : memref<1x32xf32, #tpu.memory_space<vmem>>, vector<1x32xf32>
    %221 = vector.broadcast %220 : vector<1x32xf32> to vector<16x32xf32>
    %222 = arith.addf %219, %221 : vector<16x32xf32>
    %223 = arith.addf %158, %222 : vector<16x32xf32>
    %c0_99 = arith.constant 0 : index
    %c0_100 = arith.constant 0 : index
    %224 = vector.load %arg26[%c0_99, %c0_100] : memref<1x32xf32, #tpu.memory_space<vmem>>, vector<1x32xf32>
    %c0_101 = arith.constant 0 : index
    %c0_102 = arith.constant 0 : index
    %225 = vector.load %arg27[%c0_101, %c0_102] : memref<1x32xf32, #tpu.memory_space<vmem>>, vector<1x32xf32>
    %cst_103 = arith.constant dense<0.000000e+00> : vector<16xf32>
    %226 = vector.multi_reduction <add>, %223, %cst_103 [1] : vector<16x32xf32> to vector<16xf32>
    %227 = vector.shape_cast %226 : vector<16xf32> to vector<16x1xf32>
    %cst_104 = arith.constant 3.200000e+01 : f32
    %228 = vector.broadcast %cst_104 : f32 to vector<16x1xf32>
    %229 = arith.divf %227, %228 : vector<16x1xf32>
    %230 = vector.broadcast %229 : vector<16x1xf32> to vector<16x32xf32>
    %231 = arith.subf %223, %230 : vector<16x32xf32>
    %232 = arith.mulf %231, %231 : vector<16x32xf32>
    %cst_105 = arith.constant dense<0.000000e+00> : vector<16xf32>
    %233 = vector.multi_reduction <add>, %232, %cst_105 [1] : vector<16x32xf32> to vector<16xf32>
    %234 = vector.shape_cast %233 : vector<16xf32> to vector<16x1xf32>
    %cst_106 = arith.constant 3.200000e+01 : f32
    %235 = vector.broadcast %cst_106 : f32 to vector<16x1xf32>
    %236 = arith.divf %234, %235 : vector<16x1xf32>
    %237 = vector.broadcast %229 : vector<16x1xf32> to vector<16x32xf32>
    %238 = arith.subf %223, %237 : vector<16x32xf32>
    %cst_107 = arith.constant 9.99999974E-6 : f32
    %239 = vector.broadcast %cst_107 : f32 to vector<16x1xf32>
    %240 = arith.addf %236, %239 : vector<16x1xf32>
    %241 = math.rsqrt %240 : vector<16x1xf32>
    %242 = vector.broadcast %241 : vector<16x1xf32> to vector<16x32xf32>
    %243 = arith.mulf %238, %242 : vector<16x32xf32>
    %244 = vector.broadcast %224 : vector<1x32xf32> to vector<16x32xf32>
    %245 = arith.mulf %243, %244 : vector<16x32xf32>
    %246 = vector.broadcast %225 : vector<1x32xf32> to vector<16x32xf32>
    %247 = arith.addf %245, %246 : vector<16x32xf32>
    %248 = arith.truncf %247 : vector<16x32xf32> to vector<16x32xbf16>
    %c0_108 = arith.constant 0 : index
    %c0_109 = arith.constant 0 : index
    %249 = vector.load %arg22[%c0_108, %c0_109] : memref<32x64xbf16, #tpu.memory_space<vmem>>, vector<32x64xbf16>
    %cst_110 = arith.constant dense<0.000000e+00> : vector<16x64xf32>
    %250 = tpu.matmul %248, %249, %cst_110 {dimension_numbers = #tpu.dot_dimension_numbers<[1], [0], [0], [1], [0, 0, 1, 1], [], []>} : vector<16x32xbf16>, vector<32x64xbf16>, vector<16x64xf32> -> vector<16x64xf32>
    %c0_111 = arith.constant 0 : index
    %c0_112 = arith.constant 0 : index
    %251 = vector.load %arg23[%c0_111, %c0_112] : memref<1x64xf32, #tpu.memory_space<vmem>>, vector<1x64xf32>
    %252 = vector.broadcast %251 : vector<1x64xf32> to vector<16x64xf32>
    %253 = arith.addf %250, %252 : vector<16x64xf32>
    %cst_113 = arith.constant 0.000000e+00 : f32
    %254 = vector.broadcast %cst_113 : f32 to vector<16x64xf32>
    %255 = arith.maximumf %253, %254 : vector<16x64xf32>
    %256 = arith.truncf %255 : vector<16x64xf32> to vector<16x64xbf16>
    %c0_114 = arith.constant 0 : index
    %c0_115 = arith.constant 0 : index
    %257 = vector.load %arg24[%c0_114, %c0_115] : memref<64x32xbf16, #tpu.memory_space<vmem>>, vector<64x32xbf16>
    %cst_116 = arith.constant dense<0.000000e+00> : vector<16x32xf32>
    %258 = tpu.matmul %256, %257, %cst_116 {dimension_numbers = #tpu.dot_dimension_numbers<[1], [0], [0], [1], [0, 0, 1, 1], [], []>} : vector<16x64xbf16>, vector<64x32xbf16>, vector<16x32xf32> -> vector<16x32xf32>
    %c0_117 = arith.constant 0 : index
    %c0_118 = arith.constant 0 : index
    %259 = vector.load %arg25[%c0_117, %c0_118] : memref<1x32xf32, #tpu.memory_space<vmem>>, vector<1x32xf32>
    %260 = vector.broadcast %259 : vector<1x32xf32> to vector<16x32xf32>
    %261 = arith.addf %258, %260 : vector<16x32xf32>
    %262 = arith.addf %247, %261 : vector<16x32xf32>
    %c0_119 = arith.constant 0 : index
    %c0_120 = arith.constant 0 : index
    %263 = vector.load %arg28[%c0_119, %c0_120] : memref<1x32xf32, #tpu.memory_space<vmem>>, vector<1x32xf32>
    %c0_121 = arith.constant 0 : index
    %c0_122 = arith.constant 0 : index
    %264 = vector.load %arg29[%c0_121, %c0_122] : memref<1x32xf32, #tpu.memory_space<vmem>>, vector<1x32xf32>
    %cst_123 = arith.constant dense<0.000000e+00> : vector<16xf32>
    %265 = vector.multi_reduction <add>, %262, %cst_123 [1] : vector<16x32xf32> to vector<16xf32>
    %266 = vector.shape_cast %265 : vector<16xf32> to vector<16x1xf32>
    %cst_124 = arith.constant 3.200000e+01 : f32
    %267 = vector.broadcast %cst_124 : f32 to vector<16x1xf32>
    %268 = arith.divf %266, %267 : vector<16x1xf32>
    %269 = vector.broadcast %268 : vector<16x1xf32> to vector<16x32xf32>
    %270 = arith.subf %262, %269 : vector<16x32xf32>
    %271 = arith.mulf %270, %270 : vector<16x32xf32>
    %cst_125 = arith.constant dense<0.000000e+00> : vector<16xf32>
    %272 = vector.multi_reduction <add>, %271, %cst_125 [1] : vector<16x32xf32> to vector<16xf32>
    %273 = vector.shape_cast %272 : vector<16xf32> to vector<16x1xf32>
    %cst_126 = arith.constant 3.200000e+01 : f32
    %274 = vector.broadcast %cst_126 : f32 to vector<16x1xf32>
    %275 = arith.divf %273, %274 : vector<16x1xf32>
    %276 = vector.broadcast %268 : vector<16x1xf32> to vector<16x32xf32>
    %277 = arith.subf %262, %276 : vector<16x32xf32>
    %cst_127 = arith.constant 9.99999974E-6 : f32
    %278 = vector.broadcast %cst_127 : f32 to vector<16x1xf32>
    %279 = arith.addf %275, %278 : vector<16x1xf32>
    %280 = math.rsqrt %279 : vector<16x1xf32>
    %281 = vector.broadcast %280 : vector<16x1xf32> to vector<16x32xf32>
    %282 = arith.mulf %277, %281 : vector<16x32xf32>
    %283 = vector.broadcast %263 : vector<1x32xf32> to vector<16x32xf32>
    %284 = arith.mulf %282, %283 : vector<16x32xf32>
    %285 = vector.broadcast %264 : vector<1x32xf32> to vector<16x32xf32>
    %286 = arith.addf %284, %285 : vector<16x32xf32>
    %287 = vector.shape_cast %286 : vector<16x32xf32> to vector<2x8x32xf32>
    %cst_128 = arith.constant 0.000000e+00 : f32
    %288 = vector.broadcast %cst_128 : f32 to vector<2x32xf32>
    %289 = vector.extract_strided_slice %287 {offsets = [0, 0, 0], sizes = [2, 1, 32], strides = [1, 1, 1]} : vector<2x8x32xf32> to vector<2x1x32xf32>
    %290 = vector.shape_cast %289 : vector<2x1x32xf32> to vector<2x32xf32>
    %291 = arith.truncf %290 : vector<2x32xf32> to vector<2x32xbf16>
    %c0_129 = arith.constant 0 : index
    %c0_130 = arith.constant 0 : index
    %c0_131 = arith.constant 0 : index
    %292 = vector.load %arg30[%c0_129, %c0_130, %c0_131] : memref<8x32x32xbf16, #tpu.memory_space<vmem>>, vector<1x32x32xbf16>
    %293 = vector.shape_cast %292 : vector<1x32x32xbf16> to vector<32x32xbf16>
    %cst_132 = arith.constant dense<0.000000e+00> : vector<2x32xf32>
    %294 = tpu.matmul %291, %293, %cst_132 {dimension_numbers = #tpu.dot_dimension_numbers<[1], [0], [0], [1], [0, 0, 1, 1], [], []>} : vector<2x32xbf16>, vector<32x32xbf16>, vector<2x32xf32> -> vector<2x32xf32>
    %295 = arith.addf %288, %294 : vector<2x32xf32>
    %296 = vector.extract_strided_slice %287 {offsets = [0, 1, 0], sizes = [2, 1, 32], strides = [1, 1, 1]} : vector<2x8x32xf32> to vector<2x1x32xf32>
    %297 = vector.shape_cast %296 : vector<2x1x32xf32> to vector<2x32xf32>
    %298 = arith.truncf %297 : vector<2x32xf32> to vector<2x32xbf16>
    %c1 = arith.constant 1 : index
    %c0_133 = arith.constant 0 : index
    %c0_134 = arith.constant 0 : index
    %299 = vector.load %arg30[%c1, %c0_133, %c0_134] : memref<8x32x32xbf16, #tpu.memory_space<vmem>>, vector<1x32x32xbf16>
    %300 = vector.shape_cast %299 : vector<1x32x32xbf16> to vector<32x32xbf16>
    %cst_135 = arith.constant dense<0.000000e+00> : vector<2x32xf32>
    %301 = tpu.matmul %298, %300, %cst_135 {dimension_numbers = #tpu.dot_dimension_numbers<[1], [0], [0], [1], [0, 0, 1, 1], [], []>} : vector<2x32xbf16>, vector<32x32xbf16>, vector<2x32xf32> -> vector<2x32xf32>
    %302 = arith.addf %295, %301 : vector<2x32xf32>
    %303 = vector.extract_strided_slice %287 {offsets = [0, 2, 0], sizes = [2, 1, 32], strides = [1, 1, 1]} : vector<2x8x32xf32> to vector<2x1x32xf32>
    %304 = vector.shape_cast %303 : vector<2x1x32xf32> to vector<2x32xf32>
    %305 = arith.truncf %304 : vector<2x32xf32> to vector<2x32xbf16>
    %c2 = arith.constant 2 : index
    %c0_136 = arith.constant 0 : index
    %c0_137 = arith.constant 0 : index
    %306 = vector.load %arg30[%c2, %c0_136, %c0_137] : memref<8x32x32xbf16, #tpu.memory_space<vmem>>, vector<1x32x32xbf16>
    %307 = vector.shape_cast %306 : vector<1x32x32xbf16> to vector<32x32xbf16>
    %cst_138 = arith.constant dense<0.000000e+00> : vector<2x32xf32>
    %308 = tpu.matmul %305, %307, %cst_138 {dimension_numbers = #tpu.dot_dimension_numbers<[1], [0], [0], [1], [0, 0, 1, 1], [], []>} : vector<2x32xbf16>, vector<32x32xbf16>, vector<2x32xf32> -> vector<2x32xf32>
    %309 = arith.addf %302, %308 : vector<2x32xf32>
    %310 = vector.extract_strided_slice %287 {offsets = [0, 3, 0], sizes = [2, 1, 32], strides = [1, 1, 1]} : vector<2x8x32xf32> to vector<2x1x32xf32>
    %311 = vector.shape_cast %310 : vector<2x1x32xf32> to vector<2x32xf32>
    %312 = arith.truncf %311 : vector<2x32xf32> to vector<2x32xbf16>
    %c3 = arith.constant 3 : index
    %c0_139 = arith.constant 0 : index
    %c0_140 = arith.constant 0 : index
    %313 = vector.load %arg30[%c3, %c0_139, %c0_140] : memref<8x32x32xbf16, #tpu.memory_space<vmem>>, vector<1x32x32xbf16>
    %314 = vector.shape_cast %313 : vector<1x32x32xbf16> to vector<32x32xbf16>
    %cst_141 = arith.constant dense<0.000000e+00> : vector<2x32xf32>
    %315 = tpu.matmul %312, %314, %cst_141 {dimension_numbers = #tpu.dot_dimension_numbers<[1], [0], [0], [1], [0, 0, 1, 1], [], []>} : vector<2x32xbf16>, vector<32x32xbf16>, vector<2x32xf32> -> vector<2x32xf32>
    %316 = arith.addf %309, %315 : vector<2x32xf32>
    %317 = vector.extract_strided_slice %287 {offsets = [0, 4, 0], sizes = [2, 1, 32], strides = [1, 1, 1]} : vector<2x8x32xf32> to vector<2x1x32xf32>
    %318 = vector.shape_cast %317 : vector<2x1x32xf32> to vector<2x32xf32>
    %319 = arith.truncf %318 : vector<2x32xf32> to vector<2x32xbf16>
    %c4 = arith.constant 4 : index
    %c0_142 = arith.constant 0 : index
    %c0_143 = arith.constant 0 : index
    %320 = vector.load %arg30[%c4, %c0_142, %c0_143] : memref<8x32x32xbf16, #tpu.memory_space<vmem>>, vector<1x32x32xbf16>
    %321 = vector.shape_cast %320 : vector<1x32x32xbf16> to vector<32x32xbf16>
    %cst_144 = arith.constant dense<0.000000e+00> : vector<2x32xf32>
    %322 = tpu.matmul %319, %321, %cst_144 {dimension_numbers = #tpu.dot_dimension_numbers<[1], [0], [0], [1], [0, 0, 1, 1], [], []>} : vector<2x32xbf16>, vector<32x32xbf16>, vector<2x32xf32> -> vector<2x32xf32>
    %323 = arith.addf %316, %322 : vector<2x32xf32>
    %324 = vector.extract_strided_slice %287 {offsets = [0, 5, 0], sizes = [2, 1, 32], strides = [1, 1, 1]} : vector<2x8x32xf32> to vector<2x1x32xf32>
    %325 = vector.shape_cast %324 : vector<2x1x32xf32> to vector<2x32xf32>
    %326 = arith.truncf %325 : vector<2x32xf32> to vector<2x32xbf16>
    %c5 = arith.constant 5 : index
    %c0_145 = arith.constant 0 : index
    %c0_146 = arith.constant 0 : index
    %327 = vector.load %arg30[%c5, %c0_145, %c0_146] : memref<8x32x32xbf16, #tpu.memory_space<vmem>>, vector<1x32x32xbf16>
    %328 = vector.shape_cast %327 : vector<1x32x32xbf16> to vector<32x32xbf16>
    %cst_147 = arith.constant dense<0.000000e+00> : vector<2x32xf32>
    %329 = tpu.matmul %326, %328, %cst_147 {dimension_numbers = #tpu.dot_dimension_numbers<[1], [0], [0], [1], [0, 0, 1, 1], [], []>} : vector<2x32xbf16>, vector<32x32xbf16>, vector<2x32xf32> -> vector<2x32xf32>
    %330 = arith.addf %323, %329 : vector<2x32xf32>
    %331 = vector.extract_strided_slice %287 {offsets = [0, 6, 0], sizes = [2, 1, 32], strides = [1, 1, 1]} : vector<2x8x32xf32> to vector<2x1x32xf32>
    %332 = vector.shape_cast %331 : vector<2x1x32xf32> to vector<2x32xf32>
    %333 = arith.truncf %332 : vector<2x32xf32> to vector<2x32xbf16>
    %c6 = arith.constant 6 : index
    %c0_148 = arith.constant 0 : index
    %c0_149 = arith.constant 0 : index
    %334 = vector.load %arg30[%c6, %c0_148, %c0_149] : memref<8x32x32xbf16, #tpu.memory_space<vmem>>, vector<1x32x32xbf16>
    %335 = vector.shape_cast %334 : vector<1x32x32xbf16> to vector<32x32xbf16>
    %cst_150 = arith.constant dense<0.000000e+00> : vector<2x32xf32>
    %336 = tpu.matmul %333, %335, %cst_150 {dimension_numbers = #tpu.dot_dimension_numbers<[1], [0], [0], [1], [0, 0, 1, 1], [], []>} : vector<2x32xbf16>, vector<32x32xbf16>, vector<2x32xf32> -> vector<2x32xf32>
    %337 = arith.addf %330, %336 : vector<2x32xf32>
    %338 = vector.extract_strided_slice %287 {offsets = [0, 7, 0], sizes = [2, 1, 32], strides = [1, 1, 1]} : vector<2x8x32xf32> to vector<2x1x32xf32>
    %339 = vector.shape_cast %338 : vector<2x1x32xf32> to vector<2x32xf32>
    %340 = arith.truncf %339 : vector<2x32xf32> to vector<2x32xbf16>
    %c7 = arith.constant 7 : index
    %c0_151 = arith.constant 0 : index
    %c0_152 = arith.constant 0 : index
    %341 = vector.load %arg30[%c7, %c0_151, %c0_152] : memref<8x32x32xbf16, #tpu.memory_space<vmem>>, vector<1x32x32xbf16>
    %342 = vector.shape_cast %341 : vector<1x32x32xbf16> to vector<32x32xbf16>
    %cst_153 = arith.constant dense<0.000000e+00> : vector<2x32xf32>
    %343 = tpu.matmul %340, %342, %cst_153 {dimension_numbers = #tpu.dot_dimension_numbers<[1], [0], [0], [1], [0, 0, 1, 1], [], []>} : vector<2x32xbf16>, vector<32x32xbf16>, vector<2x32xf32> -> vector<2x32xf32>
    %344 = arith.addf %337, %343 : vector<2x32xf32>
    %c0_154 = arith.constant 0 : index
    %c0_155 = arith.constant 0 : index
    %345 = vector.load %arg31[%c0_154, %c0_155] : memref<1x32xf32, #tpu.memory_space<vmem>>, vector<1x32xf32>
    %346 = vector.broadcast %345 : vector<1x32xf32> to vector<2x32xf32>
    %347 = arith.addf %344, %346 : vector<2x32xf32>
    %cst_156 = arith.constant 0.000000e+00 : f32
    %348 = vector.broadcast %cst_156 : f32 to vector<2x32xf32>
    %349 = arith.maximumf %347, %348 : vector<2x32xf32>
    %350 = arith.truncf %349 : vector<2x32xf32> to vector<2x32xbf16>
    %c0_157 = arith.constant 0 : index
    %c0_158 = arith.constant 0 : index
    %351 = vector.load %arg32[%c0_157, %c0_158] : memref<32x12xbf16, #tpu.memory_space<vmem>>, vector<32x12xbf16>
    %cst_159 = arith.constant dense<0.000000e+00> : vector<2x12xf32>
    %352 = tpu.matmul %350, %351, %cst_159 {dimension_numbers = #tpu.dot_dimension_numbers<[1], [0], [0], [1], [0, 0, 1, 1], [], []>} : vector<2x32xbf16>, vector<32x12xbf16>, vector<2x12xf32> -> vector<2x12xf32>
    %c0_160 = arith.constant 0 : index
    %c0_161 = arith.constant 0 : index
    %353 = vector.load %arg33[%c0_160, %c0_161] : memref<1x12xf32, #tpu.memory_space<vmem>>, vector<1x12xf32>
    %354 = vector.broadcast %353 : vector<1x12xf32> to vector<2x12xf32>
    %355 = arith.addf %352, %354 : vector<2x12xf32>
    %cst_162 = arith.constant 0.000000e+00 : f32
    %356 = vector.broadcast %cst_162 : f32 to vector<2x12xf32>
    %357 = arith.maximumf %355, %356 : vector<2x12xf32>
    %358 = math.absf %355 : vector<2x12xf32>
    %cst_163 = arith.constant 0.000000e+00 : f32
    %359 = vector.broadcast %cst_163 : f32 to vector<2x12xf32>
    %360 = arith.subf %359, %358 : vector<2x12xf32>
    %361 = math.exp %360 : vector<2x12xf32>
    %cst_164 = arith.constant 1.000000e+00 : f32
    %362 = vector.broadcast %cst_164 : f32 to vector<2x12xf32>
    %363 = arith.addf %362, %361 : vector<2x12xf32>
    %364 = math.log %363 : vector<2x12xf32>
    %365 = arith.addf %357, %364 : vector<2x12xf32>
    %c0_165 = arith.constant 0 : index
    %c0_166 = arith.constant 0 : index
    %366 = vector.load %arg34[%c0_165, %c0_166] : memref<12x12xf32, #tpu.memory_space<vmem>>, vector<12x12xf32>
    %cst_167 = arith.constant dense<0.000000e+00> : vector<2x12xf32>
    %367 = tpu.matmul %355, %366, %cst_167 {dimension_numbers = #tpu.dot_dimension_numbers<[1], [0], [0], [1], [0, 0, 1, 1], [], []>} : vector<2x12xf32>, vector<12x12xf32>, vector<2x12xf32> -> vector<2x12xf32>
    %c0_168 = arith.constant 0 : index
    %c0_169 = arith.constant 0 : index
    %368 = vector.load %arg35[%c0_168, %c0_169] : memref<12x12xf32, #tpu.memory_space<vmem>>, vector<12x12xf32>
    %cst_170 = arith.constant dense<0.000000e+00> : vector<2x12xf32>
    %369 = tpu.matmul %365, %368, %cst_170 {dimension_numbers = #tpu.dot_dimension_numbers<[1], [0], [0], [1], [0, 0, 1, 1], [], []>} : vector<2x12xf32>, vector<12x12xf32>, vector<2x12xf32> -> vector<2x12xf32>
    %370 = arith.addf %367, %369 : vector<2x12xf32>
    %c0_171 = arith.constant 0 : index
    %c0_172 = arith.constant 0 : index
    %371 = vector.load %arg36[%c0_171, %c0_172] : memref<2x12xf32, #tpu.memory_space<vmem>>, vector<2x12xf32>
    tpu.vector_store %arg36[%c0_171, %c0_172], %370 {strides = array<i32>} : memref<2x12xf32, #tpu.memory_space<vmem>>, vector<2x12xf32>,
    return
  }
  func.func @transform_0(%arg0: i32) -> (i32, i32) {
    %c0_i32 = arith.constant 0 : i32
    %c0_i32_0 = arith.constant 0 : i32
    return %arg0, %c0_i32 : i32, i32
  }
  func.func @transform_1(%arg0: i32) -> (i32, i32) {
    %c0_i32 = arith.constant 0 : i32
    %c0_i32_0 = arith.constant 0 : i32
    return %arg0, %c0_i32 : i32, i32
  }
  func.func @transform_2(%arg0: i32) -> (i32, i32) {
    %c0_i32 = arith.constant 0 : i32
    %c0_i32_0 = arith.constant 0 : i32
    %c0_i32_1 = arith.constant 0 : i32
    return %c0_i32, %c0_i32_0 : i32, i32
  }
  func.func @transform_3(%arg0: i32) -> (i32, i32) {
    %c0_i32 = arith.constant 0 : i32
    %c0_i32_0 = arith.constant 0 : i32
    %c0_i32_1 = arith.constant 0 : i32
    return %c0_i32, %c0_i32_0 : i32, i32
  }
  func.func @transform_4(%arg0: i32) -> (i32, i32) {
    %c0_i32 = arith.constant 0 : i32
    %c0_i32_0 = arith.constant 0 : i32
    %c0_i32_1 = arith.constant 0 : i32
    return %c0_i32, %c0_i32_0 : i32, i32
  }
  func.func @transform_5(%arg0: i32) -> (i32, i32) {
    %c0_i32 = arith.constant 0 : i32
    %c0_i32_0 = arith.constant 0 : i32
    %c0_i32_1 = arith.constant 0 : i32
    return %c0_i32, %c0_i32_0 : i32, i32
  }
  func.func @transform_6(%arg0: i32) -> (i32, i32) {
    %c0_i32 = arith.constant 0 : i32
    %c0_i32_0 = arith.constant 0 : i32
    %c0_i32_1 = arith.constant 0 : i32
    return %c0_i32, %c0_i32_0 : i32, i32
  }
  func.func @transform_7(%arg0: i32) -> (i32, i32) {
    %c0_i32 = arith.constant 0 : i32
    %c0_i32_0 = arith.constant 0 : i32
    %c0_i32_1 = arith.constant 0 : i32
    return %c0_i32, %c0_i32_0 : i32, i32
  }
  func.func @transform_8(%arg0: i32) -> (i32, i32) {
    %c0_i32 = arith.constant 0 : i32
    %c0_i32_0 = arith.constant 0 : i32
    %c0_i32_1 = arith.constant 0 : i32
    return %c0_i32, %c0_i32_0 : i32, i32
  }
  func.func @transform_9(%arg0: i32) -> (i32, i32) {
    %c0_i32 = arith.constant 0 : i32
    %c0_i32_0 = arith.constant 0 : i32
    %c0_i32_1 = arith.constant 0 : i32
    return %c0_i32, %c0_i32_0 : i32, i32
  }
  func.func @transform_10(%arg0: i32) -> (i32, i32) {
    %c0_i32 = arith.constant 0 : i32
    %c0_i32_0 = arith.constant 0 : i32
    %c0_i32_1 = arith.constant 0 : i32
    return %c0_i32, %c0_i32_0 : i32, i32
  }
  func.func @transform_11(%arg0: i32) -> (i32, i32) {
    %c0_i32 = arith.constant 0 : i32
    %c0_i32_0 = arith.constant 0 : i32
    %c0_i32_1 = arith.constant 0 : i32
    return %c0_i32, %c0_i32_0 : i32, i32
  }
  func.func @transform_12(%arg0: i32) -> (i32, i32) {
    %c0_i32 = arith.constant 0 : i32
    %c0_i32_0 = arith.constant 0 : i32
    %c0_i32_1 = arith.constant 0 : i32
    return %c0_i32, %c0_i32_0 : i32, i32
  }
  func.func @transform_13(%arg0: i32) -> (i32, i32) {
    %c0_i32 = arith.constant 0 : i32
    %c0_i32_0 = arith.constant 0 : i32
    %c0_i32_1 = arith.constant 0 : i32
    return %c0_i32, %c0_i32_0 : i32, i32
  }
  func.func @transform_14(%arg0: i32) -> (i32, i32) {
    %c0_i32 = arith.constant 0 : i32
    %c0_i32_0 = arith.constant 0 : i32
    %c0_i32_1 = arith.constant 0 : i32
    return %c0_i32, %c0_i32_0 : i32, i32
  }
  func.func @transform_15(%arg0: i32) -> (i32, i32) {
    %c0_i32 = arith.constant 0 : i32
    %c0_i32_0 = arith.constant 0 : i32
    %c0_i32_1 = arith.constant 0 : i32
    return %c0_i32, %c0_i32_0 : i32, i32
  }
  func.func @transform_16(%arg0: i32) -> (i32, i32) {
    %c0_i32 = arith.constant 0 : i32
    %c0_i32_0 = arith.constant 0 : i32
    %c0_i32_1 = arith.constant 0 : i32
    return %c0_i32, %c0_i32_0 : i32, i32
  }
  func.func @transform_17(%arg0: i32) -> (i32, i32) {
    %c0_i32 = arith.constant 0 : i32
    %c0_i32_0 = arith.constant 0 : i32
    %c0_i32_1 = arith.constant 0 : i32
    return %c0_i32, %c0_i32_0 : i32, i32
  }
  func.func @transform_18(%arg0: i32) -> (i32, i32) {
    %c0_i32 = arith.constant 0 : i32
    %c0_i32_0 = arith.constant 0 : i32
    %c0_i32_1 = arith.constant 0 : i32
    return %c0_i32, %c0_i32_0 : i32, i32
  }
  func.func @transform_19(%arg0: i32) -> (i32, i32) {
    %c0_i32 = arith.constant 0 : i32
    %c0_i32_0 = arith.constant 0 : i32
    %c0_i32_1 = arith.constant 0 : i32
    return %c0_i32, %c0_i32_0 : i32, i32
  }
  func.func @transform_20(%arg0: i32) -> (i32, i32) {
    %c0_i32 = arith.constant 0 : i32
    %c0_i32_0 = arith.constant 0 : i32
    %c0_i32_1 = arith.constant 0 : i32
    return %c0_i32, %c0_i32_0 : i32, i32
  }
  func.func @transform_21(%arg0: i32) -> (i32, i32) {
    %c0_i32 = arith.constant 0 : i32
    %c0_i32_0 = arith.constant 0 : i32
    %c0_i32_1 = arith.constant 0 : i32
    return %c0_i32, %c0_i32_0 : i32, i32
  }
  func.func @transform_22(%arg0: i32) -> (i32, i32) {
    %c0_i32 = arith.constant 0 : i32
    %c0_i32_0 = arith.constant 0 : i32
    %c0_i32_1 = arith.constant 0 : i32
    return %c0_i32, %c0_i32_0 : i32, i32
  }
  func.func @transform_23(%arg0: i32) -> (i32, i32) {
    %c0_i32 = arith.constant 0 : i32
    %c0_i32_0 = arith.constant 0 : i32
    %c0_i32_1 = arith.constant 0 : i32
    return %c0_i32, %c0_i32_0 : i32, i32
  }
  func.func @transform_24(%arg0: i32) -> (i32, i32) {
    %c0_i32 = arith.constant 0 : i32
    %c0_i32_0 = arith.constant 0 : i32
    %c0_i32_1 = arith.constant 0 : i32
    return %c0_i32, %c0_i32_0 : i32, i32
  }
  func.func @transform_25(%arg0: i32) -> (i32, i32) {
    %c0_i32 = arith.constant 0 : i32
    %c0_i32_0 = arith.constant 0 : i32
    %c0_i32_1 = arith.constant 0 : i32
    return %c0_i32, %c0_i32_0 : i32, i32
  }
  func.func @transform_26(%arg0: i32) -> (i32, i32) {
    %c0_i32 = arith.constant 0 : i32
    %c0_i32_0 = arith.constant 0 : i32
    %c0_i32_1 = arith.constant 0 : i32
    return %c0_i32, %c0_i32_0 : i32, i32
  }
  func.func @transform_27(%arg0: i32) -> (i32, i32) {
    %c0_i32 = arith.constant 0 : i32
    %c0_i32_0 = arith.constant 0 : i32
    %c0_i32_1 = arith.constant 0 : i32
    return %c0_i32, %c0_i32_0 : i32, i32
  }
  func.func @transform_28(%arg0: i32) -> (i32, i32) {
    %c0_i32 = arith.constant 0 : i32
    %c0_i32_0 = arith.constant 0 : i32
    %c0_i32_1 = arith.constant 0 : i32
    return %c0_i32, %c0_i32_0 : i32, i32
  }
  func.func @transform_29(%arg0: i32) -> (i32, i32, i32) {
    %c0_i32 = arith.constant 0 : i32
    %c0_i32_0 = arith.constant 0 : i32
    %c0_i32_1 = arith.constant 0 : i32
    %c0_i32_2 = arith.constant 0 : i32
    return %c0_i32, %c0_i32_0, %c0_i32_1 : i32, i32, i32
  }
  func.func @transform_30(%arg0: i32) -> (i32, i32) {
    %c0_i32 = arith.constant 0 : i32
    %c0_i32_0 = arith.constant 0 : i32
    %c0_i32_1 = arith.constant 0 : i32
    return %c0_i32, %c0_i32_0 : i32, i32
  }
  func.func @transform_31(%arg0: i32) -> (i32, i32) {
    %c0_i32 = arith.constant 0 : i32
    %c0_i32_0 = arith.constant 0 : i32
    %c0_i32_1 = arith.constant 0 : i32
    return %c0_i32, %c0_i32_0 : i32, i32
  }
  func.func @transform_32(%arg0: i32) -> (i32, i32) {
    %c0_i32 = arith.constant 0 : i32
    %c0_i32_0 = arith.constant 0 : i32
    %c0_i32_1 = arith.constant 0 : i32
    return %c0_i32, %c0_i32_0 : i32, i32
  }
  func.func @transform_33(%arg0: i32) -> (i32, i32) {
    %c0_i32 = arith.constant 0 : i32
    %c0_i32_0 = arith.constant 0 : i32
    %c0_i32_1 = arith.constant 0 : i32
    return %c0_i32, %c0_i32_0 : i32, i32
  }
  func.func @transform_34(%arg0: i32) -> (i32, i32) {
    %c0_i32 = arith.constant 0 : i32
    %c0_i32_0 = arith.constant 0 : i32
    %c0_i32_1 = arith.constant 0 : i32
    return %c0_i32, %c0_i32_0 : i32, i32
  }
  func.func @transform_35(%arg0: i32) -> (i32, i32) {
    %c0_i32 = arith.constant 0 : i32
    %c0_i32_0 = arith.constant 0 : i32
    return %arg0, %c0_i32 : i32, i32
  }
}

</mosaic_0001>

<llo_original>
// kernel: deep_quant_reg_forward.1
$region0: #{deep_quant_reg_forward.1}
  #allocation0 [shape = 'u32[]', space=smem, size = 0x4, offset = 0x4, fixed_abs, tag = 'smem constant byte address 0x4 - core index']
  #allocation1 [shape = 'u32[144,128]{1,0:T(1,128)}', space=vmem, size = 0x12000, scoped, tag = 'internal scratch']
  #allocation2 [shape = 'f32[2,8,32]{2,1,0:T(8,128)}', space=vmem, size = 0x2000, scoped, tag = 'scratch operand']
  %s0 = inlined_call_operand.smem [shape: u32[36], index: -1, kind: input, shape index: {}]
  %s1 = sld [smem:[%s0]]
  %s2 = scalar_lea.smem %s0, 1
  %s3 = sld [smem:[%s2]]
  %s4 = scalar_lea.smem %s0, 2
  %s5 = sld [smem:[%s4]]
  %s6 = scalar_lea.smem %s0, 3
  %s7 = sld [smem:[%s6]]
  %s8 = scalar_lea.smem %s0, 4
  %s9 = sld [smem:[%s8]]
  %s10 = scalar_lea.smem %s0, 5
  %s11 = sld [smem:[%s10]]
  %s12 = scalar_lea.smem %s0, 6
  %s13 = sld [smem:[%s12]]
  %s14 = scalar_lea.smem %s0, 7
  %s15 = sld [smem:[%s14]]
  %s16 = scalar_lea.smem %s0, 8
  %s17 = sld [smem:[%s16]]
  %s18 = scalar_lea.smem %s0, 9
  %s19 = sld [smem:[%s18]]
  %s20 = scalar_lea.smem %s0, 10
  %s21 = sld [smem:[%s20]]
  %s22 = scalar_lea.smem %s0, 11
  %s23 = sld [smem:[%s22]]
  %s24 = scalar_lea.smem %s0, 12
  %s25 = sld [smem:[%s24]]
  %s26 = scalar_lea.smem %s0, 13
  %s27 = sld [smem:[%s26]]
  %s28 = scalar_lea.smem %s0, 14
  %s29 = sld [smem:[%s28]]
  %s30 = scalar_lea.smem %s0, 15
  %s31 = sld [smem:[%s30]]
  %s32 = scalar_lea.smem %s0, 16
  %s33 = sld [smem:[%s32]]
  %s34 = scalar_lea.smem %s0, 17
  %s35 = sld [smem:[%s34]]
  %s36 = scalar_lea.smem %s0, 18
  %s37 = sld [smem:[%s36]]
  %s38 = scalar_lea.smem %s0, 19
  %s39 = sld [smem:[%s38]]
  %s40 = scalar_lea.smem %s0, 20
  %s41 = sld [smem:[%s40]]
  %s42 = scalar_lea.smem %s0, 21
  %s43 = sld [smem:[%s42]]
  %s44 = scalar_lea.smem %s0, 22
  %s45 = sld [smem:[%s44]]
  %s46 = scalar_lea.smem %s0, 23
  %s47 = sld [smem:[%s46]]
  %s48 = scalar_lea.smem %s0, 24
  %s49 = sld [smem:[%s48]]
  %s50 = scalar_lea.smem %s0, 25
  %s51 = sld [smem:[%s50]]
  %s52 = scalar_lea.smem %s0, 26
  %s53 = sld [smem:[%s52]]
  %s54 = scalar_lea.smem %s0, 27
  %s55 = sld [smem:[%s54]]
  %s56 = scalar_lea.smem %s0, 28
  %s57 = sld [smem:[%s56]]
  %s58 = scalar_lea.smem %s0, 29
  %s59 = sld [smem:[%s58]]
  %s60 = scalar_lea.smem %s0, 30
  %s61 = sld [smem:[%s60]]
  %s62 = scalar_lea.smem %s0, 31
  %s63 = sld [smem:[%s62]]
  %s64 = scalar_lea.smem %s0, 32
  %s65 = sld [smem:[%s64]]
  %s66 = scalar_lea.smem %s0, 33
  %s67 = sld [smem:[%s66]]
  %s68 = scalar_lea.smem %s0, 34
  %s69 = sld [smem:[%s68]]
  %s70 = scalar_lea.smem %s0, 35
  %s71 = sld [smem:[%s70]]
  %s72 = sld [smem:[#allocation0]]
  $region230: #{deep_quant_reg_forward.1} parent=0
    _
  %s74 = ssub.s32 1, %s72
  %s75 = scalar_select 0, %s74, %s72
  $region1: #{deep_quant_reg_forward.1} parent=0
    #allocation3 [shape = 'u8[512]{0}', space=vmem, size = 0x400, scoped, tag = 'input window, operand 6, single buffered']
    #allocation4 [shape = 's32[1]{0}', space=sflag, size = 0x4, scoped, tag = 'scoped memory for deep_quant_reg_forward.1']
    #allocation5 [shape = 'u8[512]{0}', space=vmem, size = 0x400, scoped, tag = 'input window, operand 8, single buffered']
    #allocation6 [shape = 's32[1]{0}', space=sflag, size = 0x4, scoped, tag = 'scoped memory for deep_quant_reg_forward.1']
    #allocation7 [shape = 'u8[512]{0}', space=vmem, size = 0x400, scoped, tag = 'input window, operand 10, single buffered']
    #allocation8 [shape = 'u8[512]{0}', space=vmem, size = 0x400, scoped, tag = 'input window, operand 12, single buffered']
    #allocation9 [shape = 's32[1]{0}', space=sflag, size = 0x4, scoped, tag = 'scoped memory for deep_quant_reg_forward.1']
    #allocation10 [shape = 'u8[512]{0}', space=vmem, size = 0x400, scoped, tag = 'input window, operand 13, single buffered']
    #allocation11 [shape = 'u8[512]{0}', space=vmem, size = 0x400, scoped, tag = 'input window, operand 14, single buffered']
    #allocation12 [shape = 's32[1]{0}', space=sflag, size = 0x4, scoped, tag = 'scoped memory for deep_quant_reg_forward.1']
    #allocation13 [shape = 'u8[512]{0}', space=vmem, size = 0x400, scoped, tag = 'input window, operand 15, single buffered']
    #allocation14 [shape = 'u8[512]{0}', space=vmem, size = 0x400, scoped, tag = 'input window, operand 16, single buffered']
    #allocation15 [shape = 's32[1]{0}', space=sflag, size = 0x4, scoped, tag = 'scoped memory for deep_quant_reg_forward.1']
    #allocation16 [shape = 'u8[512]{0}', space=vmem, size = 0x400, scoped, tag = 'input window, operand 18, single buffered']
    #allocation17 [shape = 'u8[512]{0}', space=vmem, size = 0x400, scoped, tag = 'input window, operand 20, single buffered']
    #allocation18 [shape = 's32[1]{0}', space=sflag, size = 0x4, scoped, tag = 'scoped memory for deep_quant_reg_forward.1']
    #allocation19 [shape = 'u8[512]{0}', space=vmem, size = 0x400, scoped, tag = 'input window, operand 22, single buffered']
    #allocation20 [shape = 'u8[512]{0}', space=vmem, size = 0x400, scoped, tag = 'input window, operand 24, single buffered']
    #allocation21 [shape = 's32[1]{0}', space=sflag, size = 0x4, scoped, tag = 'scoped memory for deep_quant_reg_forward.1']
    #allocation22 [shape = 'u8[512]{0}', space=vmem, size = 0x400, scoped, tag = 'input window, operand 25, single buffered']
    #allocation23 [shape = 'u8[512]{0}', space=vmem, size = 0x400, scoped, tag = 'input window, operand 26, single buffered']
    #allocation24 [shape = 's32[1]{0}', space=sflag, size = 0x4, scoped, tag = 'scoped memory for deep_quant_reg_forward.1']
    #allocation25 [shape = 'u8[512]{0}', space=vmem, size = 0x400, scoped, tag = 'input window, operand 27, single buffered']
    #allocation26 [shape = 'u8[512]{0}', space=vmem, size = 0x400, scoped, tag = 'input window, operand 28, single buffered']
    #allocation27 [shape = 's32[1]{0}', space=sflag, size = 0x4, scoped, tag = 'scoped memory for deep_quant_reg_forward.1']
    #allocation28 [shape = 'u8[512]{0}', space=vmem, size = 0x400, scoped, tag = 'input window, operand 30, single buffered']
    #allocation29 [shape = 'u8[512]{0}', space=vmem, size = 0x400, scoped, tag = 'input window, operand 32, single buffered']
    #allocation30 [shape = 's32[1]{0}', space=sflag, size = 0x4, scoped, tag = 'scoped memory for deep_quant_reg_forward.1']
    #allocation31 [shape = 'u8[8192]{0}', space=vmem, size = 0x2000, scoped, tag = 'input window, operand 33, single buffered']
    #allocation32 [shape = 'u8[8192]{0}', space=vmem, size = 0x2000, scoped, tag = 'input window, operand 34, single buffered']
    #allocation33 [shape = 's32[1]{0}', space=sflag, size = 0x4, scoped, tag = 'scoped memory for deep_quant_reg_forward.1']
    %76 = vsyncpa [#allocation4], 0
    %77 = vsyncpa [#allocation6], 0
    %78 = vsyncpa [#allocation9], 0
    %79 = vsyncpa [#allocation12], 0
    %80 = vsyncpa [#allocation15], 0
    %81 = vsyncpa [#allocation18], 0
    %82 = vsyncpa [#allocation21], 0
    %83 = vsyncpa [#allocation24], 0
    %84 = vsyncpa [#allocation27], 0
    %85 = vsyncpa [#allocation30], 0
    %86 = vsyncpa [#allocation33], 0
    // Predicated region
    $region2: #{deep_quant_reg_forward.1} parent=1 // pred_check
      _
    $region3: #{deep_quant_reg_forward.1} parent=1 // pred_check_branch
      %88 = sbr.rel (0) target = $region5
    $region4: #{deep_quant_reg_forward.1} parent=1 // pred_region
      _
    $region5: #{deep_quant_reg_forward.1} parent=1 // pred_fallthru
      _
    // Predicated region
    $region6: #{deep_quant_reg_forward.1} parent=1 // pred_check
      _
    $region7: #{deep_quant_reg_forward.1} parent=1 // pred_check_branch
      %90 = sbr.rel (0) target = $region9
    $region8: #{deep_quant_reg_forward.1} parent=1 // pred_region
      _
    $region9: #{deep_quant_reg_forward.1} parent=1 // pred_fallthru
      _
    // Predicated region
    $region10: #{deep_quant_reg_forward.1} parent=1 // pred_check
      _
    $region11: #{deep_quant_reg_forward.1} parent=1 // pred_check_branch
      %92 = sbr.rel (0) target = $region13
    $region12: #{deep_quant_reg_forward.1} parent=1 // pred_region
      _
    $region13: #{deep_quant_reg_forward.1} parent=1 // pred_fallthru
      _
    // Predicated region
    $region14: #{deep_quant_reg_forward.1} parent=1 // pred_check
      _
    $region15: #{deep_quant_reg_forward.1} parent=1 // pred_check_branch
      %94 = sbr.rel (0) target = $region17
    $region16: #{deep_quant_reg_forward.1} parent=1 // pred_region
      _
    $region17: #{deep_quant_reg_forward.1} parent=1 // pred_fallthru
      _
    // Predicated region
    $region18: #{deep_quant_reg_forward.1} parent=1 // pred_check
      _
    $region19: #{deep_quant_reg_forward.1} parent=1 // pred_check_branch
      %96 = sbr.rel (0) target = $region21
    $region20: #{deep_quant_reg_forward.1} parent=1 // pred_region
      _
    $region21: #{deep_quant_reg_forward.1} parent=1 // pred_fallthru
      _
    // Predicated region
    $region22: #{deep_quant_reg_forward.1} parent=1 // pred_check
      _
    $region23: #{deep_quant_reg_forward.1} parent=1 // pred_check_branch
      %98 = sbr.rel (0) target = $region25
    $region24: #{deep_quant_reg_forward.1} parent=1 // pred_region
      _
    $region25: #{deep_quant_reg_forward.1} parent=1 // pred_fallthru
      _
    // Predicated region
    $region26: #{deep_quant_reg_forward.1} parent=1 // pred_check
      _
    $region27: #{deep_quant_reg_forward.1} parent=1 // pred_check_branch
      %100 = sbr.rel (0) target = $region29
    $region28: #{deep_quant_reg_forward.1} parent=1 // pred_region
      %s102 = ssub.s32 16, 16
      %103 = vsyncadd [#allocation4], %s102
      %s105 = sshll.u32 [#allocation3], 4
      %s106 = int_to_ptr.vmem [resolvable:$true] %s105
      %108 = dma.hbm_to_vmem [thread:$0]  %s13, 16, %s106, [#allocation4]
    $region29: #{deep_quant_reg_forward.1} parent=1 // pred_fallthru
      _
    // Predicated region
    $region30: #{deep_quant_reg_forward.1} parent=1 // pred_check
      _
    $region31: #{deep_quant_reg_forward.1} parent=1 // pred_check_branch
      %110 = sbr.rel (0) target = $region33
    $region32: #{deep_quant_reg_forward.1} parent=1 // pred_region
      _
    $region33: #{deep_quant_reg_forward.1} parent=1 // pred_fallthru
      _
    // Predicated region
    $region34: #{deep_quant_reg_forward.1} parent=1 // pred_check
      _
    $region35: #{deep_quant_reg_forward.1} parent=1 // pred_check_branch
      %112 = sbr.rel (0) target = $region37
    $region36: #{deep_quant_reg_forward.1} parent=1 // pred_region
      %s114 = ssub.s32 16, 16
      %115 = vsyncadd [#allocation6], %s114
      %s117 = sshll.u32 [#allocation5], 4
      %s118 = int_to_ptr.vmem [resolvable:$true] %s117
      %120 = dma.hbm_to_vmem [thread:$0]  %s17, 16, %s118, [#allocation6]
    $region37: #{deep_quant_reg_forward.1} parent=1 // pred_fallthru
      _
    // Predicated region
    $region38: #{deep_quant_reg_forward.1} parent=1 // pred_check
      _
    $region39: #{deep_quant_reg_forward.1} parent=1 // pred_check_branch
      %122 = sbr.rel (0) target = $region41
    $region40: #{deep_quant_reg_forward.1} parent=1 // pred_region
      _
    $region41: #{deep_quant_reg_forward.1} parent=1 // pred_fallthru
      _
    // Predicated region
    $region42: #{deep_quant_reg_forward.1} parent=1 // pred_check
      _
    $region43: #{deep_quant_reg_forward.1} parent=1 // pred_check_branch
      %124 = sbr.rel (0) target = $region45
    $region44: #{deep_quant_reg_forward.1} parent=1 // pred_region
      %s126 = ssub.s32 16, 16
      %127 = vsyncadd [#allocation6], %s126
      %s129 = sshll.u32 [#allocation7], 4
      %s130 = int_to_ptr.vmem [resolvable:$true] %s129
      %132 = dma.hbm_to_vmem [thread:$0]  %s21, 16, %s130, [#allocation6]
    $region45: #{deep_quant_reg_forward.1} parent=1 // pred_fallthru
      _
    // Predicated region
    $region46: #{deep_quant_reg_forward.1} parent=1 // pred_check
      _
    $region47: #{deep_quant_reg_forward.1} parent=1 // pred_check_branch
      %134 = sbr.rel (0) target = $region49
    $region48: #{deep_quant_reg_forward.1} parent=1 // pred_region
      _
    $region49: #{deep_quant_reg_forward.1} parent=1 // pred_fallthru
      _
    // Predicated region
    $region50: #{deep_quant_reg_forward.1} parent=1 // pred_check
      _
    $region51: #{deep_quant_reg_forward.1} parent=1 // pred_check_branch
      %136 = sbr.rel (0) target = $region53
    $region52: #{deep_quant_reg_forward.1} parent=1 // pred_region
      %s138 = ssub.s32 16, 16
      %139 = vsyncadd [#allocation9], %s138
      %s141 = sshll.u32 [#allocation8], 4
      %s142 = int_to_ptr.vmem [resolvable:$true] %s141
      %144 = dma.hbm_to_vmem [thread:$0]  %s25, 16, %s142, [#allocation9]
    $region53: #{deep_quant_reg_forward.1} parent=1 // pred_fallthru
      _
    // Predicated region
    $region54: #{deep_quant_reg_forward.1} parent=1 // pred_check
      _
    $region55: #{deep_quant_reg_forward.1} parent=1 // pred_check_branch
      %146 = sbr.rel (0) target = $region57
    $region56: #{deep_quant_reg_forward.1} parent=1 // pred_region
      %s148 = ssub.s32 16, 16
      %149 = vsyncadd [#allocation9], %s148
      %s151 = sshll.u32 [#allocation10], 4
      %s152 = int_to_ptr.vmem [resolvable:$true] %s151
      %154 = dma.hbm_to_vmem [thread:$0]  %s27, 16, %s152, [#allocation9]
    $region57: #{deep_quant_reg_forward.1} parent=1 // pred_fallthru
      _
    // Predicated region
    $region58: #{deep_quant_reg_forward.1} parent=1 // pred_check
      _
    $region59: #{deep_quant_reg_forward.1} parent=1 // pred_check_branch
      %156 = sbr.rel (0) target = $region61
    $region60: #{deep_quant_reg_forward.1} parent=1 // pred_region
      %s158 = ssub.s32 16, 16
      %159 = vsyncadd [#allocation12], %s158
      %s161 = sshll.u32 [#allocation11], 4
      %s162 = int_to_ptr.vmem [resolvable:$true] %s161
      %164 = dma.hbm_to_vmem [thread:$0]  %s29, 16, %s162, [#allocation12]
    $region61: #{deep_quant_reg_forward.1} parent=1 // pred_fallthru
      _
    // Predicated region
    $region62: #{deep_quant_reg_forward.1} parent=1 // pred_check
      _
    $region63: #{deep_quant_reg_forward.1} parent=1 // pred_check_branch
      %166 = sbr.rel (0) target = $region65
    $region64: #{deep_quant_reg_forward.1} parent=1 // pred_region
      %s168 = ssub.s32 16, 16
      %169 = vsyncadd [#allocation12], %s168
      %s171 = sshll.u32 [#allocation13], 4
      %s172 = int_to_ptr.vmem [resolvable:$true] %s171
      %174 = dma.hbm_to_vmem [thread:$0]  %s31, 16, %s172, [#allocation12]
    $region65: #{deep_quant_reg_forward.1} parent=1 // pred_fallthru
      _
    // Predicated region
    $region66: #{deep_quant_reg_forward.1} parent=1 // pred_check
      _
    $region67: #{deep_quant_reg_forward.1} parent=1 // pred_check_branch
      %176 = sbr.rel (0) target = $region69
    $region68: #{deep_quant_reg_forward.1} parent=1 // pred_region
      %s178 = ssub.s32 16, 16
      %179 = vsyncadd [#allocation15], %s178
      %s181 = sshll.u32 [#allocation14], 4
      %s182 = int_to_ptr.vmem [resolvable:$true] %s181
      %184 = dma.hbm_to_vmem [thread:$0]  %s33, 16, %s182, [#allocation15]
    $region69: #{deep_quant_reg_forward.1} parent=1 // pred_fallthru
      _
    // Predicated region
    $region70: #{deep_quant_reg_forward.1} parent=1 // pred_check
      _
    $region71: #{deep_quant_reg_forward.1} parent=1 // pred_check_branch
      %186 = sbr.rel (0) target = $region73
    $region72: #{deep_quant_reg_forward.1} parent=1 // pred_region
      _
    $region73: #{deep_quant_reg_forward.1} parent=1 // pred_fallthru
      _
    // Predicated region
    $region74: #{deep_quant_reg_forward.1} parent=1 // pred_check
      _
    $region75: #{deep_quant_reg_forward.1} parent=1 // pred_check_branch
      %188 = sbr.rel (0) target = $region77
    $region76: #{deep_quant_reg_forward.1} parent=1 // pred_region
      %s190 = ssub.s32 16, 16
      %191 = vsyncadd [#allocation15], %s190
      %s193 = sshll.u32 [#allocation16], 4
      %s194 = int_to_ptr.vmem [resolvable:$true] %s193
      %196 = dma.hbm_to_vmem [thread:$0]  %s37, 16, %s194, [#allocation15]
    $region77: #{deep_quant_reg_forward.1} parent=1 // pred_fallthru
      _
    // Predicated region
    $region78: #{deep_quant_reg_forward.1} parent=1 // pred_check
      _
    $region79: #{deep_quant_reg_forward.1} parent=1 // pred_check_branch
      %198 = sbr.rel (0) target = $region81
    $region80: #{deep_quant_reg_forward.1} parent=1 // pred_region
      _
    $region81: #{deep_quant_reg_forward.1} parent=1 // pred_fallthru
      _
    // Predicated region
    $region82: #{deep_quant_reg_forward.1} parent=1 // pred_check
      _
    $region83: #{deep_quant_reg_forward.1} parent=1 // pred_check_branch
      %200 = sbr.rel (0) target = $region85
    $region84: #{deep_quant_reg_forward.1} parent=1 // pred_region
      %s202 = ssub.s32 16, 16
      %203 = vsyncadd [#allocation18], %s202
      %s205 = sshll.u32 [#allocation17], 4
      %s206 = int_to_ptr.vmem [resolvable:$true] %s205
      %208 = dma.hbm_to_vmem [thread:$0]  %s41, 16, %s206, [#allocation18]
    $region85: #{deep_quant_reg_forward.1} parent=1 // pred_fallthru
      _
    // Predicated region
    $region86: #{deep_quant_reg_forward.1} parent=1 // pred_check
      _
    $region87: #{deep_quant_reg_forward.1} parent=1 // pred_check_branch
      %210 = sbr.rel (0) target = $region89
    $region88: #{deep_quant_reg_forward.1} parent=1 // pred_region
      _
    $region89: #{deep_quant_reg_forward.1} parent=1 // pred_fallthru
      _
    // Predicated region
    $region90: #{deep_quant_reg_forward.1} parent=1 // pred_check
      _
    $region91: #{deep_quant_reg_forward.1} parent=1 // pred_check_branch
      %212 = sbr.rel (0) target = $region93
    $region92: #{deep_quant_reg_forward.1} parent=1 // pred_region
      %s214 = ssub.s32 16, 16
      %215 = vsyncadd [#allocation18], %s214
      %s217 = sshll.u32 [#allocation19], 4
      %s218 = int_to_ptr.vmem [resolvable:$true] %s217
      %220 = dma.hbm_to_vmem [thread:$0]  %s45, 16, %s218, [#allocation18]
    $region93: #{deep_quant_reg_forward.1} parent=1 // pred_fallthru
      _
    // Predicated region
    $region94: #{deep_quant_reg_forward.1} parent=1 // pred_check
      _
    $region95: #{deep_quant_reg_forward.1} parent=1 // pred_check_branch
      %222 = sbr.rel (0) target = $region97
    $region96: #{deep_quant_reg_forward.1} parent=1 // pred_region
      _
    $region97: #{deep_quant_reg_forward.1} parent=1 // pred_fallthru
      _
    // Predicated region
    $region98: #{deep_quant_reg_forward.1} parent=1 // pred_check
      _
    $region99: #{deep_quant_reg_forward.1} parent=1 // pred_check_branch
      %224 = sbr.rel (0) target = $region101
    $region100: #{deep_quant_reg_forward.1} parent=1 // pred_region
      %s226 = ssub.s32 16, 16
      %227 = vsyncadd [#allocation21], %s226
      %s229 = sshll.u32 [#allocation20], 4
      %s230 = int_to_ptr.vmem [resolvable:$true] %s229
      %232 = dma.hbm_to_vmem [thread:$0]  %s49, 16, %s230, [#allocation21]
    $region101: #{deep_quant_reg_forward.1} parent=1 // pred_fallthru
      _
    // Predicated region
    $region102: #{deep_quant_reg_forward.1} parent=1 // pred_check
      _
    $region103: #{deep_quant_reg_forward.1} parent=1 // pred_check_branch
      %234 = sbr.rel (0) target = $region105
    $region104: #{deep_quant_reg_forward.1} parent=1 // pred_region
      %s236 = ssub.s32 16, 16
      %237 = vsyncadd [#allocation21], %s236
      %s239 = sshll.u32 [#allocation22], 4
      %s240 = int_to_ptr.vmem [resolvable:$true] %s239
      %242 = dma.hbm_to_vmem [thread:$0]  %s51, 16, %s240, [#allocation21]
    $region105: #{deep_quant_reg_forward.1} parent=1 // pred_fallthru
      _
    // Predicated region
    $region106: #{deep_quant_reg_forward.1} parent=1 // pred_check
      _
    $region107: #{deep_quant_reg_forward.1} parent=1 // pred_check_branch
      %244 = sbr.rel (0) target = $region109
    $region108: #{deep_quant_reg_forward.1} parent=1 // pred_region
      %s246 = ssub.s32 16, 16
      %247 = vsyncadd [#allocation24], %s246
      %s249 = sshll.u32 [#allocation23], 4
      %s250 = int_to_ptr.vmem [resolvable:$true] %s249
      %252 = dma.hbm_to_vmem [thread:$0]  %s53, 16, %s250, [#allocation24]
    $region109: #{deep_quant_reg_forward.1} parent=1 // pred_fallthru
      _
    // Predicated region
    $region110: #{deep_quant_reg_forward.1} parent=1 // pred_check
      _
    $region111: #{deep_quant_reg_forward.1} parent=1 // pred_check_branch
      %254 = sbr.rel (0) target = $region113
    $region112: #{deep_quant_reg_forward.1} parent=1 // pred_region
      %s256 = ssub.s32 16, 16
      %257 = vsyncadd [#allocation24], %s256
      %s259 = sshll.u32 [#allocation25], 4
      %s260 = int_to_ptr.vmem [resolvable:$true] %s259
      %262 = dma.hbm_to_vmem [thread:$0]  %s55, 16, %s260, [#allocation24]
    $region113: #{deep_quant_reg_forward.1} parent=1 // pred_fallthru
      _
    // Predicated region
    $region114: #{deep_quant_reg_forward.1} parent=1 // pred_check
      _
    $region115: #{deep_quant_reg_forward.1} parent=1 // pred_check_branch
      %264 = sbr.rel (0) target = $region117
    $region116: #{deep_quant_reg_forward.1} parent=1 // pred_region
      %s266 = ssub.s32 16, 16
      %267 = vsyncadd [#allocation27], %s266
      %s269 = sshll.u32 [#allocation26], 4
      %s270 = int_to_ptr.vmem [resolvable:$true] %s269
      %272 = dma.hbm_to_vmem [thread:$0]  %s57, 16, %s270, [#allocation27]
    $region117: #{deep_quant_reg_forward.1} parent=1 // pred_fallthru
      _
    // Predicated region
    $region118: #{deep_quant_reg_forward.1} parent=1 // pred_check
      _
    $region119: #{deep_quant_reg_forward.1} parent=1 // pred_check_branch
      %274 = sbr.rel (0) target = $region121
    $region120: #{deep_quant_reg_forward.1} parent=1 // pred_region
      _
    $region121: #{deep_quant_reg_forward.1} parent=1 // pred_fallthru
      _
    // Predicated region
    $region122: #{deep_quant_reg_forward.1} parent=1 // pred_check
      _
    $region123: #{deep_quant_reg_forward.1} parent=1 // pred_check_branch
      %276 = sbr.rel (0) target = $region125
    $region124: #{deep_quant_reg_forward.1} parent=1 // pred_region
      %s278 = ssub.s32 16, 16
      %279 = vsyncadd [#allocation27], %s278
      %s281 = sshll.u32 [#allocation28], 4
      %s282 = int_to_ptr.vmem [resolvable:$true] %s281
      %284 = dma.hbm_to_vmem [thread:$0]  %s61, 16, %s282, [#allocation27]
    $region125: #{deep_quant_reg_forward.1} parent=1 // pred_fallthru
      _
    // Predicated region
    $region126: #{deep_quant_reg_forward.1} parent=1 // pred_check
      _
    $region127: #{deep_quant_reg_forward.1} parent=1 // pred_check_branch
      %286 = sbr.rel (0) target = $region129
    $region128: #{deep_quant_reg_forward.1} parent=1 // pred_region
      _
    $region129: #{deep_quant_reg_forward.1} parent=1 // pred_fallthru
      _
    // Predicated region
    $region130: #{deep_quant_reg_forward.1} parent=1 // pred_check
      _
    $region131: #{deep_quant_reg_forward.1} parent=1 // pred_check_branch
      %288 = sbr.rel (0) target = $region133
    $region132: #{deep_quant_reg_forward.1} parent=1 // pred_region
      %s290 = ssub.s32 16, 16
      %291 = vsyncadd [#allocation30], %s290
      %s293 = sshll.u32 [#allocation29], 4
      %s294 = int_to_ptr.vmem [resolvable:$true] %s293
      %296 = dma.hbm_to_vmem [thread:$0]  %s65, 16, %s294, [#allocation30]
    $region133: #{deep_quant_reg_forward.1} parent=1 // pred_fallthru
      _
    // Predicated region
    $region134: #{deep_quant_reg_forward.1} parent=1 // pred_check
      _
    $region135: #{deep_quant_reg_forward.1} parent=1 // pred_check_branch
      %298 = sbr.rel (0) target = $region137
    $region136: #{deep_quant_reg_forward.1} parent=1 // pred_region
      %s300 = ssub.s32 256, 256
      %301 = vsyncadd [#allocation30], %s300
      %s302 = sshll.u32 [#allocation31], 4
      %s303 = int_to_ptr.vmem [resolvable:$true] %s302
      %308 = dma.hbm_to_vmem [thread:$0]  %s67, 256, %s303, [#allocation30], 128, 128, 8
    $region137: #{deep_quant_reg_forward.1} parent=1 // pred_fallthru
      _
    // Predicated region
    $region138: #{deep_quant_reg_forward.1} parent=1 // pred_check
      _
    $region139: #{deep_quant_reg_forward.1} parent=1 // pred_check_branch
      %310 = sbr.rel (0) target = $region141
    $region140: #{deep_quant_reg_forward.1} parent=1 // pred_region
      %s312 = ssub.s32 256, 256
      %313 = vsyncadd [#allocation33], %s312
      %s314 = sshll.u32 [#allocation32], 4
      %s315 = int_to_ptr.vmem [resolvable:$true] %s314
      %320 = dma.hbm_to_vmem [thread:$0]  %s69, 256, %s315, [#allocation33], 128, 128, 8
    $region141: #{deep_quant_reg_forward.1} parent=1 // pred_fallthru
      _
    // Predicated region
    $region142: #{deep_quant_reg_forward.1} parent=1 // pred_check
      _
    $region143: #{deep_quant_reg_forward.1} parent=1 // pred_check_branch
      %322 = sbr.rel (0) target = $region145
    $region144: #{deep_quant_reg_forward.1} parent=1 // pred_region
      %323 = dma.done [#allocation4], 16
    $region145: #{deep_quant_reg_forward.1} parent=1 // pred_fallthru
      _
    // Predicated region
    $region146: #{deep_quant_reg_forward.1} parent=1 // pred_check
      _
    $region147: #{deep_quant_reg_forward.1} parent=1 // pred_check_branch
      %325 = sbr.rel (0) target = $region149
    $region148: #{deep_quant_reg_forward.1} parent=1 // pred_region
      %326 = dma.done [#allocation6], 16
    $region149: #{deep_quant_reg_forward.1} parent=1 // pred_fallthru
      _
    // Predicated region
    $region150: #{deep_quant_reg_forward.1} parent=1 // pred_check
      _
    $region151: #{deep_quant_reg_forward.1} parent=1 // pred_check_branch
      %328 = sbr.rel (0) target = $region153
    $region152: #{deep_quant_reg_forward.1} parent=1 // pred_region
      %329 = dma.done [#allocation6], 16
    $region153: #{deep_quant_reg_forward.1} parent=1 // pred_fallthru
      _
    // Predicated region
    $region154: #{deep_quant_reg_forward.1} parent=1 // pred_check
      _
    $region155: #{deep_quant_reg_forward.1} parent=1 // pred_check_branch
      %331 = sbr.rel (0) target = $region157
    $region156: #{deep_quant_reg_forward.1} parent=1 // pred_region
      %332 = dma.done [#allocation9], 16
    $region157: #{deep_quant_reg_forward.1} parent=1 // pred_fallthru
      _
    // Predicated region
    $region158: #{deep_quant_reg_forward.1} parent=1 // pred_check
      _
    $region159: #{deep_quant_reg_forward.1} parent=1 // pred_check_branch
      %334 = sbr.rel (0) target = $region161
    $region160: #{deep_quant_reg_forward.1} parent=1 // pred_region
      %335 = dma.done [#allocation9], 16
    $region161: #{deep_quant_reg_forward.1} parent=1 // pred_fallthru
      _
    // Predicated region
    $region162: #{deep_quant_reg_forward.1} parent=1 // pred_check
      _
    $region163: #{deep_quant_reg_forward.1} parent=1 // pred_check_branch
      %337 = sbr.rel (0) target = $region165
    $region164: #{deep_quant_reg_forward.1} parent=1 // pred_region
      %338 = dma.done [#allocation12], 16
    $region165: #{deep_quant_reg_forward.1} parent=1 // pred_fallthru
      _
    // Predicated region
    $region166: #{deep_quant_reg_forward.1} parent=1 // pred_check
      _
    $region167: #{deep_quant_reg_forward.1} parent=1 // pred_check_branch
      %340 = sbr.rel (0) target = $region169
    $region168: #{deep_quant_reg_forward.1} parent=1 // pred_region
      %341 = dma.done [#allocation12], 16
    $region169: #{deep_quant_reg_forward.1} parent=1 // pred_fallthru
      _
    // Predicated region
    $region170: #{deep_quant_reg_forward.1} parent=1 // pred_check
      _
    $region171: #{deep_quant_reg_forward.1} parent=1 // pred_check_branch
      %343 = sbr.rel (0) target = $region173
    $region172: #{deep_quant_reg_forward.1} parent=1 // pred_region
      %344 = dma.done [#allocation15], 16
    $region173: #{deep_quant_reg_forward.1} parent=1 // pred_fallthru
      _
    // Predicated region
    $region174: #{deep_quant_reg_forward.1} parent=1 // pred_check
      _
    $region175: #{deep_quant_reg_forward.1} parent=1 // pred_check_branch
      %346 = sbr.rel (0) target = $region177
    $region176: #{deep_quant_reg_forward.1} parent=1 // pred_region
      %347 = dma.done [#allocation15], 16
    $region177: #{deep_quant_reg_forward.1} parent=1 // pred_fallthru
      _
    // Predicated region
    $region178: #{deep_quant_reg_forward.1} parent=1 // pred_check
      _
    $region179: #{deep_quant_reg_forward.1} parent=1 // pred_check_branch
      %349 = sbr.rel (0) target = $region181
    $region180: #{deep_quant_reg_forward.1} parent=1 // pred_region
      %350 = dma.done [#allocation18], 16
    $region181: #{deep_quant_reg_forward.1} parent=1 // pred_fallthru
      _
    // Predicated region
    $region182: #{deep_quant_reg_forward.1} parent=1 // pred_check
      _
    $region183: #{deep_quant_reg_forward.1} parent=1 // pred_check_branch
      %352 = sbr.rel (0) target = $region185
    $region184: #{deep_quant_reg_forward.1} parent=1 // pred_region
      %353 = dma.done [#allocation18], 16
    $region185: #{deep_quant_reg_forward.1} parent=1 // pred_fallthru
      _
    // Predicated region
    $region186: #{deep_quant_reg_forward.1} parent=1 // pred_check
      _
    $region187: #{deep_quant_reg_forward.1} parent=1 // pred_check_branch
      %355 = sbr.rel (0) target = $region189
    $region188: #{deep_quant_reg_forward.1} parent=1 // pred_region
      %356 = dma.done [#allocation21], 16
    $region189: #{deep_quant_reg_forward.1} parent=1 // pred_fallthru
      _
    // Predicated region
    $region190: #{deep_quant_reg_forward.1} parent=1 // pred_check
      _
    $region191: #{deep_quant_reg_forward.1} parent=1 // pred_check_branch
      %358 = sbr.rel (0) target = $region193
    $region192: #{deep_quant_reg_forward.1} parent=1 // pred_region
      %359 = dma.done [#allocation21], 16
    $region193: #{deep_quant_reg_forward.1} parent=1 // pred_fallthru
      _
    // Predicated region
    $region194: #{deep_quant_reg_forward.1} parent=1 // pred_check
      _
    $region195: #{deep_quant_reg_forward.1} parent=1 // pred_check_branch
      %361 = sbr.rel (0) target = $region197
    $region196: #{deep_quant_reg_forward.1} parent=1 // pred_region
      %362 = dma.done [#allocation24], 16
    $region197: #{deep_quant_reg_forward.1} parent=1 // pred_fallthru
      _
    // Predicated region
    $region198: #{deep_quant_reg_forward.1} parent=1 // pred_check
      _
    $region199: #{deep_quant_reg_forward.1} parent=1 // pred_check_branch
      %364 = sbr.rel (0) target = $region201
    $region200: #{deep_quant_reg_forward.1} parent=1 // pred_region
      %365 = dma.done [#allocation24], 16
    $region201: #{deep_quant_reg_forward.1} parent=1 // pred_fallthru
      _
    // Predicated region
    $region202: #{deep_quant_reg_forward.1} parent=1 // pred_check
      _
    $region203: #{deep_quant_reg_forward.1} parent=1 // pred_check_branch
      %367 = sbr.rel (0) target = $region205
    $region204: #{deep_quant_reg_forward.1} parent=1 // pred_region
      %368 = dma.done [#allocation27], 16
    $region205: #{deep_quant_reg_forward.1} parent=1 // pred_fallthru
      _
    // Predicated region
    $region206: #{deep_quant_reg_forward.1} parent=1 // pred_check
      _
    $region207: #{deep_quant_reg_forward.1} parent=1 // pred_check_branch
      %370 = sbr.rel (0) target = $region209
    $region208: #{deep_quant_reg_forward.1} parent=1 // pred_region
      %371 = dma.done [#allocation27], 16
    $region209: #{deep_quant_reg_forward.1} parent=1 // pred_fallthru
      _
    // Predicated region
    $region210: #{deep_quant_reg_forward.1} parent=1 // pred_check
      _
    $region211: #{deep_quant_reg_forward.1} parent=1 // pred_check_branch
      %373 = sbr.rel (0) target = $region213
    $region212: #{deep_quant_reg_forward.1} parent=1 // pred_region
      %374 = dma.done [#allocation30], 16
    $region213: #{deep_quant_reg_forward.1} parent=1 // pred_fallthru
      _
    // Predicated region
    $region214: #{deep_quant_reg_forward.1} parent=1 // pred_check
      _
    $region215: #{deep_quant_reg_forward.1} parent=1 // pred_check_branch
      %376 = sbr.rel (0) target = $region217
    $region216: #{deep_quant_reg_forward.1} parent=1 // pred_region
      %377 = dma.done [#allocation30], 256
    $region217: #{deep_quant_reg_forward.1} parent=1 // pred_fallthru
      _
    // Predicated region
    $region218: #{deep_quant_reg_forward.1} parent=1 // pred_check
      _
    $region219: #{deep_quant_reg_forward.1} parent=1 // pred_check_branch
      %379 = sbr.rel (0) target = $region221
    $region220: #{deep_quant_reg_forward.1} parent=1 // pred_region
      %380 = dma.done [#allocation33], 256
    $region221: #{deep_quant_reg_forward.1} parent=1 // pred_fallthru
      _
    %v382 = vld [vmem:[%s1] sm:$0xff]
    %v383 = vld [vmem:[%s1 + $0x8] sm:$0xff]
    %v384 = vld [vmem:[%s5] sm:$0x1]
    %386 = vset.pattern.permute.xlu0 0
    %387 = vperm.xlu0 %386, %v382
    %v388 = vpop.permute.xlu0 %387
    %391 = vset.pattern.permute.xlu0 0
    %392 = vperm.xlu0 %391, %v383
    %v393 = vpop.permute.xlu0 %392
    %v396 = vlaneseq
    %v397 = vshrl.u32 %v396, 7
    %v398 = vsub.s32 0, %v397
    %v399 = vrot.slane %v384, %v398
    %v401 = vmul.f32 %v388, %v399
    %v402 = vmul.f32 %v393, %v399
    %v403 = vld [vmem:[%s3] sm:$0xff]
    %v404 = vld [vmem:[%s3 + $0x8] sm:$0xff]
    %v405 = vadd.f32 %v401, %v403
    %v406 = vadd.f32 %v402, %v404
    %v407 = vld [vmem:[%s7] sm:$0x1]
    %v408 = vld [vmem:[%s9] sm:$0x1]
    %vm409 = vcmask 261120
    %v410 = vsel %vm409, %v405, 0.0
    %411 = vadd.xlane.f32.xlu0 %v410
    %v412 = vpop.xlane.xlu0 %411
    %v413 = vsel %vm409, %v406, 0.0
    %414 = vadd.xlane.f32.xlu0 %v413
    %v415 = vpop.xlane.xlu0 %414
    %v416 = vrcp.pop 32.0
    %v417 = vmul.f32 %v412, %v416
    %v418 = vmul.f32 %v415, %v416
    %v419 = vsub.f32 %v405, %v417
    %v420 = vsub.f32 %v406, %v418
    %v421 = vmul.f32 %v419, %v419
    %v422 = vmul.f32 %v420, %v420
    %v423 = vsel %vm409, %v421, 0.0
    %424 = vadd.xlane.f32.xlu0 %v423
    %v425 = vpop.xlane.xlu0 %424
    %v426 = vsel %vm409, %v422, 0.0
    %427 = vadd.xlane.f32.xlu0 %v426
    %v428 = vpop.xlane.xlu0 %427
    %v429 = vmul.f32 %v425, %v416
    %v430 = vmul.f32 %v428, %v416
    %v431 = vadd.f32 %v429, 1e-05
    %v432 = vadd.f32 %v430, 1e-05
    %v433 = vrsqrt.pop %v431
    %v434 = vrsqrt.pop %v432
    %v435 = vmul.f32 %v419, %v433
    %v436 = vmul.f32 %v420, %v434
    %v438 = vlaneseq
    %v439 = vshrl.u32 %v438, 7
    %v440 = vsub.s32 0, %v439
    %v441 = vrot.slane %v407, %v440
    %v443 = vmul.f32 %v435, %v441
    %v444 = vmul.f32 %v436, %v441
    %v446 = vlaneseq
    %v447 = vshrl.u32 %v446, 7
    %v448 = vsub.s32 0, %v447
    %v449 = vrot.slane %v408, %v448
    %v451 = vadd.f32 %v443, %v449
    %v452 = vadd.f32 %v444, %v449
    %v453 = vpack.c.bf16 %v452, %v451
    %v454 = vld [vmem:[%s11] sm:$0xf]
    %v455 = vld [vmem:[%s11 + $0x4] sm:$0xf]
    %v456 = vld [vmem:[%s11 + $0x8] sm:$0xf]
    %v457 = vld [vmem:[%s11 + $0xc] sm:$0xf]
    %v458 = vld [vmem:[#allocation3] sm:$0x1]
    %v460 = vlaneseq
    %v461 = vshrl.u32 %v460, 7
    %v462 = vsub.s32 0, %v461
    %v463 = vrot.slane %v458, %v462
    %v469 = vunpack.c.l.b16 %v454
    %v470 = vunpack.c.l.b16 %v455
    %v471 = vunpack.c.l.b16 %v456
    %v472 = vunpack.c.l.b16 %v457
    %v473 = vpack.c.b16 %v470, %v469
    %v474 = vpack.c.b16 %v472, %v471
    %v478 = vsel %vm409, %v453, 0
    %480 = vmatprep.subr.bf16.mxu0 0
    %481 = vmatpush1.bf16.msra.mxu0 %v473
    %482 = vmatprep.subr.bf16.mxu0 0
    %483 = vmatpush1.bf16.msra.mxu0 %v474
    %484 = vmatprep.subr.bf16.mxu0 0
    %485 = vmatpush1.bf16.msra.mxu0 0
    %486 = vmatprep.subr.bf16.mxu0 0
    %487 = vmatpush1.bf16.msra.mxu0 0
    %488 = vmatprep.subr.bf16.mxu0 0
    %489 = vmatpush1.bf16.msra.mxu0 0
    %490 = vmatprep.subr.bf16.mxu0 0
    %491 = vmatpush1.bf16.msra.mxu0 0
    %492 = vmatprep.subr.bf16.mxu0 0
    %493 = vmatpush1.bf16.msra.mxu0 0
    %494 = vmatprep.subr.bf16.mxu0 0
    %495 = vmatpush1.bf16.msra.mxu0 0
    %496 = vmatprep.subr.bf16.mxu0 0
    %497 = vmatpush1.bf16.msra.mxu0 0
    %498 = vmatprep.subr.bf16.mxu0 0
    %499 = vmatpush1.bf16.msra.mxu0 0
    %500 = vmatprep.subr.bf16.mxu0 0
    %501 = vmatpush1.bf16.msra.mxu0 0
    %502 = vmatprep.subr.bf16.mxu0 0
    %503 = vmatpush1.bf16.msra.mxu0 0
    %504 = vmatprep.subr.bf16.mxu0 0
    %505 = vmatpush1.bf16.msra.mxu0 0
    %506 = vmatprep.subr.bf16.mxu0 0
    %507 = vmatpush1.bf16.msra.mxu0 0
    %508 = vmatprep.subr.bf16.mxu0 0
    %509 = vmatpush1.bf16.msra.mxu0 0
    %510 = vmatprep.subr.bf16.mxu0 0
    %511 = vmatpush1.bf16.msra.mxu0 0
    %512 = vmatprep.mubr.bf16.mxu0 0
    %513 = vmatmul.mubr.bf16.gmra.mrb[0].mxu0 %v478
    %v514 = vpop.f32.mrb[0].mxu0
    %v515 = vadd.f32 %v463, %v514
    %v516 = vpop.f32.mrb[0].mxu0
    %v517 = vpop.f32.mrb[0].mxu0
    %v518 = vadd.f32 %v463, %v517
    %v519 = vpop.f32.mrb[0].mxu0
    %520 = vdwg.mxu0
    %v521 = vpack.c.bf16 %v515, %v515
    %v522 = vpack.c.bf16 %v518, %v518
    %524 = vrot.lane.b32.xlu0 %v521, 96
    %v525 = vpop.permute.xlu0 %524
    %vm526 = vcmask 130048
    %v528 = vsel %vm526, %v521, 0
    %v531 = vsel %vm526, %v525, 0
    %533 = vmatprep.subr.bf16.mxu0 0
    %534 = vmatpush1.bf16.xpose.msra.mxu0 %v531
    %535 = vmatprep.subr.bf16.mxu0 0
    %536 = vmatpush1.bf16.xpose.msra.mxu0 0
    %537 = vmatprep.subr.bf16.mxu0 0
    %538 = vmatpush1.bf16.xpose.msra.mxu0 0
    %539 = vmatprep.subr.bf16.mxu0 0
    %540 = vmatpush1.bf16.xpose.msra.mxu0 0
    %541 = vmatprep.subr.bf16.mxu0 0
    %542 = vmatpush1.bf16.xpose.msra.mxu0 0
    %543 = vmatprep.subr.bf16.mxu0 0
    %544 = vmatpush1.bf16.xpose.msra.mxu0 0
    %545 = vmatprep.subr.bf16.mxu0 0
    %546 = vmatpush1.bf16.xpose.msra.mxu0 0
    %547 = vmatprep.subr.bf16.mxu0 0
    %548 = vmatpush1.bf16.xpose.msra.mxu0 0
    %549 = vmatprep.subr.bf16.mxu0 0
    %550 = vmatpush1.bf16.xpose.msra.mxu0 0
    %551 = vmatprep.subr.bf16.mxu0 0
    %552 = vmatpush1.bf16.xpose.msra.mxu0 0
    %553 = vmatprep.subr.bf16.mxu0 0
    %554 = vmatpush1.bf16.xpose.msra.mxu0 0
    %555 = vmatprep.subr.bf16.mxu0 0
    %556 = vmatpush1.bf16.xpose.msra.mxu0 0
    %557 = vmatprep.subr.bf16.mxu0 0
    %558 = vmatpush1.bf16.xpose.msra.mxu0 0
    %559 = vmatprep.subr.bf16.mxu0 0
    %560 = vmatpush1.bf16.xpose.msra.mxu0 0
    %561 = vmatprep.subr.bf16.mxu0 0
    %562 = vmatpush1.bf16.xpose.msra.mxu0 0
    %563 = vmatprep.subr.bf16.mxu0 0
    %564 = vmatpush1.bf16.xpose.msra.mxu0 0
    %565 = vmatprep.mubr.bf16.mxu0 0
    %566 = vmatmul.mubr.bf16.gmra.mrb[0].mxu0 %v528
    %v567 = vpop.f32.mrb[0].mxu0
    %v568 = vadd.f32 0.0, %v567
    %v569 = vpop.f32.mrb[0].mxu0
    %v570 = vpop.f32.mrb[0].mxu0
    %v571 = vpop.f32.mrb[0].mxu0
    %572 = vdwg.mxu0
    %574 = vrot.lane.b32.xlu0 %v522, 96
    %v575 = vpop.permute.xlu0 %574
    %v577 = vsel %vm526, %v522, 0
    %v580 = vsel %vm526, %v575, 0
    %582 = vmatprep.subr.bf16.mxu0 0
    %583 = vmatpush1.bf16.xpose.msra.mxu0 %v580
    %584 = vmatprep.subr.bf16.mxu0 0
    %585 = vmatpush1.bf16.xpose.msra.mxu0 0
    %586 = vmatprep.subr.bf16.mxu0 0
    %587 = vmatpush1.bf16.xpose.msra.mxu0 0
    %588 = vmatprep.subr.bf16.mxu0 0
    %589 = vmatpush1.bf16.xpose.msra.mxu0 0
    %590 = vmatprep.subr.bf16.mxu0 0
    %591 = vmatpush1.bf16.xpose.msra.mxu0 0
    %592 = vmatprep.subr.bf16.mxu0 0
    %593 = vmatpush1.bf16.xpose.msra.mxu0 0
    %594 = vmatprep.subr.bf16.mxu0 0
    %595 = vmatpush1.bf16.xpose.msra.mxu0 0
    %596 = vmatprep.subr.bf16.mxu0 0
    %597 = vmatpush1.bf16.xpose.msra.mxu0 0
    %598 = vmatprep.subr.bf16.mxu0 0
    %599 = vmatpush1.bf16.xpose.msra.mxu0 0
    %600 = vmatprep.subr.bf16.mxu0 0
    %601 = vmatpush1.bf16.xpose.msra.mxu0 0
    %602 = vmatprep.subr.bf16.mxu0 0
    %603 = vmatpush1.bf16.xpose.msra.mxu0 0
    %604 = vmatprep.subr.bf16.mxu0 0
    %605 = vmatpush1.bf16.xpose.msra.mxu0 0
    %606 = vmatprep.subr.bf16.mxu0 0
    %607 = vmatpush1.bf16.xpose.msra.mxu0 0
    %608 = vmatprep.subr.bf16.mxu0 0
    %609 = vmatpush1.bf16.xpose.msra.mxu0 0
    %610 = vmatprep.subr.bf16.mxu0 0
    %611 = vmatpush1.bf16.xpose.msra.mxu0 0
    %612 = vmatprep.subr.bf16.mxu0 0
    %613 = vmatpush1.bf16.xpose.msra.mxu0 0
    %614 = vmatprep.mubr.bf16.mxu0 0
    %615 = vmatmul.mubr.bf16.gmra.mrb[0].mxu0 %v577
    %v616 = vpop.f32.mrb[0].mxu0
    %v617 = vadd.f32 0.0, %v616
    %v618 = vpop.f32.mrb[0].mxu0
    %v619 = vpop.f32.mrb[0].mxu0
    %v620 = vpop.f32.mrb[0].mxu0
    %621 = vdwg.mxu0
    %v622 = vmul.f32 %v568, 0.25
    %v623 = vmul.f32 %v617, 0.25
    %vm624 = vcmask 64512
    %v625 = vsel %vm624, %v622, -inf
    %626 = vmax.xlane.f32.xlu0 %v625
    %v627 = vpop.xlane.xlu0 %626
    %v628 = vsel %vm624, %v623, -inf
    %629 = vmax.xlane.f32.xlu0 %v628
    %v630 = vpop.xlane.xlu0 %629
    %v631 = vsub.f32 %v622, %v627
    %v632 = vsub.f32 %v623, %v630
    %v633 = vmul.f32 %v631, 1.442695
    %v634 = vpow.pop %v633
    %v635 = vmul.f32 %v632, 1.442695
    %v636 = vpow.pop %v635
    %v637 = vsel %vm624, %v634, 0.0
    %638 = vadd.xlane.f32.xlu0 %v637
    %v639 = vpop.xlane.xlu0 %638
    %v640 = vsel %vm624, %v636, 0.0
    %641 = vadd.xlane.f32.xlu0 %v640
    %v642 = vpop.xlane.xlu0 %641
    %v643 = vrcp.pop %v639
    %v644 = vrcp.pop %v642
    %v645 = vmul.f32 %v634, %v643
    %v646 = vmul.f32 %v636, %v644
    %v647 = vpack.c.bf16 %v645, %v645
    %v648 = vpack.c.bf16 %v646, %v646
    %649 = vrot.lane.b32.xlu0 %v521, 64
    %v650 = vpop.permute.xlu0 %649
    %v652 = vsel %vm624, %v647, 0
    %vm654 = vcmask 1043456
    %v656 = vsel %vm654, %v650, 0
    %658 = vmatprep.subr.bf16.mxu0 0
    %659 = vmatpush1.bf16.msra.mxu0 %v656
    %660 = vmatprep.subr.bf16.mxu0 0
    %661 = vmatpush1.bf16.msra.mxu0 0
    %662 = vmatprep.subr.bf16.mxu0 0
    %663 = vmatpush1.bf16.msra.mxu0 0
    %664 = vmatprep.subr.bf16.mxu0 0
    %665 = vmatpush1.bf16.msra.mxu0 0
    %666 = vmatprep.subr.bf16.mxu0 0
    %667 = vmatpush1.bf16.msra.mxu0 0
    %668 = vmatprep.subr.bf16.mxu0 0
    %669 = vmatpush1.bf16.msra.mxu0 0
    %670 = vmatprep.subr.bf16.mxu0 0
    %671 = vmatpush1.bf16.msra.mxu0 0
    %672 = vmatprep.subr.bf16.mxu0 0
    %673 = vmatpush1.bf16.msra.mxu0 0
    %674 = vmatprep.subr.bf16.mxu0 0
    %675 = vmatpush1.bf16.msra.mxu0 0
    %676 = vmatprep.subr.bf16.mxu0 0
    %677 = vmatpush1.bf16.msra.mxu0 0
    %678 = vmatprep.subr.bf16.mxu0 0
    %679 = vmatpush1.bf16.msra.mxu0 0
    %680 = vmatprep.subr.bf16.mxu0 0
    %681 = vmatpush1.bf16.msra.mxu0 0
    %682 = vmatprep.subr.bf16.mxu0 0
    %683 = vmatpush1.bf16.msra.mxu0 0
    %684 = vmatprep.subr.bf16.mxu0 0
    %685 = vmatpush1.bf16.msra.mxu0 0
    %686 = vmatprep.subr.bf16.mxu0 0
    %687 = vmatpush1.bf16.msra.mxu0 0
    %688 = vmatprep.subr.bf16.mxu0 0
    %689 = vmatpush1.bf16.msra.mxu0 0
    %690 = vmatprep.mubr.bf16.mxu0 0
    %691 = vmatmul.mubr.bf16.gmra.mrb[0].mxu0 %v652
    %v692 = vpop.f32.mrb[0].mxu0
    %v693 = vadd.f32 0.0, %v692
    %v694 = vpop.f32.mrb[0].mxu0
    %v695 = vpop.f32.mrb[0].mxu0
    %v696 = vpop.f32.mrb[0].mxu0
    %697 = vdwg.mxu0
    %698 = vrot.lane.b32.xlu0 %v522, 64
    %v699 = vpop.permute.xlu0 %698
    %v701 = vsel %vm624, %v648, 0
    %v704 = vsel %vm654, %v699, 0
    %706 = vmatprep.subr.bf16.mxu0 0
    %707 = vmatpush1.bf16.msra.mxu0 %v704
    %708 = vmatprep.subr.bf16.mxu0 0
    %709 = vmatpush1.bf16.msra.mxu0 0
    %710 = vmatprep.subr.bf16.mxu0 0
    %711 = vmatpush1.bf16.msra.mxu0 0
    %712 = vmatprep.subr.bf16.mxu0 0
    %713 = vmatpush1.bf16.msra.mxu0 0
    %714 = vmatprep.subr.bf16.mxu0 0
    %715 = vmatpush1.bf16.msra.mxu0 0
    %716 = vmatprep.subr.bf16.mxu0 0
    %717 = vmatpush1.bf16.msra.mxu0 0
    %718 = vmatprep.subr.bf16.mxu0 0
    %719 = vmatpush1.bf16.msra.mxu0 0
    %720 = vmatprep.subr.bf16.mxu0 0
    %721 = vmatpush1.bf16.msra.mxu0 0
    %722 = vmatprep.subr.bf16.mxu0 0
    %723 = vmatpush1.bf16.msra.mxu0 0
    %724 = vmatprep.subr.bf16.mxu0 0
    %725 = vmatpush1.bf16.msra.mxu0 0
    %726 = vmatprep.subr.bf16.mxu0 0
    %727 = vmatpush1.bf16.msra.mxu0 0
    %728 = vmatprep.subr.bf16.mxu0 0
    %729 = vmatpush1.bf16.msra.mxu0 0
    %730 = vmatprep.subr.bf16.mxu0 0
    %731 = vmatpush1.bf16.msra.mxu0 0
    %732 = vmatprep.subr.bf16.mxu0 0
    %733 = vmatpush1.bf16.msra.mxu0 0
    %734 = vmatprep.subr.bf16.mxu0 0
    %735 = vmatpush1.bf16.msra.mxu0 0
    %736 = vmatprep.subr.bf16.mxu0 0
    %737 = vmatpush1.bf16.msra.mxu0 0
    %738 = vmatprep.mubr.bf16.mxu0 0
    %739 = vmatmul.mubr.bf16.gmra.mrb[0].mxu0 %v701
    %v740 = vpop.f32.mrb[0].mxu0
    %v741 = vadd.f32 0.0, %v740
    %v742 = vpop.f32.mrb[0].mxu0
    %v743 = vpop.f32.mrb[0].mxu0
    %v744 = vpop.f32.mrb[0].mxu0
    %745 = vdwg.mxu0
    %746 = vst.msk [vmem:[#allocation2] sm:$0xff] %vm526, %v693
    %747 = vst.msk [vmem:[#allocation2 + $0x8] sm:$0xff] %vm526, %v741
    %748 = vrot.lane.b32.xlu0 %v521, 112
    %v749 = vpop.permute.xlu0 %748
    %750 = vrot.lane.b32.xlu0 %v521, 80
    %v751 = vpop.permute.xlu0 %750
    %v753 = vsel %vm526, %v749, 0
    %v756 = vsel %vm526, %v751, 0
    %758 = vmatprep.subr.bf16.mxu0 0
    %759 = vmatpush1.bf16.xpose.msra.mxu0 %v756
    %760 = vmatprep.subr.bf16.mxu0 0
    %761 = vmatpush1.bf16.xpose.msra.mxu0 0
    %762 = vmatprep.subr.bf16.mxu0 0
    %763 = vmatpush1.bf16.xpose.msra.mxu0 0
    %764 = vmatprep.subr.bf16.mxu0 0
    %765 = vmatpush1.bf16.xpose.msra.mxu0 0
    %766 = vmatprep.subr.bf16.mxu0 0
    %767 = vmatpush1.bf16.xpose.msra.mxu0 0
    %768 = vmatprep.subr.bf16.mxu0 0
    %769 = vmatpush1.bf16.xpose.msra.mxu0 0
    %770 = vmatprep.subr.bf16.mxu0 0
    %771 = vmatpush1.bf16.xpose.msra.mxu0 0
    %772 = vmatprep.subr.bf16.mxu0 0
    %773 = vmatpush1.bf16.xpose.msra.mxu0 0
    %774 = vmatprep.subr.bf16.mxu0 0
    %775 = vmatpush1.bf16.xpose.msra.mxu0 0
    %776 = vmatprep.subr.bf16.mxu0 0
    %777 = vmatpush1.bf16.xpose.msra.mxu0 0
    %778 = vmatprep.subr.bf16.mxu0 0
    %779 = vmatpush1.bf16.xpose.msra.mxu0 0
    %780 = vmatprep.subr.bf16.mxu0 0
    %781 = vmatpush1.bf16.xpose.msra.mxu0 0
    %782 = vmatprep.subr.bf16.mxu0 0
    %783 = vmatpush1.bf16.xpose.msra.mxu0 0
    %784 = vmatprep.subr.bf16.mxu0 0
    %785 = vmatpush1.bf16.xpose.msra.mxu0 0
    %786 = vmatprep.subr.bf16.mxu0 0
    %787 = vmatpush1.bf16.xpose.msra.mxu0 0
    %788 = vmatprep.subr.bf16.mxu0 0
    %789 = vmatpush1.bf16.xpose.msra.mxu0 0
    %790 = vmatprep.mubr.bf16.mxu0 0
    %791 = vmatmul.mubr.bf16.gmra.mrb[0].mxu0 %v753
    %v792 = vpop.f32.mrb[0].mxu0
    %v793 = vadd.f32 0.0, %v792
    %v794 = vpop.f32.mrb[0].mxu0
    %v795 = vpop.f32.mrb[0].mxu0
    %v796 = vpop.f32.mrb[0].mxu0
    %797 = vdwg.mxu0
    %798 = vrot.lane.b32.xlu0 %v522, 112
    %v799 = vpop.permute.xlu0 %798
    %800 = vrot.lane.b32.xlu0 %v522, 80
    %v801 = vpop.permute.xlu0 %800
    %v803 = vsel %vm526, %v799, 0
    %v806 = vsel %vm526, %v801, 0
    %808 = vmatprep.subr.bf16.mxu0 0
    %809 = vmatpush1.bf16.xpose.msra.mxu0 %v806
    %810 = vmatprep.subr.bf16.mxu0 0
    %811 = vmatpush1.bf16.xpose.msra.mxu0 0
    %812 = vmatprep.subr.bf16.mxu0 0
    %813 = vmatpush1.bf16.xpose.msra.mxu0 0
    %814 = vmatprep.subr.bf16.mxu0 0
    %815 = vmatpush1.bf16.xpose.msra.mxu0 0
    %816 = vmatprep.subr.bf16.mxu0 0
    %817 = vmatpush1.bf16.xpose.msra.mxu0 0
    %818 = vmatprep.subr.bf16.mxu0 0
    %819 = vmatpush1.bf16.xpose.msra.mxu0 0
    %820 = vmatprep.subr.bf16.mxu0 0
    %821 = vmatpush1.bf16.xpose.msra.mxu0 0
    %822 = vmatprep.subr.bf16.mxu0 0
    %823 = vmatpush1.bf16.xpose.msra.mxu0 0
    %824 = vmatprep.subr.bf16.mxu0 0
    %825 = vmatpush1.bf16.xpose.msra.mxu0 0
    %826 = vmatprep.subr.bf16.mxu0 0
    %827 = vmatpush1.bf16.xpose.msra.mxu0 0
    %828 = vmatprep.subr.bf16.mxu0 0
    %829 = vmatpush1.bf16.xpose.msra.mxu0 0
    %830 = vmatprep.subr.bf16.mxu0 0
    %831 = vmatpush1.bf16.xpose.msra.mxu0 0
    %832 = vmatprep.subr.bf16.mxu0 0
    %833 = vmatpush1.bf16.xpose.msra.mxu0 0
    %834 = vmatprep.subr.bf16.mxu0 0
    %835 = vmatpush1.bf16.xpose.msra.mxu0 0
    %836 = vmatprep.subr.bf16.mxu0 0
    %837 = vmatpush1.bf16.xpose.msra.mxu0 0
    %838 = vmatprep.subr.bf16.mxu0 0
    %839 = vmatpush1.bf16.xpose.msra.mxu0 0
    %840 = vmatprep.mubr.bf16.mxu0 0
    %841 = vmatmul.mubr.bf16.gmra.mrb[0].mxu0 %v803
    %v842 = vpop.f32.mrb[0].mxu0
    %v843 = vadd.f32 0.0, %v842
    %v844 = vpop.f32.mrb[0].mxu0
    %v845 = vpop.f32.mrb[0].mxu0
    %v846 = vpop.f32.mrb[0].mxu0
    %847 = vdwg.mxu0
    %v848 = vmul.f32 %v793, 0.25
    %v849 = vmul.f32 %v843, 0.25
    %v850 = vsel %vm624, %v848, -inf
    %851 = vmax.xlane.f32.xlu0 %v850
    %v852 = vpop.xlane.xlu0 %851
    %v853 = vsel %vm624, %v849, -inf
    %854 = vmax.xlane.f32.xlu0 %v853
    %v855 = vpop.xlane.xlu0 %854
    %v856 = vsub.f32 %v848, %v852
    %v857 = vsub.f32 %v849, %v855
    %v858 = vmul.f32 %v856, 1.442695
    %v859 = vpow.pop %v858
    %v860 = vmul.f32 %v857, 1.442695
    %v861 = vpow.pop %v860
    %v862 = vsel %vm624, %v859, 0.0
    %863 = vadd.xlane.f32.xlu0 %v862
    %v864 = vpop.xlane.xlu0 %863
    %v865 = vsel %vm624, %v861, 0.0
    %866 = vadd.xlane.f32.xlu0 %v865
    %v867 = vpop.xlane.xlu0 %866
    %v868 = vrcp.pop %v864
    %v869 = vrcp.pop %v867
    %v870 = vmul.f32 %v859, %v868
    %v871 = vmul.f32 %v861, %v869
    %v872 = vpack.c.bf16 %v870, %v870
    %v873 = vpack.c.bf16 %v871, %v871
    %874 = vrot.lane.b32.xlu0 %v521, 48
    %v875 = vpop.permute.xlu0 %874
    %v877 = vsel %vm624, %v872, 0
    %v880 = vsel %vm654, %v875, 0
    %882 = vmatprep.subr.bf16.mxu0 0
    %883 = vmatpush1.bf16.msra.mxu0 %v880
    %884 = vmatprep.subr.bf16.mxu0 0
    %885 = vmatpush1.bf16.msra.mxu0 0
    %886 = vmatprep.subr.bf16.mxu0 0
    %887 = vmatpush1.bf16.msra.mxu0 0
    %888 = vmatprep.subr.bf16.mxu0 0
    %889 = vmatpush1.bf16.msra.mxu0 0
    %890 = vmatprep.subr.bf16.mxu0 0
    %891 = vmatpush1.bf16.msra.mxu0 0
    %892 = vmatprep.subr.bf16.mxu0 0
    %893 = vmatpush1.bf16.msra.mxu0 0
    %894 = vmatprep.subr.bf16.mxu0 0
    %895 = vmatpush1.bf16.msra.mxu0 0
    %896 = vmatprep.subr.bf16.mxu0 0
    %897 = vmatpush1.bf16.msra.mxu0 0
    %898 = vmatprep.subr.bf16.mxu0 0
    %899 = vmatpush1.bf16.msra.mxu0 0
    %900 = vmatprep.subr.bf16.mxu0 0
    %901 = vmatpush1.bf16.msra.mxu0 0
    %902 = vmatprep.subr.bf16.mxu0 0
    %903 = vmatpush1.bf16.msra.mxu0 0
    %904 = vmatprep.subr.bf16.mxu0 0
    %905 = vmatpush1.bf16.msra.mxu0 0
    %906 = vmatprep.subr.bf16.mxu0 0
    %907 = vmatpush1.bf16.msra.mxu0 0
    %908 = vmatprep.subr.bf16.mxu0 0
    %909 = vmatpush1.bf16.msra.mxu0 0
    %910 = vmatprep.subr.bf16.mxu0 0
    %911 = vmatpush1.bf16.msra.mxu0 0
    %912 = vmatprep.subr.bf16.mxu0 0
    %913 = vmatpush1.bf16.msra.mxu0 0
    %914 = vmatprep.mubr.bf16.mxu0 0
    %915 = vmatmul.mubr.bf16.gmra.mrb[0].mxu0 %v877
    %v916 = vpop.f32.mrb[0].mxu0
    %v917 = vadd.f32 0.0, %v916
    %v918 = vpop.f32.mrb[0].mxu0
    %v919 = vpop.f32.mrb[0].mxu0
    %v920 = vpop.f32.mrb[0].mxu0
    %921 = vdwg.mxu0
    %922 = vrot.lane.b32.xlu0 %v522, 48
    %v923 = vpop.permute.xlu0 %922
    %v925 = vsel %vm624, %v873, 0
    %v928 = vsel %vm654, %v923, 0
    %930 = vmatprep.subr.bf16.mxu0 0
    %931 = vmatpush1.bf16.msra.mxu0 %v928
    %932 = vmatprep.subr.bf16.mxu0 0
    %933 = vmatpush1.bf16.msra.mxu0 0
    %934 = vmatprep.subr.bf16.mxu0 0
    %935 = vmatpush1.bf16.msra.mxu0 0
    %936 = vmatprep.subr.bf16.mxu0 0
    %937 = vmatpush1.bf16.msra.mxu0 0
    %938 = vmatprep.subr.bf16.mxu0 0
    %939 = vmatpush1.bf16.msra.mxu0 0
    %940 = vmatprep.subr.bf16.mxu0 0
    %941 = vmatpush1.bf16.msra.mxu0 0
    %942 = vmatprep.subr.bf16.mxu0 0
    %943 = vmatpush1.bf16.msra.mxu0 0
    %944 = vmatprep.subr.bf16.mxu0 0
    %945 = vmatpush1.bf16.msra.mxu0 0
    %946 = vmatprep.subr.bf16.mxu0 0
    %947 = vmatpush1.bf16.msra.mxu0 0
    %948 = vmatprep.subr.bf16.mxu0 0
    %949 = vmatpush1.bf16.msra.mxu0 0
    %950 = vmatprep.subr.bf16.mxu0 0
    %951 = vmatpush1.bf16.msra.mxu0 0
    %952 = vmatprep.subr.bf16.mxu0 0
    %953 = vmatpush1.bf16.msra.mxu0 0
    %954 = vmatprep.subr.bf16.mxu0 0
    %955 = vmatpush1.bf16.msra.mxu0 0
    %956 = vmatprep.subr.bf16.mxu0 0
    %957 = vmatpush1.bf16.msra.mxu0 0
    %958 = vmatprep.subr.bf16.mxu0 0
    %959 = vmatpush1.bf16.msra.mxu0 0
    %960 = vmatprep.subr.bf16.mxu0 0
    %961 = vmatpush1.bf16.msra.mxu0 0
    %962 = vmatprep.mubr.bf16.mxu0 0
    %963 = vmatmul.mubr.bf16.gmra.mrb[0].mxu0 %v925
    %v964 = vpop.f32.mrb[0].mxu0
    %v965 = vadd.f32 0.0, %v964
    %v966 = vpop.f32.mrb[0].mxu0
    %v967 = vpop.f32.mrb[0].mxu0
    %v968 = vpop.f32.mrb[0].mxu0
    %969 = vdwg.mxu0
    %972 = vrot.lane.b32.xlu0 %v917, 16
    %v973 = vpop.permute.xlu0 %972
    %974 = vrot.lane.b32.xlu0 %v965, 16
    %v975 = vpop.permute.xlu0 %974
    %vm978 = vcmask 261248
    %979 = vst.msk [vmem:[#allocation2] sm:$0xff] %vm978, %v973
    %980 = vst.msk [vmem:[#allocation2 + $0x8] sm:$0xff] %vm978, %v975
    %v981 = vld [vmem:[#allocation2] sm:$0xff]
    %v982 = vld [vmem:[#allocation2 + $0x8] sm:$0xff]
    %v983 = vpack.c.bf16 %v982, %v981
    %v984 = vld [vmem:[%s15] sm:$0xf]
    %v985 = vld [vmem:[%s15 + $0x4] sm:$0xf]
    %v986 = vld [vmem:[%s15 + $0x8] sm:$0xf]
    %v987 = vld [vmem:[%s15 + $0xc] sm:$0xf]
    %v988 = vld [vmem:[#allocation5] sm:$0x1]
    %v990 = vlaneseq
    %v991 = vshrl.u32 %v990, 7
    %v992 = vsub.s32 0, %v991
    %v993 = vrot.slane %v988, %v992
    %v999 = vunpack.c.l.b16 %v984
    %v1000 = vunpack.c.l.b16 %v985
    %v1001 = vunpack.c.l.b16 %v986
    %v1002 = vunpack.c.l.b16 %v987
    %v1003 = vpack.c.b16 %v1000, %v999
    %v1004 = vpack.c.b16 %v1002, %v1001
    %v1008 = vsel %vm409, %v983, 0
    %1010 = vmatprep.subr.bf16.mxu0 0
    %1011 = vmatpush1.bf16.msra.mxu0 %v1003
    %1012 = vmatprep.subr.bf16.mxu0 0
    %1013 = vmatpush1.bf16.msra.mxu0 %v1004
    %1014 = vmatprep.subr.bf16.mxu0 0
    %1015 = vmatpush1.bf16.msra.mxu0 0
    %1016 = vmatprep.subr.bf16.mxu0 0
    %1017 = vmatpush1.bf16.msra.mxu0 0
    %1018 = vmatprep.subr.bf16.mxu0 0
    %1019 = vmatpush1.bf16.msra.mxu0 0
    %1020 = vmatprep.subr.bf16.mxu0 0
    %1021 = vmatpush1.bf16.msra.mxu0 0
    %1022 = vmatprep.subr.bf16.mxu0 0
    %1023 = vmatpush1.bf16.msra.mxu0 0
    %1024 = vmatprep.subr.bf16.mxu0 0
    %1025 = vmatpush1.bf16.msra.mxu0 0
    %1026 = vmatprep.subr.bf16.mxu0 0
    %1027 = vmatpush1.bf16.msra.mxu0 0
    %1028 = vmatprep.subr.bf16.mxu0 0
    %1029 = vmatpush1.bf16.msra.mxu0 0
    %1030 = vmatprep.subr.bf16.mxu0 0
    %1031 = vmatpush1.bf16.msra.mxu0 0
    %1032 = vmatprep.subr.bf16.mxu0 0
    %1033 = vmatpush1.bf16.msra.mxu0 0
    %1034 = vmatprep.subr.bf16.mxu0 0
    %1035 = vmatpush1.bf16.msra.mxu0 0
    %1036 = vmatprep.subr.bf16.mxu0 0
    %1037 = vmatpush1.bf16.msra.mxu0 0
    %1038 = vmatprep.subr.bf16.mxu0 0
    %1039 = vmatpush1.bf16.msra.mxu0 0
    %1040 = vmatprep.subr.bf16.mxu0 0
    %1041 = vmatpush1.bf16.msra.mxu0 0
    %1042 = vmatprep.mubr.bf16.mxu0 0
    %1043 = vmatmul.mubr.bf16.gmra.mrb[0].mxu0 %v1008
    %v1044 = vpop.f32.mrb[0].mxu0
    %v1045 = vadd.f32 %v993, %v1044
    %v1046 = vpop.f32.mrb[0].mxu0
    %v1047 = vpop.f32.mrb[0].mxu0
    %v1048 = vadd.f32 %v993, %v1047
    %v1049 = vpop.f32.mrb[0].mxu0
    %1050 = vdwg.mxu0
    %v1051 = vadd.f32 %v451, %v1045
    %v1052 = vadd.f32 %v452, %v1048
    %v1053 = vld [vmem:[#allocation10] sm:$0x1]
    %v1054 = vld [vmem:[#allocation11] sm:$0x1]
    %v1055 = vsel %vm409, %v1051, 0.0
    %1056 = vadd.xlane.f32.xlu0 %v1055
    %v1057 = vpop.xlane.xlu0 %1056
    %v1058 = vsel %vm409, %v1052, 0.0
    %1059 = vadd.xlane.f32.xlu0 %v1058
    %v1060 = vpop.xlane.xlu0 %1059
    %v1061 = vmul.f32 %v1057, %v416
    %v1062 = vmul.f32 %v1060, %v416
    %v1063 = vsub.f32 %v1051, %v1061
    %v1064 = vsub.f32 %v1052, %v1062
    %v1065 = vmul.f32 %v1063, %v1063
    %v1066 = vmul.f32 %v1064, %v1064
    %v1067 = vsel %vm409, %v1065, 0.0
    %1068 = vadd.xlane.f32.xlu0 %v1067
    %v1069 = vpop.xlane.xlu0 %1068
    %v1070 = vsel %vm409, %v1066, 0.0
    %1071 = vadd.xlane.f32.xlu0 %v1070
    %v1072 = vpop.xlane.xlu0 %1071
    %v1073 = vmul.f32 %v1069, %v416
    %v1074 = vmul.f32 %v1072, %v416
    %v1075 = vadd.f32 %v1073, 1e-05
    %v1076 = vadd.f32 %v1074, 1e-05
    %v1077 = vrsqrt.pop %v1075
    %v1078 = vrsqrt.pop %v1076
    %v1079 = vmul.f32 %v1063, %v1077
    %v1080 = vmul.f32 %v1064, %v1078
    %v1082 = vlaneseq
    %v1083 = vshrl.u32 %v1082, 7
    %v1084 = vsub.s32 0, %v1083
    %v1085 = vrot.slane %v1053, %v1084
    %v1087 = vmul.f32 %v1079, %v1085
    %v1088 = vmul.f32 %v1080, %v1085
    %v1090 = vlaneseq
    %v1091 = vshrl.u32 %v1090, 7
    %v1092 = vsub.s32 0, %v1091
    %v1093 = vrot.slane %v1054, %v1092
    %v1095 = vadd.f32 %v1087, %v1093
    %v1096 = vadd.f32 %v1088, %v1093
    %v1097 = vpack.c.bf16 %v1096, %v1095
    %v1098 = vld [vmem:[%s19] sm:$0xf]
    %v1099 = vld [vmem:[%s19 + $0x4] sm:$0xf]
    %v1100 = vld [vmem:[%s19 + $0x8] sm:$0xf]
    %v1101 = vld [vmem:[%s19 + $0xc] sm:$0xf]
    %v1102 = vld [vmem:[#allocation7] sm:$0x1]
    %v1104 = vlaneseq
    %v1105 = vshrl.u32 %v1104, 7
    %v1106 = vsub.s32 0, %v1105
    %v1107 = vrot.slane %v1102, %v1106
    %v1113 = vunpack.c.l.b16 %v1098
    %v1114 = vunpack.c.l.b16 %v1099
    %v1115 = vunpack.c.l.b16 %v1100
    %v1116 = vunpack.c.l.b16 %v1101
    %v1117 = vpack.c.b16 %v1114, %v1113
    %v1118 = vpack.c.b16 %v1116, %v1115
    %v1122 = vsel %vm409, %v1097, 0
    %1124 = vmatprep.subr.bf16.mxu0 0
    %1125 = vmatpush1.bf16.msra.mxu0 %v1117
    %1126 = vmatprep.subr.bf16.mxu0 0
    %1127 = vmatpush1.bf16.msra.mxu0 %v1118
    %1128 = vmatprep.subr.bf16.mxu0 0
    %1129 = vmatpush1.bf16.msra.mxu0 0
    %1130 = vmatprep.subr.bf16.mxu0 0
    %1131 = vmatpush1.bf16.msra.mxu0 0
    %1132 = vmatprep.subr.bf16.mxu0 0
    %1133 = vmatpush1.bf16.msra.mxu0 0
    %1134 = vmatprep.subr.bf16.mxu0 0
    %1135 = vmatpush1.bf16.msra.mxu0 0
    %1136 = vmatprep.subr.bf16.mxu0 0
    %1137 = vmatpush1.bf16.msra.mxu0 0
    %1138 = vmatprep.subr.bf16.mxu0 0
    %1139 = vmatpush1.bf16.msra.mxu0 0
    %1140 = vmatprep.subr.bf16.mxu0 0
    %1141 = vmatpush1.bf16.msra.mxu0 0
    %1142 = vmatprep.subr.bf16.mxu0 0
    %1143 = vmatpush1.bf16.msra.mxu0 0
    %1144 = vmatprep.subr.bf16.mxu0 0
    %1145 = vmatpush1.bf16.msra.mxu0 0
    %1146 = vmatprep.subr.bf16.mxu0 0
    %1147 = vmatpush1.bf16.msra.mxu0 0
    %1148 = vmatprep.subr.bf16.mxu0 0
    %1149 = vmatpush1.bf16.msra.mxu0 0
    %1150 = vmatprep.subr.bf16.mxu0 0
    %1151 = vmatpush1.bf16.msra.mxu0 0
    %1152 = vmatprep.subr.bf16.mxu0 0
    %1153 = vmatpush1.bf16.msra.mxu0 0
    %1154 = vmatprep.subr.bf16.mxu0 0
    %1155 = vmatpush1.bf16.msra.mxu0 0
    %1156 = vmatprep.mubr.bf16.mxu0 0
    %1157 = vmatmul.mubr.bf16.gmra.mrb[0].mxu0 %v1122
    %v1158 = vpop.f32.mrb[0].mxu0
    %v1159 = vadd.f32 %v1107, %v1158
    %v1160 = vpop.f32.mrb[0].mxu0
    %v1161 = vpop.f32.mrb[0].mxu0
    %v1162 = vadd.f32 %v1107, %v1161
    %v1163 = vpop.f32.mrb[0].mxu0
    %1164 = vdwg.mxu0
    %v1165 = vmax.f32 %v1159, 0.0
    %v1166 = vmax.f32 %v1162, 0.0
    %v1167 = vpack.c.bf16 %v1166, %v1165
    %v1168 = vld [vmem:[%s23] sm:$0xf]
    %v1169 = vld [vmem:[%s23 + $0x4] sm:$0xf]
    %v1170 = vld [vmem:[%s23 + $0x8] sm:$0xf]
    %v1171 = vld [vmem:[%s23 + $0xc] sm:$0xf]
    %v1172 = vld [vmem:[%s23 + $0x10] sm:$0xf]
    %v1173 = vld [vmem:[%s23 + $0x14] sm:$0xf]
    %v1174 = vld [vmem:[%s23 + $0x18] sm:$0xf]
    %v1175 = vld [vmem:[%s23 + $0x1c] sm:$0xf]
    %v1176 = vld [vmem:[#allocation8] sm:$0x1]
    %v1178 = vlaneseq
    %v1179 = vshrl.u32 %v1178, 7
    %v1180 = vsub.s32 0, %v1179
    %v1181 = vrot.slane %v1176, %v1180
    %v1191 = vunpack.c.l.b16 %v1168
    %v1192 = vunpack.c.l.b16 %v1169
    %v1193 = vunpack.c.l.b16 %v1170
    %v1194 = vunpack.c.l.b16 %v1171
    %v1195 = vunpack.c.l.b16 %v1172
    %v1196 = vunpack.c.l.b16 %v1173
    %v1197 = vunpack.c.l.b16 %v1174
    %v1198 = vunpack.c.l.b16 %v1175
    %v1199 = vpack.c.b16 %v1192, %v1191
    %v1200 = vpack.c.b16 %v1194, %v1193
    %v1201 = vpack.c.b16 %v1196, %v1195
    %v1202 = vpack.c.b16 %v1198, %v1197
    %vm1207 = vcmask 523264
    %v1209 = vsel %vm1207, %v1167, 0
    %1211 = vmatprep.subr.bf16.mxu0 0
    %1212 = vmatpush1.bf16.msra.mxu0 %v1199
    %1213 = vmatprep.subr.bf16.mxu0 0
    %1214 = vmatpush1.bf16.msra.mxu0 %v1200
    %1215 = vmatprep.subr.bf16.mxu0 0
    %1216 = vmatpush1.bf16.msra.mxu0 %v1201
    %1217 = vmatprep.subr.bf16.mxu0 0
    %1218 = vmatpush1.bf16.msra.mxu0 %v1202
    %1219 = vmatprep.subr.bf16.mxu0 0
    %1220 = vmatpush1.bf16.msra.mxu0 0
    %1221 = vmatprep.subr.bf16.mxu0 0
    %1222 = vmatpush1.bf16.msra.mxu0 0
    %1223 = vmatprep.subr.bf16.mxu0 0
    %1224 = vmatpush1.bf16.msra.mxu0 0
    %1225 = vmatprep.subr.bf16.mxu0 0
    %1226 = vmatpush1.bf16.msra.mxu0 0
    %1227 = vmatprep.subr.bf16.mxu0 0
    %1228 = vmatpush1.bf16.msra.mxu0 0
    %1229 = vmatprep.subr.bf16.mxu0 0
    %1230 = vmatpush1.bf16.msra.mxu0 0
    %1231 = vmatprep.subr.bf16.mxu0 0
    %1232 = vmatpush1.bf16.msra.mxu0 0
    %1233 = vmatprep.subr.bf16.mxu0 0
    %1234 = vmatpush1.bf16.msra.mxu0 0
    %1235 = vmatprep.subr.bf16.mxu0 0
    %1236 = vmatpush1.bf16.msra.mxu0 0
    %1237 = vmatprep.subr.bf16.mxu0 0
    %1238 = vmatpush1.bf16.msra.mxu0 0
    %1239 = vmatprep.subr.bf16.mxu0 0
    %1240 = vmatpush1.bf16.msra.mxu0 0
    %1241 = vmatprep.subr.bf16.mxu0 0
    %1242 = vmatpush1.bf16.msra.mxu0 0
    %1243 = vmatprep.mubr.bf16.mxu0 0
    %1244 = vmatmul.mubr.bf16.gmra.mrb[0].mxu0 %v1209
    %v1245 = vpop.f32.mrb[0].mxu0
    %v1246 = vadd.f32 %v1181, %v1245
    %v1247 = vpop.f32.mrb[0].mxu0
    %v1248 = vpop.f32.mrb[0].mxu0
    %v1249 = vadd.f32 %v1181, %v1248
    %v1250 = vpop.f32.mrb[0].mxu0
    %1251 = vdwg.mxu0
    %v1252 = vadd.f32 %v1095, %v1246
    %v1253 = vadd.f32 %v1096, %v1249
    %v1254 = vld [vmem:[#allocation13] sm:$0x1]
    %v1255 = vld [vmem:[#allocation14] sm:$0x1]
    %v1256 = vsel %vm409, %v1252, 0.0
    %1257 = vadd.xlane.f32.xlu0 %v1256
    %v1258 = vpop.xlane.xlu0 %1257
    %v1259 = vsel %vm409, %v1253, 0.0
    %1260 = vadd.xlane.f32.xlu0 %v1259
    %v1261 = vpop.xlane.xlu0 %1260
    %v1262 = vmul.f32 %v1258, %v416
    %v1263 = vmul.f32 %v1261, %v416
    %v1264 = vsub.f32 %v1252, %v1262
    %v1265 = vsub.f32 %v1253, %v1263
    %v1266 = vmul.f32 %v1264, %v1264
    %v1267 = vmul.f32 %v1265, %v1265
    %v1268 = vsel %vm409, %v1266, 0.0
    %1269 = vadd.xlane.f32.xlu0 %v1268
    %v1270 = vpop.xlane.xlu0 %1269
    %v1271 = vsel %vm409, %v1267, 0.0
    %1272 = vadd.xlane.f32.xlu0 %v1271
    %v1273 = vpop.xlane.xlu0 %1272
    %v1274 = vmul.f32 %v1270, %v416
    %v1275 = vmul.f32 %v1273, %v416
    %v1276 = vadd.f32 %v1274, 1e-05
    %v1277 = vadd.f32 %v1275, 1e-05
    %v1278 = vrsqrt.pop %v1276
    %v1279 = vrsqrt.pop %v1277
    %v1280 = vmul.f32 %v1264, %v1278
    %v1281 = vmul.f32 %v1265, %v1279
    %v1283 = vlaneseq
    %v1284 = vshrl.u32 %v1283, 7
    %v1285 = vsub.s32 0, %v1284
    %v1286 = vrot.slane %v1254, %v1285
    %v1288 = vmul.f32 %v1280, %v1286
    %v1289 = vmul.f32 %v1281, %v1286
    %v1291 = vlaneseq
    %v1292 = vshrl.u32 %v1291, 7
    %v1293 = vsub.s32 0, %v1292
    %v1294 = vrot.slane %v1255, %v1293
    %v1296 = vadd.f32 %v1288, %v1294
    %v1297 = vadd.f32 %v1289, %v1294
    %v1298 = vpack.c.bf16 %v1297, %v1296
    %v1299 = vld [vmem:[%s35] sm:$0xf]
    %v1300 = vld [vmem:[%s35 + $0x4] sm:$0xf]
    %v1301 = vld [vmem:[%s35 + $0x8] sm:$0xf]
    %v1302 = vld [vmem:[%s35 + $0xc] sm:$0xf]
    %v1303 = vld [vmem:[#allocation16] sm:$0x1]
    %v1305 = vlaneseq
    %v1306 = vshrl.u32 %v1305, 7
    %v1307 = vsub.s32 0, %v1306
    %v1308 = vrot.slane %v1303, %v1307
    %v1314 = vunpack.c.l.b16 %v1299
    %v1315 = vunpack.c.l.b16 %v1300
    %v1316 = vunpack.c.l.b16 %v1301
    %v1317 = vunpack.c.l.b16 %v1302
    %v1318 = vpack.c.b16 %v1315, %v1314
    %v1319 = vpack.c.b16 %v1317, %v1316
    %v1323 = vsel %vm409, %v1298, 0
    %1325 = vmatprep.subr.bf16.mxu0 0
    %1326 = vmatpush1.bf16.msra.mxu0 %v1318
    %1327 = vmatprep.subr.bf16.mxu0 0
    %1328 = vmatpush1.bf16.msra.mxu0 %v1319
    %1329 = vmatprep.subr.bf16.mxu0 0
    %1330 = vmatpush1.bf16.msra.mxu0 0
    %1331 = vmatprep.subr.bf16.mxu0 0
    %1332 = vmatpush1.bf16.msra.mxu0 0
    %1333 = vmatprep.subr.bf16.mxu0 0
    %1334 = vmatpush1.bf16.msra.mxu0 0
    %1335 = vmatprep.subr.bf16.mxu0 0
    %1336 = vmatpush1.bf16.msra.mxu0 0
    %1337 = vmatprep.subr.bf16.mxu0 0
    %1338 = vmatpush1.bf16.msra.mxu0 0
    %1339 = vmatprep.subr.bf16.mxu0 0
    %1340 = vmatpush1.bf16.msra.mxu0 0
    %1341 = vmatprep.subr.bf16.mxu0 0
    %1342 = vmatpush1.bf16.msra.mxu0 0
    %1343 = vmatprep.subr.bf16.mxu0 0
    %1344 = vmatpush1.bf16.msra.mxu0 0
    %1345 = vmatprep.subr.bf16.mxu0 0
    %1346 = vmatpush1.bf16.msra.mxu0 0
    %1347 = vmatprep.subr.bf16.mxu0 0
    %1348 = vmatpush1.bf16.msra.mxu0 0
    %1349 = vmatprep.subr.bf16.mxu0 0
    %1350 = vmatpush1.bf16.msra.mxu0 0
    %1351 = vmatprep.subr.bf16.mxu0 0
    %1352 = vmatpush1.bf16.msra.mxu0 0
    %1353 = vmatprep.subr.bf16.mxu0 0
    %1354 = vmatpush1.bf16.msra.mxu0 0
    %1355 = vmatprep.subr.bf16.mxu0 0
    %1356 = vmatpush1.bf16.msra.mxu0 0
    %1357 = vmatprep.mubr.bf16.mxu0 0
    %1358 = vmatmul.mubr.bf16.gmra.mrb[0].mxu0 %v1323
    %v1359 = vpop.f32.mrb[0].mxu0
    %v1360 = vadd.f32 %v1308, %v1359
    %v1361 = vpop.f32.mrb[0].mxu0
    %v1362 = vpop.f32.mrb[0].mxu0
    %v1363 = vadd.f32 %v1308, %v1362
    %v1364 = vpop.f32.mrb[0].mxu0
    %1365 = vdwg.mxu0
    %v1366 = vpack.c.bf16 %v1360, %v1360
    %v1367 = vpack.c.bf16 %v1363, %v1363
    %1369 = vrot.lane.b32.xlu0 %v1366, 96
    %v1370 = vpop.permute.xlu0 %1369
    %v1372 = vsel %vm526, %v1366, 0
    %v1375 = vsel %vm526, %v1370, 0
    %1377 = vmatprep.subr.bf16.mxu0 0
    %1378 = vmatpush1.bf16.xpose.msra.mxu0 %v1375
    %1379 = vmatprep.subr.bf16.mxu0 0
    %1380 = vmatpush1.bf16.xpose.msra.mxu0 0
    %1381 = vmatprep.subr.bf16.mxu0 0
    %1382 = vmatpush1.bf16.xpose.msra.mxu0 0
    %1383 = vmatprep.subr.bf16.mxu0 0
    %1384 = vmatpush1.bf16.xpose.msra.mxu0 0
    %1385 = vmatprep.subr.bf16.mxu0 0
    %1386 = vmatpush1.bf16.xpose.msra.mxu0 0
    %1387 = vmatprep.subr.bf16.mxu0 0
    %1388 = vmatpush1.bf16.xpose.msra.mxu0 0
    %1389 = vmatprep.subr.bf16.mxu0 0
    %1390 = vmatpush1.bf16.xpose.msra.mxu0 0
    %1391 = vmatprep.subr.bf16.mxu0 0
    %1392 = vmatpush1.bf16.xpose.msra.mxu0 0
    %1393 = vmatprep.subr.bf16.mxu0 0
    %1394 = vmatpush1.bf16.xpose.msra.mxu0 0
    %1395 = vmatprep.subr.bf16.mxu0 0
    %1396 = vmatpush1.bf16.xpose.msra.mxu0 0
    %1397 = vmatprep.subr.bf16.mxu0 0
    %1398 = vmatpush1.bf16.xpose.msra.mxu0 0
    %1399 = vmatprep.subr.bf16.mxu0 0
    %1400 = vmatpush1.bf16.xpose.msra.mxu0 0
    %1401 = vmatprep.subr.bf16.mxu0 0
    %1402 = vmatpush1.bf16.xpose.msra.mxu0 0
    %1403 = vmatprep.subr.bf16.mxu0 0
    %1404 = vmatpush1.bf16.xpose.msra.mxu0 0
    %1405 = vmatprep.subr.bf16.mxu0 0
    %1406 = vmatpush1.bf16.xpose.msra.mxu0 0
    %1407 = vmatprep.subr.bf16.mxu0 0
    %1408 = vmatpush1.bf16.xpose.msra.mxu0 0
    %1409 = vmatprep.mubr.bf16.mxu0 0
    %1410 = vmatmul.mubr.bf16.gmra.mrb[0].mxu0 %v1372
    %v1411 = vpop.f32.mrb[0].mxu0
    %v1412 = vadd.f32 0.0, %v1411
    %v1413 = vpop.f32.mrb[0].mxu0
    %v1414 = vpop.f32.mrb[0].mxu0
    %v1415 = vpop.f32.mrb[0].mxu0
    %1416 = vdwg.mxu0
    %1418 = vrot.lane.b32.xlu0 %v1367, 96
    %v1419 = vpop.permute.xlu0 %1418
    %v1421 = vsel %vm526, %v1367, 0
    %v1424 = vsel %vm526, %v1419, 0
    %1426 = vmatprep.subr.bf16.mxu0 0
    %1427 = vmatpush1.bf16.xpose.msra.mxu0 %v1424
    %1428 = vmatprep.subr.bf16.mxu0 0
    %1429 = vmatpush1.bf16.xpose.msra.mxu0 0
    %1430 = vmatprep.subr.bf16.mxu0 0
    %1431 = vmatpush1.bf16.xpose.msra.mxu0 0
    %1432 = vmatprep.subr.bf16.mxu0 0
    %1433 = vmatpush1.bf16.xpose.msra.mxu0 0
    %1434 = vmatprep.subr.bf16.mxu0 0
    %1435 = vmatpush1.bf16.xpose.msra.mxu0 0
    %1436 = vmatprep.subr.bf16.mxu0 0
    %1437 = vmatpush1.bf16.xpose.msra.mxu0 0
    %1438 = vmatprep.subr.bf16.mxu0 0
    %1439 = vmatpush1.bf16.xpose.msra.mxu0 0
    %1440 = vmatprep.subr.bf16.mxu0 0
    %1441 = vmatpush1.bf16.xpose.msra.mxu0 0
    %1442 = vmatprep.subr.bf16.mxu0 0
    %1443 = vmatpush1.bf16.xpose.msra.mxu0 0
    %1444 = vmatprep.subr.bf16.mxu0 0
    %1445 = vmatpush1.bf16.xpose.msra.mxu0 0
    %1446 = vmatprep.subr.bf16.mxu0 0
    %1447 = vmatpush1.bf16.xpose.msra.mxu0 0
    %1448 = vmatprep.subr.bf16.mxu0 0
    %1449 = vmatpush1.bf16.xpose.msra.mxu0 0
    %1450 = vmatprep.subr.bf16.mxu0 0
    %1451 = vmatpush1.bf16.xpose.msra.mxu0 0
    %1452 = vmatprep.subr.bf16.mxu0 0
    %1453 = vmatpush1.bf16.xpose.msra.mxu0 0
    %1454 = vmatprep.subr.bf16.mxu0 0
    %1455 = vmatpush1.bf16.xpose.msra.mxu0 0
    %1456 = vmatprep.subr.bf16.mxu0 0
    %1457 = vmatpush1.bf16.xpose.msra.mxu0 0
    %1458 = vmatprep.mubr.bf16.mxu0 0
    %1459 = vmatmul.mubr.bf16.gmra.mrb[0].mxu0 %v1421
    %v1460 = vpop.f32.mrb[0].mxu0
    %v1461 = vadd.f32 0.0, %v1460
    %v1462 = vpop.f32.mrb[0].mxu0
    %v1463 = vpop.f32.mrb[0].mxu0
    %v1464 = vpop.f32.mrb[0].mxu0
    %1465 = vdwg.mxu0
    %v1466 = vmul.f32 %v1412, 0.25
    %v1467 = vmul.f32 %v1461, 0.25
    %v1468 = vsel %vm624, %v1466, -inf
    %1469 = vmax.xlane.f32.xlu0 %v1468
    %v1470 = vpop.xlane.xlu0 %1469
    %v1471 = vsel %vm624, %v1467, -inf
    %1472 = vmax.xlane.f32.xlu0 %v1471
    %v1473 = vpop.xlane.xlu0 %1472
    %v1474 = vsub.f32 %v1466, %v1470
    %v1475 = vsub.f32 %v1467, %v1473
    %v1476 = vmul.f32 %v1474, 1.442695
    %v1477 = vpow.pop %v1476
    %v1478 = vmul.f32 %v1475, 1.442695
    %v1479 = vpow.pop %v1478
    %v1480 = vsel %vm624, %v1477, 0.0
    %1481 = vadd.xlane.f32.xlu0 %v1480
    %v1482 = vpop.xlane.xlu0 %1481
    %v1483 = vsel %vm624, %v1479, 0.0
    %1484 = vadd.xlane.f32.xlu0 %v1483
    %v1485 = vpop.xlane.xlu0 %1484
    %v1486 = vrcp.pop %v1482
    %v1487 = vrcp.pop %v1485
    %v1488 = vmul.f32 %v1477, %v1486
    %v1489 = vmul.f32 %v1479, %v1487
    %v1490 = vpack.c.bf16 %v1488, %v1488
    %v1491 = vpack.c.bf16 %v1489, %v1489
    %1492 = vrot.lane.b32.xlu0 %v1366, 64
    %v1493 = vpop.permute.xlu0 %1492
    %v1495 = vsel %vm624, %v1490, 0
    %v1498 = vsel %vm654, %v1493, 0
    %1500 = vmatprep.subr.bf16.mxu0 0
    %1501 = vmatpush1.bf16.msra.mxu0 %v1498
    %1502 = vmatprep.subr.bf16.mxu0 0
    %1503 = vmatpush1.bf16.msra.mxu0 0
    %1504 = vmatprep.subr.bf16.mxu0 0
    %1505 = vmatpush1.bf16.msra.mxu0 0
    %1506 = vmatprep.subr.bf16.mxu0 0
    %1507 = vmatpush1.bf16.msra.mxu0 0
    %1508 = vmatprep.subr.bf16.mxu0 0
    %1509 = vmatpush1.bf16.msra.mxu0 0
    %1510 = vmatprep.subr.bf16.mxu0 0
    %1511 = vmatpush1.bf16.msra.mxu0 0
    %1512 = vmatprep.subr.bf16.mxu0 0
    %1513 = vmatpush1.bf16.msra.mxu0 0
    %1514 = vmatprep.subr.bf16.mxu0 0
    %1515 = vmatpush1.bf16.msra.mxu0 0
    %1516 = vmatprep.subr.bf16.mxu0 0
    %1517 = vmatpush1.bf16.msra.mxu0 0
    %1518 = vmatprep.subr.bf16.mxu0 0
    %1519 = vmatpush1.bf16.msra.mxu0 0
    %1520 = vmatprep.subr.bf16.mxu0 0
    %1521 = vmatpush1.bf16.msra.mxu0 0
    %1522 = vmatprep.subr.bf16.mxu0 0
    %1523 = vmatpush1.bf16.msra.mxu0 0
    %1524 = vmatprep.subr.bf16.mxu0 0
    %1525 = vmatpush1.bf16.msra.mxu0 0
    %1526 = vmatprep.subr.bf16.mxu0 0
    %1527 = vmatpush1.bf16.msra.mxu0 0
    %1528 = vmatprep.subr.bf16.mxu0 0
    %1529 = vmatpush1.bf16.msra.mxu0 0
    %1530 = vmatprep.subr.bf16.mxu0 0
    %1531 = vmatpush1.bf16.msra.mxu0 0
    %1532 = vmatprep.mubr.bf16.mxu0 0
    %1533 = vmatmul.mubr.bf16.gmra.mrb[0].mxu0 %v1495
    %v1534 = vpop.f32.mrb[0].mxu0
    %v1535 = vadd.f32 0.0, %v1534
    %v1536 = vpop.f32.mrb[0].mxu0
    %v1537 = vpop.f32.mrb[0].mxu0
    %v1538 = vpop.f32.mrb[0].mxu0
    %1539 = vdwg.mxu0
    %1540 = vrot.lane.b32.xlu0 %v1367, 64
    %v1541 = vpop.permute.xlu0 %1540
    %v1543 = vsel %vm624, %v1491, 0
    %v1546 = vsel %vm654, %v1541, 0
    %1548 = vmatprep.subr.bf16.mxu0 0
    %1549 = vmatpush1.bf16.msra.mxu0 %v1546
    %1550 = vmatprep.subr.bf16.mxu0 0
    %1551 = vmatpush1.bf16.msra.mxu0 0
    %1552 = vmatprep.subr.bf16.mxu0 0
    %1553 = vmatpush1.bf16.msra.mxu0 0
    %1554 = vmatprep.subr.bf16.mxu0 0
    %1555 = vmatpush1.bf16.msra.mxu0 0
    %1556 = vmatprep.subr.bf16.mxu0 0
    %1557 = vmatpush1.bf16.msra.mxu0 0
    %1558 = vmatprep.subr.bf16.mxu0 0
    %1559 = vmatpush1.bf16.msra.mxu0 0
    %1560 = vmatprep.subr.bf16.mxu0 0
    %1561 = vmatpush1.bf16.msra.mxu0 0
    %1562 = vmatprep.subr.bf16.mxu0 0
    %1563 = vmatpush1.bf16.msra.mxu0 0
    %1564 = vmatprep.subr.bf16.mxu0 0
    %1565 = vmatpush1.bf16.msra.mxu0 0
    %1566 = vmatprep.subr.bf16.mxu0 0
    %1567 = vmatpush1.bf16.msra.mxu0 0
    %1568 = vmatprep.subr.bf16.mxu0 0
    %1569 = vmatpush1.bf16.msra.mxu0 0
    %1570 = vmatprep.subr.bf16.mxu0 0
    %1571 = vmatpush1.bf16.msra.mxu0 0
    %1572 = vmatprep.subr.bf16.mxu0 0
    %1573 = vmatpush1.bf16.msra.mxu0 0
    %1574 = vmatprep.subr.bf16.mxu0 0
    %1575 = vmatpush1.bf16.msra.mxu0 0
    %1576 = vmatprep.subr.bf16.mxu0 0
    %1577 = vmatpush1.bf16.msra.mxu0 0
    %1578 = vmatprep.subr.bf16.mxu0 0
    %1579 = vmatpush1.bf16.msra.mxu0 0
    %1580 = vmatprep.mubr.bf16.mxu0 0
    %1581 = vmatmul.mubr.bf16.gmra.mrb[0].mxu0 %v1543
    %v1582 = vpop.f32.mrb[0].mxu0
    %v1583 = vadd.f32 0.0, %v1582
    %v1584 = vpop.f32.mrb[0].mxu0
    %v1585 = vpop.f32.mrb[0].mxu0
    %v1586 = vpop.f32.mrb[0].mxu0
    %1587 = vdwg.mxu0
    %1588 = vst.msk [vmem:[#allocation2] sm:$0xff] %vm526, %v1535
    %1589 = vst.msk [vmem:[#allocation2 + $0x8] sm:$0xff] %vm526, %v1583
    %1590 = vrot.lane.b32.xlu0 %v1366, 112
    %v1591 = vpop.permute.xlu0 %1590
    %1592 = vrot.lane.b32.xlu0 %v1366, 80
    %v1593 = vpop.permute.xlu0 %1592
    %v1595 = vsel %vm526, %v1591, 0
    %v1598 = vsel %vm526, %v1593, 0
    %1600 = vmatprep.subr.bf16.mxu0 0
    %1601 = vmatpush1.bf16.xpose.msra.mxu0 %v1598
    %1602 = vmatprep.subr.bf16.mxu0 0
    %1603 = vmatpush1.bf16.xpose.msra.mxu0 0
    %1604 = vmatprep.subr.bf16.mxu0 0
    %1605 = vmatpush1.bf16.xpose.msra.mxu0 0
    %1606 = vmatprep.subr.bf16.mxu0 0
    %1607 = vmatpush1.bf16.xpose.msra.mxu0 0
    %1608 = vmatprep.subr.bf16.mxu0 0
    %1609 = vmatpush1.bf16.xpose.msra.mxu0 0
    %1610 = vmatprep.subr.bf16.mxu0 0
    %1611 = vmatpush1.bf16.xpose.msra.mxu0 0
    %1612 = vmatprep.subr.bf16.mxu0 0
    %1613 = vmatpush1.bf16.xpose.msra.mxu0 0
    %1614 = vmatprep.subr.bf16.mxu0 0
    %1615 = vmatpush1.bf16.xpose.msra.mxu0 0
    %1616 = vmatprep.subr.bf16.mxu0 0
    %1617 = vmatpush1.bf16.xpose.msra.mxu0 0
    %1618 = vmatprep.subr.bf16.mxu0 0
    %1619 = vmatpush1.bf16.xpose.msra.mxu0 0
    %1620 = vmatprep.subr.bf16.mxu0 0
    %1621 = vmatpush1.bf16.xpose.msra.mxu0 0
    %1622 = vmatprep.subr.bf16.mxu0 0
    %1623 = vmatpush1.bf16.xpose.msra.mxu0 0
    %1624 = vmatprep.subr.bf16.mxu0 0
    %1625 = vmatpush1.bf16.xpose.msra.mxu0 0
    %1626 = vmatprep.subr.bf16.mxu0 0
    %1627 = vmatpush1.bf16.xpose.msra.mxu0 0
    %1628 = vmatprep.subr.bf16.mxu0 0
    %1629 = vmatpush1.bf16.xpose.msra.mxu0 0
    %1630 = vmatprep.subr.bf16.mxu0 0
    %1631 = vmatpush1.bf16.xpose.msra.mxu0 0
    %1632 = vmatprep.mubr.bf16.mxu0 0
    %1633 = vmatmul.mubr.bf16.gmra.mrb[0].mxu0 %v1595
    %v1634 = vpop.f32.mrb[0].mxu0
    %v1635 = vadd.f32 0.0, %v1634
    %v1636 = vpop.f32.mrb[0].mxu0
    %v1637 = vpop.f32.mrb[0].mxu0
    %v1638 = vpop.f32.mrb[0].mxu0
    %1639 = vdwg.mxu0
    %1640 = vrot.lane.b32.xlu0 %v1367, 112
    %v1641 = vpop.permute.xlu0 %1640
    %1642 = vrot.lane.b32.xlu0 %v1367, 80
    %v1643 = vpop.permute.xlu0 %1642
    %v1645 = vsel %vm526, %v1641, 0
    %v1648 = vsel %vm526, %v1643, 0
    %1650 = vmatprep.subr.bf16.mxu0 0
    %1651 = vmatpush1.bf16.xpose.msra.mxu0 %v1648
    %1652 = vmatprep.subr.bf16.mxu0 0
    %1653 = vmatpush1.bf16.xpose.msra.mxu0 0
    %1654 = vmatprep.subr.bf16.mxu0 0
    %1655 = vmatpush1.bf16.xpose.msra.mxu0 0
    %1656 = vmatprep.subr.bf16.mxu0 0
    %1657 = vmatpush1.bf16.xpose.msra.mxu0 0
    %1658 = vmatprep.subr.bf16.mxu0 0
    %1659 = vmatpush1.bf16.xpose.msra.mxu0 0
    %1660 = vmatprep.subr.bf16.mxu0 0
    %1661 = vmatpush1.bf16.xpose.msra.mxu0 0
    %1662 = vmatprep.subr.bf16.mxu0 0
    %1663 = vmatpush1.bf16.xpose.msra.mxu0 0
    %1664 = vmatprep.subr.bf16.mxu0 0
    %1665 = vmatpush1.bf16.xpose.msra.mxu0 0
    %1666 = vmatprep.subr.bf16.mxu0 0
    %1667 = vmatpush1.bf16.xpose.msra.mxu0 0
    %1668 = vmatprep.subr.bf16.mxu0 0
    %1669 = vmatpush1.bf16.xpose.msra.mxu0 0
    %1670 = vmatprep.subr.bf16.mxu0 0
    %1671 = vmatpush1.bf16.xpose.msra.mxu0 0
    %1672 = vmatprep.subr.bf16.mxu0 0
    %1673 = vmatpush1.bf16.xpose.msra.mxu0 0
    %1674 = vmatprep.subr.bf16.mxu0 0
    %1675 = vmatpush1.bf16.xpose.msra.mxu0 0
    %1676 = vmatprep.subr.bf16.mxu0 0
    %1677 = vmatpush1.bf16.xpose.msra.mxu0 0
    %1678 = vmatprep.subr.bf16.mxu0 0
    %1679 = vmatpush1.bf16.xpose.msra.mxu0 0
    %1680 = vmatprep.subr.bf16.mxu0 0
    %1681 = vmatpush1.bf16.xpose.msra.mxu0 0
    %1682 = vmatprep.mubr.bf16.mxu0 0
    %1683 = vmatmul.mubr.bf16.gmra.mrb[0].mxu0 %v1645
    %v1684 = vpop.f32.mrb[0].mxu0
    %v1685 = vadd.f32 0.0, %v1684
    %v1686 = vpop.f32.mrb[0].mxu0
    %v1687 = vpop.f32.mrb[0].mxu0
    %v1688 = vpop.f32.mrb[0].mxu0
    %1689 = vdwg.mxu0
    %v1690 = vmul.f32 %v1635, 0.25
    %v1691 = vmul.f32 %v1685, 0.25
    %v1692 = vsel %vm624, %v1690, -inf
    %1693 = vmax.xlane.f32.xlu0 %v1692
    %v1694 = vpop.xlane.xlu0 %1693
    %v1695 = vsel %vm624, %v1691, -inf
    %1696 = vmax.xlane.f32.xlu0 %v1695
    %v1697 = vpop.xlane.xlu0 %1696
    %v1698 = vsub.f32 %v1690, %v1694
    %v1699 = vsub.f32 %v1691, %v1697
    %v1700 = vmul.f32 %v1698, 1.442695
    %v1701 = vpow.pop %v1700
    %v1702 = vmul.f32 %v1699, 1.442695
    %v1703 = vpow.pop %v1702
    %v1704 = vsel %vm624, %v1701, 0.0
    %1705 = vadd.xlane.f32.xlu0 %v1704
    %v1706 = vpop.xlane.xlu0 %1705
    %v1707 = vsel %vm624, %v1703, 0.0
    %1708 = vadd.xlane.f32.xlu0 %v1707
    %v1709 = vpop.xlane.xlu0 %1708
    %v1710 = vrcp.pop %v1706
    %v1711 = vrcp.pop %v1709
    %v1712 = vmul.f32 %v1701, %v1710
    %v1713 = vmul.f32 %v1703, %v1711
    %v1714 = vpack.c.bf16 %v1712, %v1712
    %v1715 = vpack.c.bf16 %v1713, %v1713
    %1716 = vrot.lane.b32.xlu0 %v1366, 48
    %v1717 = vpop.permute.xlu0 %1716
    %v1719 = vsel %vm624, %v1714, 0
    %v1722 = vsel %vm654, %v1717, 0
    %1724 = vmatprep.subr.bf16.mxu0 0
    %1725 = vmatpush1.bf16.msra.mxu0 %v1722
    %1726 = vmatprep.subr.bf16.mxu0 0
    %1727 = vmatpush1.bf16.msra.mxu0 0
    %1728 = vmatprep.subr.bf16.mxu0 0
    %1729 = vmatpush1.bf16.msra.mxu0 0
    %1730 = vmatprep.subr.bf16.mxu0 0
    %1731 = vmatpush1.bf16.msra.mxu0 0
    %1732 = vmatprep.subr.bf16.mxu0 0
    %1733 = vmatpush1.bf16.msra.mxu0 0
    %1734 = vmatprep.subr.bf16.mxu0 0
    %1735 = vmatpush1.bf16.msra.mxu0 0
    %1736 = vmatprep.subr.bf16.mxu0 0
    %1737 = vmatpush1.bf16.msra.mxu0 0
    %1738 = vmatprep.subr.bf16.mxu0 0
    %1739 = vmatpush1.bf16.msra.mxu0 0
    %1740 = vmatprep.subr.bf16.mxu0 0
    %1741 = vmatpush1.bf16.msra.mxu0 0
    %1742 = vmatprep.subr.bf16.mxu0 0
    %1743 = vmatpush1.bf16.msra.mxu0 0
    %1744 = vmatprep.subr.bf16.mxu0 0
    %1745 = vmatpush1.bf16.msra.mxu0 0
    %1746 = vmatprep.subr.bf16.mxu0 0
    %1747 = vmatpush1.bf16.msra.mxu0 0
    %1748 = vmatprep.subr.bf16.mxu0 0
    %1749 = vmatpush1.bf16.msra.mxu0 0
    %1750 = vmatprep.subr.bf16.mxu0 0
    %1751 = vmatpush1.bf16.msra.mxu0 0
    %1752 = vmatprep.subr.bf16.mxu0 0
    %1753 = vmatpush1.bf16.msra.mxu0 0
    %1754 = vmatprep.subr.bf16.mxu0 0
    %1755 = vmatpush1.bf16.msra.mxu0 0
    %1756 = vmatprep.mubr.bf16.mxu0 0
    %1757 = vmatmul.mubr.bf16.gmra.mrb[0].mxu0 %v1719
    %v1758 = vpop.f32.mrb[0].mxu0
    %v1759 = vadd.f32 0.0, %v1758
    %v1760 = vpop.f32.mrb[0].mxu0
    %v1761 = vpop.f32.mrb[0].mxu0
    %v1762 = vpop.f32.mrb[0].mxu0
    %1763 = vdwg.mxu0
    %1764 = vrot.lane.b32.xlu0 %v1367, 48
    %v1765 = vpop.permute.xlu0 %1764
    %v1767 = vsel %vm624, %v1715, 0
    %v1770 = vsel %vm654, %v1765, 0
    %1772 = vmatprep.subr.bf16.mxu0 0
    %1773 = vmatpush1.bf16.msra.mxu0 %v1770
    %1774 = vmatprep.subr.bf16.mxu0 0
    %1775 = vmatpush1.bf16.msra.mxu0 0
    %1776 = vmatprep.subr.bf16.mxu0 0
    %1777 = vmatpush1.bf16.msra.mxu0 0
    %1778 = vmatprep.subr.bf16.mxu0 0
    %1779 = vmatpush1.bf16.msra.mxu0 0
    %1780 = vmatprep.subr.bf16.mxu0 0
    %1781 = vmatpush1.bf16.msra.mxu0 0
    %1782 = vmatprep.subr.bf16.mxu0 0
    %1783 = vmatpush1.bf16.msra.mxu0 0
    %1784 = vmatprep.subr.bf16.mxu0 0
    %1785 = vmatpush1.bf16.msra.mxu0 0
    %1786 = vmatprep.subr.bf16.mxu0 0
    %1787 = vmatpush1.bf16.msra.mxu0 0
    %1788 = vmatprep.subr.bf16.mxu0 0
    %1789 = vmatpush1.bf16.msra.mxu0 0
    %1790 = vmatprep.subr.bf16.mxu0 0
    %1791 = vmatpush1.bf16.msra.mxu0 0
    %1792 = vmatprep.subr.bf16.mxu0 0
    %1793 = vmatpush1.bf16.msra.mxu0 0
    %1794 = vmatprep.subr.bf16.mxu0 0
    %1795 = vmatpush1.bf16.msra.mxu0 0
    %1796 = vmatprep.subr.bf16.mxu0 0
    %1797 = vmatpush1.bf16.msra.mxu0 0
    %1798 = vmatprep.subr.bf16.mxu0 0
    %1799 = vmatpush1.bf16.msra.mxu0 0
    %1800 = vmatprep.subr.bf16.mxu0 0
    %1801 = vmatpush1.bf16.msra.mxu0 0
    %1802 = vmatprep.subr.bf16.mxu0 0
    %1803 = vmatpush1.bf16.msra.mxu0 0
    %1804 = vmatprep.mubr.bf16.mxu0 0
    %1805 = vmatmul.mubr.bf16.gmra.mrb[0].mxu0 %v1767
    %v1806 = vpop.f32.mrb[0].mxu0
    %v1807 = vadd.f32 0.0, %v1806
    %v1808 = vpop.f32.mrb[0].mxu0
    %v1809 = vpop.f32.mrb[0].mxu0
    %v1810 = vpop.f32.mrb[0].mxu0
    %1811 = vdwg.mxu0
    %1814 = vrot.lane.b32.xlu0 %v1759, 16
    %v1815 = vpop.permute.xlu0 %1814
    %1816 = vrot.lane.b32.xlu0 %v1807, 16
    %v1817 = vpop.permute.xlu0 %1816
    %1820 = vst.msk [vmem:[#allocation2] sm:$0xff] %vm978, %v1815
    %1821 = vst.msk [vmem:[#allocation2 + $0x8] sm:$0xff] %vm978, %v1817
    %v1822 = vld [vmem:[#allocation2] sm:$0xff]
    %v1823 = vld [vmem:[#allocation2 + $0x8] sm:$0xff]
    %v1824 = vpack.c.bf16 %v1823, %v1822
    %v1825 = vld [vmem:[%s39] sm:$0xf]
    %v1826 = vld [vmem:[%s39 + $0x4] sm:$0xf]
    %v1827 = vld [vmem:[%s39 + $0x8] sm:$0xf]
    %v1828 = vld [vmem:[%s39 + $0xc] sm:$0xf]
    %v1829 = vld [vmem:[#allocation17] sm:$0x1]
    %v1831 = vlaneseq
    %v1832 = vshrl.u32 %v1831, 7
    %v1833 = vsub.s32 0, %v1832
    %v1834 = vrot.slane %v1829, %v1833
    %v1840 = vunpack.c.l.b16 %v1825
    %v1841 = vunpack.c.l.b16 %v1826
    %v1842 = vunpack.c.l.b16 %v1827
    %v1843 = vunpack.c.l.b16 %v1828
    %v1844 = vpack.c.b16 %v1841, %v1840
    %v1845 = vpack.c.b16 %v1843, %v1842
    %v1849 = vsel %vm409, %v1824, 0
    %1851 = vmatprep.subr.bf16.mxu0 0
    %1852 = vmatpush1.bf16.msra.mxu0 %v1844
    %1853 = vmatprep.subr.bf16.mxu0 0
    %1854 = vmatpush1.bf16.msra.mxu0 %v1845
    %1855 = vmatprep.subr.bf16.mxu0 0
    %1856 = vmatpush1.bf16.msra.mxu0 0
    %1857 = vmatprep.subr.bf16.mxu0 0
    %1858 = vmatpush1.bf16.msra.mxu0 0
    %1859 = vmatprep.subr.bf16.mxu0 0
    %1860 = vmatpush1.bf16.msra.mxu0 0
    %1861 = vmatprep.subr.bf16.mxu0 0
    %1862 = vmatpush1.bf16.msra.mxu0 0
    %1863 = vmatprep.subr.bf16.mxu0 0
    %1864 = vmatpush1.bf16.msra.mxu0 0
    %1865 = vmatprep.subr.bf16.mxu0 0
    %1866 = vmatpush1.bf16.msra.mxu0 0
    %1867 = vmatprep.subr.bf16.mxu0 0
    %1868 = vmatpush1.bf16.msra.mxu0 0
    %1869 = vmatprep.subr.bf16.mxu0 0
    %1870 = vmatpush1.bf16.msra.mxu0 0
    %1871 = vmatprep.subr.bf16.mxu0 0
    %1872 = vmatpush1.bf16.msra.mxu0 0
    %1873 = vmatprep.subr.bf16.mxu0 0
    %1874 = vmatpush1.bf16.msra.mxu0 0
    %1875 = vmatprep.subr.bf16.mxu0 0
    %1876 = vmatpush1.bf16.msra.mxu0 0
    %1877 = vmatprep.subr.bf16.mxu0 0
    %1878 = vmatpush1.bf16.msra.mxu0 0
    %1879 = vmatprep.subr.bf16.mxu0 0
    %1880 = vmatpush1.bf16.msra.mxu0 0
    %1881 = vmatprep.subr.bf16.mxu0 0
    %1882 = vmatpush1.bf16.msra.mxu0 0
    %1883 = vmatprep.mubr.bf16.mxu0 0
    %1884 = vmatmul.mubr.bf16.gmra.mrb[0].mxu0 %v1849
    %v1885 = vpop.f32.mrb[0].mxu0
    %v1886 = vadd.f32 %v1834, %v1885
    %v1887 = vpop.f32.mrb[0].mxu0
    %v1888 = vpop.f32.mrb[0].mxu0
    %v1889 = vadd.f32 %v1834, %v1888
    %v1890 = vpop.f32.mrb[0].mxu0
    %1891 = vdwg.mxu0
    %v1892 = vadd.f32 %v1296, %v1886
    %v1893 = vadd.f32 %v1297, %v1889
    %v1894 = vld [vmem:[#allocation22] sm:$0x1]
    %v1895 = vld [vmem:[#allocation23] sm:$0x1]
    %v1896 = vsel %vm409, %v1892, 0.0
    %1897 = vadd.xlane.f32.xlu0 %v1896
    %v1898 = vpop.xlane.xlu0 %1897
    %v1899 = vsel %vm409, %v1893, 0.0
    %1900 = vadd.xlane.f32.xlu0 %v1899
    %v1901 = vpop.xlane.xlu0 %1900
    %v1902 = vmul.f32 %v1898, %v416
    %v1903 = vmul.f32 %v1901, %v416
    %v1904 = vsub.f32 %v1892, %v1902
    %v1905 = vsub.f32 %v1893, %v1903
    %v1906 = vmul.f32 %v1904, %v1904
    %v1907 = vmul.f32 %v1905, %v1905
    %v1908 = vsel %vm409, %v1906, 0.0
    %1909 = vadd.xlane.f32.xlu0 %v1908
    %v1910 = vpop.xlane.xlu0 %1909
    %v1911 = vsel %vm409, %v1907, 0.0
    %1912 = vadd.xlane.f32.xlu0 %v1911
    %v1913 = vpop.xlane.xlu0 %1912
    %v1914 = vmul.f32 %v1910, %v416
    %v1915 = vmul.f32 %v1913, %v416
    %v1916 = vadd.f32 %v1914, 1e-05
    %v1917 = vadd.f32 %v1915, 1e-05
    %v1918 = vrsqrt.pop %v1916
    %v1919 = vrsqrt.pop %v1917
    %v1920 = vmul.f32 %v1904, %v1918
    %v1921 = vmul.f32 %v1905, %v1919
    %v1923 = vlaneseq
    %v1924 = vshrl.u32 %v1923, 7
    %v1925 = vsub.s32 0, %v1924
    %v1926 = vrot.slane %v1894, %v1925
    %v1928 = vmul.f32 %v1920, %v1926
    %v1929 = vmul.f32 %v1921, %v1926
    %v1931 = vlaneseq
    %v1932 = vshrl.u32 %v1931, 7
    %v1933 = vsub.s32 0, %v1932
    %v1934 = vrot.slane %v1895, %v1933
    %v1936 = vadd.f32 %v1928, %v1934
    %v1937 = vadd.f32 %v1929, %v1934
    %v1938 = vpack.c.bf16 %v1937, %v1936
    %v1939 = vld [vmem:[%s43] sm:$0xf]
    %v1940 = vld [vmem:[%s43 + $0x4] sm:$0xf]
    %v1941 = vld [vmem:[%s43 + $0x8] sm:$0xf]
    %v1942 = vld [vmem:[%s43 + $0xc] sm:$0xf]
    %v1943 = vld [vmem:[#allocation19] sm:$0x1]
    %v1945 = vlaneseq
    %v1946 = vshrl.u32 %v1945, 7
    %v1947 = vsub.s32 0, %v1946
    %v1948 = vrot.slane %v1943, %v1947
    %v1954 = vunpack.c.l.b16 %v1939
    %v1955 = vunpack.c.l.b16 %v1940
    %v1956 = vunpack.c.l.b16 %v1941
    %v1957 = vunpack.c.l.b16 %v1942
    %v1958 = vpack.c.b16 %v1955, %v1954
    %v1959 = vpack.c.b16 %v1957, %v1956
    %v1963 = vsel %vm409, %v1938, 0
    %1965 = vmatprep.subr.bf16.mxu0 0
    %1966 = vmatpush1.bf16.msra.mxu0 %v1958
    %1967 = vmatprep.subr.bf16.mxu0 0
    %1968 = vmatpush1.bf16.msra.mxu0 %v1959
    %1969 = vmatprep.subr.bf16.mxu0 0
    %1970 = vmatpush1.bf16.msra.mxu0 0
    %1971 = vmatprep.subr.bf16.mxu0 0
    %1972 = vmatpush1.bf16.msra.mxu0 0
    %1973 = vmatprep.subr.bf16.mxu0 0
    %1974 = vmatpush1.bf16.msra.mxu0 0
    %1975 = vmatprep.subr.bf16.mxu0 0
    %1976 = vmatpush1.bf16.msra.mxu0 0
    %1977 = vmatprep.subr.bf16.mxu0 0
    %1978 = vmatpush1.bf16.msra.mxu0 0
    %1979 = vmatprep.subr.bf16.mxu0 0
    %1980 = vmatpush1.bf16.msra.mxu0 0
    %1981 = vmatprep.subr.bf16.mxu0 0
    %1982 = vmatpush1.bf16.msra.mxu0 0
    %1983 = vmatprep.subr.bf16.mxu0 0
    %1984 = vmatpush1.bf16.msra.mxu0 0
    %1985 = vmatprep.subr.bf16.mxu0 0
    %1986 = vmatpush1.bf16.msra.mxu0 0
    %1987 = vmatprep.subr.bf16.mxu0 0
    %1988 = vmatpush1.bf16.msra.mxu0 0
    %1989 = vmatprep.subr.bf16.mxu0 0
    %1990 = vmatpush1.bf16.msra.mxu0 0
    %1991 = vmatprep.subr.bf16.mxu0 0
    %1992 = vmatpush1.bf16.msra.mxu0 0
    %1993 = vmatprep.subr.bf16.mxu0 0
    %1994 = vmatpush1.bf16.msra.mxu0 0
    %1995 = vmatprep.subr.bf16.mxu0 0
    %1996 = vmatpush1.bf16.msra.mxu0 0
    %1997 = vmatprep.mubr.bf16.mxu0 0
    %1998 = vmatmul.mubr.bf16.gmra.mrb[0].mxu0 %v1963
    %v1999 = vpop.f32.mrb[0].mxu0
    %v2000 = vadd.f32 %v1948, %v1999
    %v2001 = vpop.f32.mrb[0].mxu0
    %v2002 = vpop.f32.mrb[0].mxu0
    %v2003 = vadd.f32 %v1948, %v2002
    %v2004 = vpop.f32.mrb[0].mxu0
    %2005 = vdwg.mxu0
    %v2006 = vmax.f32 %v2000, 0.0
    %v2007 = vmax.f32 %v2003, 0.0
    %v2008 = vpack.c.bf16 %v2007, %v2006
    %v2009 = vld [vmem:[%s47] sm:$0xf]
    %v2010 = vld [vmem:[%s47 + $0x4] sm:$0xf]
    %v2011 = vld [vmem:[%s47 + $0x8] sm:$0xf]
    %v2012 = vld [vmem:[%s47 + $0xc] sm:$0xf]
    %v2013 = vld [vmem:[%s47 + $0x10] sm:$0xf]
    %v2014 = vld [vmem:[%s47 + $0x14] sm:$0xf]
    %v2015 = vld [vmem:[%s47 + $0x18] sm:$0xf]
    %v2016 = vld [vmem:[%s47 + $0x1c] sm:$0xf]
    %v2017 = vld [vmem:[#allocation20] sm:$0x1]
    %v2019 = vlaneseq
    %v2020 = vshrl.u32 %v2019, 7
    %v2021 = vsub.s32 0, %v2020
    %v2022 = vrot.slane %v2017, %v2021
    %v2032 = vunpack.c.l.b16 %v2009
    %v2033 = vunpack.c.l.b16 %v2010
    %v2034 = vunpack.c.l.b16 %v2011
    %v2035 = vunpack.c.l.b16 %v2012
    %v2036 = vunpack.c.l.b16 %v2013
    %v2037 = vunpack.c.l.b16 %v2014
    %v2038 = vunpack.c.l.b16 %v2015
    %v2039 = vunpack.c.l.b16 %v2016
    %v2040 = vpack.c.b16 %v2033, %v2032
    %v2041 = vpack.c.b16 %v2035, %v2034
    %v2042 = vpack.c.b16 %v2037, %v2036
    %v2043 = vpack.c.b16 %v2039, %v2038
    %v2049 = vsel %vm1207, %v2008, 0
    %2051 = vmatprep.subr.bf16.mxu0 0
    %2052 = vmatpush1.bf16.msra.mxu0 %v2040
    %2053 = vmatprep.subr.bf16.mxu0 0
    %2054 = vmatpush1.bf16.msra.mxu0 %v2041
    %2055 = vmatprep.subr.bf16.mxu0 0
    %2056 = vmatpush1.bf16.msra.mxu0 %v2042
    %2057 = vmatprep.subr.bf16.mxu0 0
    %2058 = vmatpush1.bf16.msra.mxu0 %v2043
    %2059 = vmatprep.subr.bf16.mxu0 0
    %2060 = vmatpush1.bf16.msra.mxu0 0
    %2061 = vmatprep.subr.bf16.mxu0 0
    %2062 = vmatpush1.bf16.msra.mxu0 0
    %2063 = vmatprep.subr.bf16.mxu0 0
    %2064 = vmatpush1.bf16.msra.mxu0 0
    %2065 = vmatprep.subr.bf16.mxu0 0
    %2066 = vmatpush1.bf16.msra.mxu0 0
    %2067 = vmatprep.subr.bf16.mxu0 0
    %2068 = vmatpush1.bf16.msra.mxu0 0
    %2069 = vmatprep.subr.bf16.mxu0 0
    %2070 = vmatpush1.bf16.msra.mxu0 0
    %2071 = vmatprep.subr.bf16.mxu0 0
    %2072 = vmatpush1.bf16.msra.mxu0 0
    %2073 = vmatprep.subr.bf16.mxu0 0
    %2074 = vmatpush1.bf16.msra.mxu0 0
    %2075 = vmatprep.subr.bf16.mxu0 0
    %2076 = vmatpush1.bf16.msra.mxu0 0
    %2077 = vmatprep.subr.bf16.mxu0 0
    %2078 = vmatpush1.bf16.msra.mxu0 0
    %2079 = vmatprep.subr.bf16.mxu0 0
    %2080 = vmatpush1.bf16.msra.mxu0 0
    %2081 = vmatprep.subr.bf16.mxu0 0
    %2082 = vmatpush1.bf16.msra.mxu0 0
    %2083 = vmatprep.mubr.bf16.mxu0 0
    %2084 = vmatmul.mubr.bf16.gmra.mrb[0].mxu0 %v2049
    %v2085 = vpop.f32.mrb[0].mxu0
    %v2086 = vadd.f32 %v2022, %v2085
    %v2087 = vpop.f32.mrb[0].mxu0
    %v2088 = vpop.f32.mrb[0].mxu0
    %v2089 = vadd.f32 %v2022, %v2088
    %v2090 = vpop.f32.mrb[0].mxu0
    %2091 = vdwg.mxu0
    %v2092 = vadd.f32 %v1936, %v2086
    %v2093 = vadd.f32 %v1937, %v2089
    %v2094 = vld [vmem:[#allocation25] sm:$0x1]
    %v2095 = vld [vmem:[#allocation26] sm:$0x1]
    %v2096 = vsel %vm409, %v2092, 0.0
    %2097 = vadd.xlane.f32.xlu0 %v2096
    %v2098 = vpop.xlane.xlu0 %2097
    %v2099 = vsel %vm409, %v2093, 0.0
    %2100 = vadd.xlane.f32.xlu0 %v2099
    %v2101 = vpop.xlane.xlu0 %2100
    %v2102 = vmul.f32 %v2098, %v416
    %v2103 = vmul.f32 %v2101, %v416
    %v2104 = vsub.f32 %v2092, %v2102
    %v2105 = vsub.f32 %v2093, %v2103
    %v2106 = vmul.f32 %v2104, %v2104
    %v2107 = vmul.f32 %v2105, %v2105
    %v2108 = vsel %vm409, %v2106, 0.0
    %2109 = vadd.xlane.f32.xlu0 %v2108
    %v2110 = vpop.xlane.xlu0 %2109
    %v2111 = vsel %vm409, %v2107, 0.0
    %2112 = vadd.xlane.f32.xlu0 %v2111
    %v2113 = vpop.xlane.xlu0 %2112
    %v2114 = vmul.f32 %v2110, %v416
    %v2115 = vmul.f32 %v2113, %v416
    %v2116 = vadd.f32 %v2114, 1e-05
    %v2117 = vadd.f32 %v2115, 1e-05
    %v2118 = vrsqrt.pop %v2116
    %v2119 = vrsqrt.pop %v2117
    %v2120 = vmul.f32 %v2104, %v2118
    %v2121 = vmul.f32 %v2105, %v2119
    %v2123 = vlaneseq
    %v2124 = vshrl.u32 %v2123, 7
    %v2125 = vsub.s32 0, %v2124
    %v2126 = vrot.slane %v2094, %v2125
    %v2128 = vmul.f32 %v2120, %v2126
    %v2129 = vmul.f32 %v2121, %v2126
    %v2131 = vlaneseq
    %v2132 = vshrl.u32 %v2131, 7
    %v2133 = vsub.s32 0, %v2132
    %v2134 = vrot.slane %v2095, %v2133
    %v2136 = vadd.f32 %v2128, %v2134
    %v2137 = vadd.f32 %v2129, %v2134
    %v2138 = vpack.c.bf16 %v2136, %v2136
    %v2139 = vpack.c.bf16 %v2137, %v2137
    %v2140 = vld [vmem:[%s59] sm:$0xf]
    %v2141 = vld [vmem:[%s59 + $0x4] sm:$0xf]
    %v2142 = vld [vmem:[%s59 + $0x8] sm:$0xf]
    %v2143 = vld [vmem:[%s59 + $0xc] sm:$0xf]
    %s2144 = scalar_lea.vmem %s59, 16
    %v2145 = vld [vmem:[%s2144] sm:$0xf]
    %v2146 = vld [vmem:[%s2144 + $0x4] sm:$0xf]
    %v2147 = vld [vmem:[%s2144 + $0x8] sm:$0xf]
    %v2148 = vld [vmem:[%s2144 + $0xc] sm:$0xf]
    %v2151 = vunpack.c.l.b16 %v2138
    %v2152 = vunpack.c.l.b16 %v2139
    %v2153 = vrot.slane %v2151, 1
    %vm2154 = vcmask 1041409
    %v2155 = vsel %vm2154, %v2152, %v2153
    %v2156 = vpack.c.b16 %v2155, %v2155
    %v2161 = vunpack.c.l.b16 %v2145
    %v2162 = vunpack.c.l.b16 %v2146
    %v2163 = vunpack.c.l.b16 %v2147
    %v2164 = vunpack.c.l.b16 %v2148
    %v2165 = vpack.c.b16 %v2162, %v2161
    %v2166 = vpack.c.b16 %v2164, %v2163
    %v2170 = vsel %vm409, %v2156, 0
    %2172 = vmatprep.subr.bf16.mxu0 0
    %2173 = vmatpush1.bf16.msra.mxu0 %v2165
    %2174 = vmatprep.subr.bf16.mxu0 0
    %2175 = vmatpush1.bf16.msra.mxu0 %v2166
    %2176 = vmatprep.subr.bf16.mxu0 0
    %2177 = vmatpush1.bf16.msra.mxu0 0
    %2178 = vmatprep.subr.bf16.mxu0 0
    %2179 = vmatpush1.bf16.msra.mxu0 0
    %2180 = vmatprep.subr.bf16.mxu0 0
    %2181 = vmatpush1.bf16.msra.mxu0 0
    %2182 = vmatprep.subr.bf16.mxu0 0
    %2183 = vmatpush1.bf16.msra.mxu0 0
    %2184 = vmatprep.subr.bf16.mxu0 0
    %2185 = vmatpush1.bf16.msra.mxu0 0
    %2186 = vmatprep.subr.bf16.mxu0 0
    %2187 = vmatpush1.bf16.msra.mxu0 0
    %2188 = vmatprep.subr.bf16.mxu0 0
    %2189 = vmatpush1.bf16.msra.mxu0 0
    %2190 = vmatprep.subr.bf16.mxu0 0
    %2191 = vmatpush1.bf16.msra.mxu0 0
    %2192 = vmatprep.subr.bf16.mxu0 0
    %2193 = vmatpush1.bf16.msra.mxu0 0
    %2194 = vmatprep.subr.bf16.mxu0 0
    %2195 = vmatpush1.bf16.msra.mxu0 0
    %2196 = vmatprep.subr.bf16.mxu0 0
    %2197 = vmatpush1.bf16.msra.mxu0 0
    %2198 = vmatprep.subr.bf16.mxu0 0
    %2199 = vmatpush1.bf16.msra.mxu0 0
    %2200 = vmatprep.subr.bf16.mxu0 0
    %2201 = vmatpush1.bf16.msra.mxu0 0
    %2202 = vmatprep.subr.bf16.mxu0 0
    %2203 = vmatpush1.bf16.msra.mxu0 0
    %2204 = vmatprep.mubr.bf16.mxu0 0
    %2205 = vmatmul.mubr.bf16.gmra.mrb[0].mxu0 %v2170
    %v2206 = vpop.f32.mrb[0].mxu0
    %v2207 = vadd.f32 0.0, %v2206
    %v2208 = vpop.f32.mrb[0].mxu0
    %v2209 = vpop.f32.mrb[0].mxu0
    %v2210 = vpop.f32.mrb[0].mxu0
    %2211 = vdwg.mxu0
    %v2212 = vrot.slane %v2152, 7
    %v2213 = vsel %vm2154, %v2212, %v2151
    %v2214 = vpack.c.b16 %v2213, %v2213
    %v2219 = vunpack.c.l.b16 %v2140
    %v2220 = vunpack.c.l.b16 %v2141
    %v2221 = vunpack.c.l.b16 %v2142
    %v2222 = vunpack.c.l.b16 %v2143
    %v2223 = vpack.c.b16 %v2220, %v2219
    %v2224 = vpack.c.b16 %v2222, %v2221
    %v2228 = vsel %vm409, %v2214, 0
    %2230 = vmatprep.subr.bf16.mxu0 0
    %2231 = vmatpush1.bf16.msra.mxu0 %v2223
    %2232 = vmatprep.subr.bf16.mxu0 0
    %2233 = vmatpush1.bf16.msra.mxu0 %v2224
    %2234 = vmatprep.subr.bf16.mxu0 0
    %2235 = vmatpush1.bf16.msra.mxu0 0
    %2236 = vmatprep.subr.bf16.mxu0 0
    %2237 = vmatpush1.bf16.msra.mxu0 0
    %2238 = vmatprep.subr.bf16.mxu0 0
    %2239 = vmatpush1.bf16.msra.mxu0 0
    %2240 = vmatprep.subr.bf16.mxu0 0
    %2241 = vmatpush1.bf16.msra.mxu0 0
    %2242 = vmatprep.subr.bf16.mxu0 0
    %2243 = vmatpush1.bf16.msra.mxu0 0
    %2244 = vmatprep.subr.bf16.mxu0 0
    %2245 = vmatpush1.bf16.msra.mxu0 0
    %2246 = vmatprep.subr.bf16.mxu0 0
    %2247 = vmatpush1.bf16.msra.mxu0 0
    %2248 = vmatprep.subr.bf16.mxu0 0
    %2249 = vmatpush1.bf16.msra.mxu0 0
    %2250 = vmatprep.subr.bf16.mxu0 0
    %2251 = vmatpush1.bf16.msra.mxu0 0
    %2252 = vmatprep.subr.bf16.mxu0 0
    %2253 = vmatpush1.bf16.msra.mxu0 0
    %2254 = vmatprep.subr.bf16.mxu0 0
    %2255 = vmatpush1.bf16.msra.mxu0 0
    %2256 = vmatprep.subr.bf16.mxu0 0
    %2257 = vmatpush1.bf16.msra.mxu0 0
    %2258 = vmatprep.subr.bf16.mxu0 0
    %2259 = vmatpush1.bf16.msra.mxu0 0
    %2260 = vmatprep.subr.bf16.mxu0 0
    %2261 = vmatpush1.bf16.msra.mxu0 0
    %2262 = vmatprep.mubr.bf16.mxu0 0
    %2263 = vmatmul.mubr.bf16.gmra.mrb[0].mxu0 %v2228
    %v2264 = vpop.f32.mrb[0].mxu0
    %v2265 = vadd.f32 %v2207, %v2264
    %v2266 = vpop.f32.mrb[0].mxu0
    %v2267 = vpop.f32.mrb[0].mxu0
    %v2268 = vpop.f32.mrb[0].mxu0
    %2269 = vdwg.mxu0
    %s2270 = scalar_lea.vmem %s59, 32
    %v2271 = vld [vmem:[%s2270] sm:$0xf]
    %v2272 = vld [vmem:[%s2270 + $0x4] sm:$0xf]
    %v2273 = vld [vmem:[%s2270 + $0x8] sm:$0xf]
    %v2274 = vld [vmem:[%s2270 + $0xc] sm:$0xf]
    %v2275 = vrot.slane %v2151, 2
    %v2276 = vrot.slane %v2152, 1
    %v2277 = vsel %vm2154, %v2276, %v2275
    %v2278 = vpack.c.b16 %v2277, %v2277
    %v2283 = vunpack.c.l.b16 %v2271
    %v2284 = vunpack.c.l.b16 %v2272
    %v2285 = vunpack.c.l.b16 %v2273
    %v2286 = vunpack.c.l.b16 %v2274
    %v2287 = vpack.c.b16 %v2284, %v2283
    %v2288 = vpack.c.b16 %v2286, %v2285
    %v2292 = vsel %vm409, %v2278, 0
    %2294 = vmatprep.subr.bf16.mxu0 0
    %2295 = vmatpush1.bf16.msra.mxu0 %v2287
    %2296 = vmatprep.subr.bf16.mxu0 0
    %2297 = vmatpush1.bf16.msra.mxu0 %v2288
    %2298 = vmatprep.subr.bf16.mxu0 0
    %2299 = vmatpush1.bf16.msra.mxu0 0
    %2300 = vmatprep.subr.bf16.mxu0 0
    %2301 = vmatpush1.bf16.msra.mxu0 0
    %2302 = vmatprep.subr.bf16.mxu0 0
    %2303 = vmatpush1.bf16.msra.mxu0 0
    %2304 = vmatprep.subr.bf16.mxu0 0
    %2305 = vmatpush1.bf16.msra.mxu0 0
    %2306 = vmatprep.subr.bf16.mxu0 0
    %2307 = vmatpush1.bf16.msra.mxu0 0
    %2308 = vmatprep.subr.bf16.mxu0 0
    %2309 = vmatpush1.bf16.msra.mxu0 0
    %2310 = vmatprep.subr.bf16.mxu0 0
    %2311 = vmatpush1.bf16.msra.mxu0 0
    %2312 = vmatprep.subr.bf16.mxu0 0
    %2313 = vmatpush1.bf16.msra.mxu0 0
    %2314 = vmatprep.subr.bf16.mxu0 0
    %2315 = vmatpush1.bf16.msra.mxu0 0
    %2316 = vmatprep.subr.bf16.mxu0 0
    %2317 = vmatpush1.bf16.msra.mxu0 0
    %2318 = vmatprep.subr.bf16.mxu0 0
    %2319 = vmatpush1.bf16.msra.mxu0 0
    %2320 = vmatprep.subr.bf16.mxu0 0
    %2321 = vmatpush1.bf16.msra.mxu0 0
    %2322 = vmatprep.subr.bf16.mxu0 0
    %2323 = vmatpush1.bf16.msra.mxu0 0
    %2324 = vmatprep.subr.bf16.mxu0 0
    %2325 = vmatpush1.bf16.msra.mxu0 0
    %2326 = vmatprep.mubr.bf16.mxu0 0
    %2327 = vmatmul.mubr.bf16.gmra.mrb[0].mxu0 %v2292
    %v2328 = vpop.f32.mrb[0].mxu0
    %v2329 = vadd.f32 0.0, %v2328
    %v2330 = vpop.f32.mrb[0].mxu0
    %v2331 = vpop.f32.mrb[0].mxu0
    %v2332 = vpop.f32.mrb[0].mxu0
    %2333 = vdwg.mxu0
    %v2334 = vadd.f32 %v2265, %v2329
    %s2335 = scalar_lea.vmem %s59, 48
    %v2336 = vld [vmem:[%s2335] sm:$0xf]
    %v2337 = vld [vmem:[%s2335 + $0x4] sm:$0xf]
    %v2338 = vld [vmem:[%s2335 + $0x8] sm:$0xf]
    %v2339 = vld [vmem:[%s2335 + $0xc] sm:$0xf]
    %v2340 = vrot.slane %v2151, 3
    %v2341 = vrot.slane %v2152, 2
    %v2342 = vsel %vm2154, %v2341, %v2340
    %v2343 = vpack.c.b16 %v2342, %v2342
    %v2348 = vunpack.c.l.b16 %v2336
    %v2349 = vunpack.c.l.b16 %v2337
    %v2350 = vunpack.c.l.b16 %v2338
    %v2351 = vunpack.c.l.b16 %v2339
    %v2352 = vpack.c.b16 %v2349, %v2348
    %v2353 = vpack.c.b16 %v2351, %v2350
    %v2357 = vsel %vm409, %v2343, 0
    %2359 = vmatprep.subr.bf16.mxu0 0
    %2360 = vmatpush1.bf16.msra.mxu0 %v2352
    %2361 = vmatprep.subr.bf16.mxu0 0
    %2362 = vmatpush1.bf16.msra.mxu0 %v2353
    %2363 = vmatprep.subr.bf16.mxu0 0
    %2364 = vmatpush1.bf16.msra.mxu0 0
    %2365 = vmatprep.subr.bf16.mxu0 0
    %2366 = vmatpush1.bf16.msra.mxu0 0
    %2367 = vmatprep.subr.bf16.mxu0 0
    %2368 = vmatpush1.bf16.msra.mxu0 0
    %2369 = vmatprep.subr.bf16.mxu0 0
    %2370 = vmatpush1.bf16.msra.mxu0 0
    %2371 = vmatprep.subr.bf16.mxu0 0
    %2372 = vmatpush1.bf16.msra.mxu0 0
    %2373 = vmatprep.subr.bf16.mxu0 0
    %2374 = vmatpush1.bf16.msra.mxu0 0
    %2375 = vmatprep.subr.bf16.mxu0 0
    %2376 = vmatpush1.bf16.msra.mxu0 0
    %2377 = vmatprep.subr.bf16.mxu0 0
    %2378 = vmatpush1.bf16.msra.mxu0 0
    %2379 = vmatprep.subr.bf16.mxu0 0
    %2380 = vmatpush1.bf16.msra.mxu0 0
    %2381 = vmatprep.subr.bf16.mxu0 0
    %2382 = vmatpush1.bf16.msra.mxu0 0
    %2383 = vmatprep.subr.bf16.mxu0 0
    %2384 = vmatpush1.bf16.msra.mxu0 0
    %2385 = vmatprep.subr.bf16.mxu0 0
    %2386 = vmatpush1.bf16.msra.mxu0 0
    %2387 = vmatprep.subr.bf16.mxu0 0
    %2388 = vmatpush1.bf16.msra.mxu0 0
    %2389 = vmatprep.subr.bf16.mxu0 0
    %2390 = vmatpush1.bf16.msra.mxu0 0
    %2391 = vmatprep.mubr.bf16.mxu0 0
    %2392 = vmatmul.mubr.bf16.gmra.mrb[0].mxu0 %v2357
    %v2393 = vpop.f32.mrb[0].mxu0
    %v2394 = vadd.f32 0.0, %v2393
    %v2395 = vpop.f32.mrb[0].mxu0
    %v2396 = vpop.f32.mrb[0].mxu0
    %v2397 = vpop.f32.mrb[0].mxu0
    %2398 = vdwg.mxu0
    %v2399 = vadd.f32 %v2334, %v2394
    %s2400 = scalar_lea.vmem %s59, 64
    %v2401 = vld [vmem:[%s2400] sm:$0xf]
    %v2402 = vld [vmem:[%s2400 + $0x4] sm:$0xf]
    %v2403 = vld [vmem:[%s2400 + $0x8] sm:$0xf]
    %v2404 = vld [vmem:[%s2400 + $0xc] sm:$0xf]
    %v2405 = vrot.slane %v2151, 4
    %v2406 = vrot.slane %v2152, 3
    %v2407 = vsel %vm2154, %v2406, %v2405
    %v2408 = vpack.c.b16 %v2407, %v2407
    %v2413 = vunpack.c.l.b16 %v2401
    %v2414 = vunpack.c.l.b16 %v2402
    %v2415 = vunpack.c.l.b16 %v2403
    %v2416 = vunpack.c.l.b16 %v2404
    %v2417 = vpack.c.b16 %v2414, %v2413
    %v2418 = vpack.c.b16 %v2416, %v2415
    %v2422 = vsel %vm409, %v2408, 0
    %2424 = vmatprep.subr.bf16.mxu0 0
    %2425 = vmatpush1.bf16.msra.mxu0 %v2417
    %2426 = vmatprep.subr.bf16.mxu0 0
    %2427 = vmatpush1.bf16.msra.mxu0 %v2418
    %2428 = vmatprep.subr.bf16.mxu0 0
    %2429 = vmatpush1.bf16.msra.mxu0 0
    %2430 = vmatprep.subr.bf16.mxu0 0
    %2431 = vmatpush1.bf16.msra.mxu0 0
    %2432 = vmatprep.subr.bf16.mxu0 0
    %2433 = vmatpush1.bf16.msra.mxu0 0
    %2434 = vmatprep.subr.bf16.mxu0 0
    %2435 = vmatpush1.bf16.msra.mxu0 0
    %2436 = vmatprep.subr.bf16.mxu0 0
    %2437 = vmatpush1.bf16.msra.mxu0 0
    %2438 = vmatprep.subr.bf16.mxu0 0
    %2439 = vmatpush1.bf16.msra.mxu0 0
    %2440 = vmatprep.subr.bf16.mxu0 0
    %2441 = vmatpush1.bf16.msra.mxu0 0
    %2442 = vmatprep.subr.bf16.mxu0 0
    %2443 = vmatpush1.bf16.msra.mxu0 0
    %2444 = vmatprep.subr.bf16.mxu0 0
    %2445 = vmatpush1.bf16.msra.mxu0 0
    %2446 = vmatprep.subr.bf16.mxu0 0
    %2447 = vmatpush1.bf16.msra.mxu0 0
    %2448 = vmatprep.subr.bf16.mxu0 0
    %2449 = vmatpush1.bf16.msra.mxu0 0
    %2450 = vmatprep.subr.bf16.mxu0 0
    %2451 = vmatpush1.bf16.msra.mxu0 0
    %2452 = vmatprep.subr.bf16.mxu0 0
    %2453 = vmatpush1.bf16.msra.mxu0 0
    %2454 = vmatprep.subr.bf16.mxu0 0
    %2455 = vmatpush1.bf16.msra.mxu0 0
    %2456 = vmatprep.mubr.bf16.mxu0 0
    %2457 = vmatmul.mubr.bf16.gmra.mrb[0].mxu0 %v2422
    %v2458 = vpop.f32.mrb[0].mxu0
    %v2459 = vadd.f32 0.0, %v2458
    %v2460 = vpop.f32.mrb[0].mxu0
    %v2461 = vpop.f32.mrb[0].mxu0
    %v2462 = vpop.f32.mrb[0].mxu0
    %2463 = vdwg.mxu0
    %v2464 = vadd.f32 %v2399, %v2459
    %s2465 = scalar_lea.vmem %s59, 80
    %v2466 = vld [vmem:[%s2465] sm:$0xf]
    %v2467 = vld [vmem:[%s2465 + $0x4] sm:$0xf]
    %v2468 = vld [vmem:[%s2465 + $0x8] sm:$0xf]
    %v2469 = vld [vmem:[%s2465 + $0xc] sm:$0xf]
    %v2470 = vrot.slane %v2151, 5
    %v2471 = vrot.slane %v2152, 4
    %v2472 = vsel %vm2154, %v2471, %v2470
    %v2473 = vpack.c.b16 %v2472, %v2472
    %v2478 = vunpack.c.l.b16 %v2466
    %v2479 = vunpack.c.l.b16 %v2467
    %v2480 = vunpack.c.l.b16 %v2468
    %v2481 = vunpack.c.l.b16 %v2469
    %v2482 = vpack.c.b16 %v2479, %v2478
    %v2483 = vpack.c.b16 %v2481, %v2480
    %v2487 = vsel %vm409, %v2473, 0
    %2489 = vmatprep.subr.bf16.mxu0 0
    %2490 = vmatpush1.bf16.msra.mxu0 %v2482
    %2491 = vmatprep.subr.bf16.mxu0 0
    %2492 = vmatpush1.bf16.msra.mxu0 %v2483
    %2493 = vmatprep.subr.bf16.mxu0 0
    %2494 = vmatpush1.bf16.msra.mxu0 0
    %2495 = vmatprep.subr.bf16.mxu0 0
    %2496 = vmatpush1.bf16.msra.mxu0 0
    %2497 = vmatprep.subr.bf16.mxu0 0
    %2498 = vmatpush1.bf16.msra.mxu0 0
    %2499 = vmatprep.subr.bf16.mxu0 0
    %2500 = vmatpush1.bf16.msra.mxu0 0
    %2501 = vmatprep.subr.bf16.mxu0 0
    %2502 = vmatpush1.bf16.msra.mxu0 0
    %2503 = vmatprep.subr.bf16.mxu0 0
    %2504 = vmatpush1.bf16.msra.mxu0 0
    %2505 = vmatprep.subr.bf16.mxu0 0
    %2506 = vmatpush1.bf16.msra.mxu0 0
    %2507 = vmatprep.subr.bf16.mxu0 0
    %2508 = vmatpush1.bf16.msra.mxu0 0
    %2509 = vmatprep.subr.bf16.mxu0 0
    %2510 = vmatpush1.bf16.msra.mxu0 0
    %2511 = vmatprep.subr.bf16.mxu0 0
    %2512 = vmatpush1.bf16.msra.mxu0 0
    %2513 = vmatprep.subr.bf16.mxu0 0
    %2514 = vmatpush1.bf16.msra.mxu0 0
    %2515 = vmatprep.subr.bf16.mxu0 0
    %2516 = vmatpush1.bf16.msra.mxu0 0
    %2517 = vmatprep.subr.bf16.mxu0 0
    %2518 = vmatpush1.bf16.msra.mxu0 0
    %2519 = vmatprep.subr.bf16.mxu0 0
    %2520 = vmatpush1.bf16.msra.mxu0 0
    %2521 = vmatprep.mubr.bf16.mxu0 0
    %2522 = vmatmul.mubr.bf16.gmra.mrb[0].mxu0 %v2487
    %v2523 = vpop.f32.mrb[0].mxu0
    %v2524 = vadd.f32 0.0, %v2523
    %v2525 = vpop.f32.mrb[0].mxu0
    %v2526 = vpop.f32.mrb[0].mxu0
    %v2527 = vpop.f32.mrb[0].mxu0
    %2528 = vdwg.mxu0
    %v2529 = vadd.f32 %v2464, %v2524
    %s2530 = scalar_lea.vmem %s59, 96
    %v2531 = vld [vmem:[%s2530] sm:$0xf]
    %v2532 = vld [vmem:[%s2530 + $0x4] sm:$0xf]
    %v2533 = vld [vmem:[%s2530 + $0x8] sm:$0xf]
    %v2534 = vld [vmem:[%s2530 + $0xc] sm:$0xf]
    %v2535 = vrot.slane %v2151, 6
    %v2536 = vrot.slane %v2152, 5
    %v2537 = vsel %vm2154, %v2536, %v2535
    %v2538 = vpack.c.b16 %v2537, %v2537
    %v2543 = vunpack.c.l.b16 %v2531
    %v2544 = vunpack.c.l.b16 %v2532
    %v2545 = vunpack.c.l.b16 %v2533
    %v2546 = vunpack.c.l.b16 %v2534
    %v2547 = vpack.c.b16 %v2544, %v2543
    %v2548 = vpack.c.b16 %v2546, %v2545
    %v2552 = vsel %vm409, %v2538, 0
    %2554 = vmatprep.subr.bf16.mxu0 0
    %2555 = vmatpush1.bf16.msra.mxu0 %v2547
    %2556 = vmatprep.subr.bf16.mxu0 0
    %2557 = vmatpush1.bf16.msra.mxu0 %v2548
    %2558 = vmatprep.subr.bf16.mxu0 0
    %2559 = vmatpush1.bf16.msra.mxu0 0
    %2560 = vmatprep.subr.bf16.mxu0 0
    %2561 = vmatpush1.bf16.msra.mxu0 0
    %2562 = vmatprep.subr.bf16.mxu0 0
    %2563 = vmatpush1.bf16.msra.mxu0 0
    %2564 = vmatprep.subr.bf16.mxu0 0
    %2565 = vmatpush1.bf16.msra.mxu0 0
    %2566 = vmatprep.subr.bf16.mxu0 0
    %2567 = vmatpush1.bf16.msra.mxu0 0
    %2568 = vmatprep.subr.bf16.mxu0 0
    %2569 = vmatpush1.bf16.msra.mxu0 0
    %2570 = vmatprep.subr.bf16.mxu0 0
    %2571 = vmatpush1.bf16.msra.mxu0 0
    %2572 = vmatprep.subr.bf16.mxu0 0
    %2573 = vmatpush1.bf16.msra.mxu0 0
    %2574 = vmatprep.subr.bf16.mxu0 0
    %2575 = vmatpush1.bf16.msra.mxu0 0
    %2576 = vmatprep.subr.bf16.mxu0 0
    %2577 = vmatpush1.bf16.msra.mxu0 0
    %2578 = vmatprep.subr.bf16.mxu0 0
    %2579 = vmatpush1.bf16.msra.mxu0 0
    %2580 = vmatprep.subr.bf16.mxu0 0
    %2581 = vmatpush1.bf16.msra.mxu0 0
    %2582 = vmatprep.subr.bf16.mxu0 0
    %2583 = vmatpush1.bf16.msra.mxu0 0
    %2584 = vmatprep.subr.bf16.mxu0 0
    %2585 = vmatpush1.bf16.msra.mxu0 0
    %2586 = vmatprep.mubr.bf16.mxu0 0
    %2587 = vmatmul.mubr.bf16.gmra.mrb[0].mxu0 %v2552
    %v2588 = vpop.f32.mrb[0].mxu0
    %v2589 = vadd.f32 0.0, %v2588
    %v2590 = vpop.f32.mrb[0].mxu0
    %v2591 = vpop.f32.mrb[0].mxu0
    %v2592 = vpop.f32.mrb[0].mxu0
    %2593 = vdwg.mxu0
    %v2594 = vadd.f32 %v2529, %v2589
    %s2595 = scalar_lea.vmem %s59, 112
    %v2596 = vld [vmem:[%s2595] sm:$0xf]
    %v2597 = vld [vmem:[%s2595 + $0x4] sm:$0xf]
    %v2598 = vld [vmem:[%s2595 + $0x8] sm:$0xf]
    %v2599 = vld [vmem:[%s2595 + $0xc] sm:$0xf]
    %v2600 = vrot.slane %v2151, 7
    %v2601 = vrot.slane %v2152, 6
    %v2602 = vsel %vm2154, %v2601, %v2600
    %v2603 = vpack.c.b16 %v2602, %v2602
    %v2608 = vunpack.c.l.b16 %v2596
    %v2609 = vunpack.c.l.b16 %v2597
    %v2610 = vunpack.c.l.b16 %v2598
    %v2611 = vunpack.c.l.b16 %v2599
    %v2612 = vpack.c.b16 %v2609, %v2608
    %v2613 = vpack.c.b16 %v2611, %v2610
    %v2617 = vsel %vm409, %v2603, 0
    %2619 = vmatprep.subr.bf16.mxu0 0
    %2620 = vmatpush1.bf16.msra.mxu0 %v2612
    %2621 = vmatprep.subr.bf16.mxu0 0
    %2622 = vmatpush1.bf16.msra.mxu0 %v2613
    %2623 = vmatprep.subr.bf16.mxu0 0
    %2624 = vmatpush1.bf16.msra.mxu0 0
    %2625 = vmatprep.subr.bf16.mxu0 0
    %2626 = vmatpush1.bf16.msra.mxu0 0
    %2627 = vmatprep.subr.bf16.mxu0 0
    %2628 = vmatpush1.bf16.msra.mxu0 0
    %2629 = vmatprep.subr.bf16.mxu0 0
    %2630 = vmatpush1.bf16.msra.mxu0 0
    %2631 = vmatprep.subr.bf16.mxu0 0
    %2632 = vmatpush1.bf16.msra.mxu0 0
    %2633 = vmatprep.subr.bf16.mxu0 0
    %2634 = vmatpush1.bf16.msra.mxu0 0
    %2635 = vmatprep.subr.bf16.mxu0 0
    %2636 = vmatpush1.bf16.msra.mxu0 0
    %2637 = vmatprep.subr.bf16.mxu0 0
    %2638 = vmatpush1.bf16.msra.mxu0 0
    %2639 = vmatprep.subr.bf16.mxu0 0
    %2640 = vmatpush1.bf16.msra.mxu0 0
    %2641 = vmatprep.subr.bf16.mxu0 0
    %2642 = vmatpush1.bf16.msra.mxu0 0
    %2643 = vmatprep.subr.bf16.mxu0 0
    %2644 = vmatpush1.bf16.msra.mxu0 0
    %2645 = vmatprep.subr.bf16.mxu0 0
    %2646 = vmatpush1.bf16.msra.mxu0 0
    %2647 = vmatprep.subr.bf16.mxu0 0
    %2648 = vmatpush1.bf16.msra.mxu0 0
    %2649 = vmatprep.subr.bf16.mxu0 0
    %2650 = vmatpush1.bf16.msra.mxu0 0
    %2651 = vmatprep.mubr.bf16.mxu0 0
    %2652 = vmatmul.mubr.bf16.gmra.mrb[0].mxu0 %v2617
    %v2653 = vpop.f32.mrb[0].mxu0
    %v2654 = vadd.f32 0.0, %v2653
    %v2655 = vpop.f32.mrb[0].mxu0
    %v2656 = vpop.f32.mrb[0].mxu0
    %v2657 = vpop.f32.mrb[0].mxu0
    %2658 = vdwg.mxu0
    %v2659 = vadd.f32 %v2594, %v2654
    %v2660 = vld [vmem:[#allocation28] sm:$0x1]
    %v2662 = vlaneseq
    %v2663 = vshrl.u32 %v2662, 7
    %v2664 = vsub.s32 0, %v2663
    %v2665 = vrot.slane %v2660, %v2664
    %v2667 = vadd.f32 %v2659, %v2665
    %v2668 = vmax.f32 %v2667, 0.0
    %v2669 = vpack.c.bf16 %v2668, %v2668
    %v2670 = vld [vmem:[%s63] sm:$0xf]
    %v2671 = vld [vmem:[%s63 + $0x4] sm:$0xf]
    %v2672 = vld [vmem:[%s63 + $0x8] sm:$0xf]
    %v2673 = vld [vmem:[%s63 + $0xc] sm:$0xf]
    %v2674 = vld [vmem:[#allocation29] sm:$0x1]
    %v2676 = vlaneseq
    %v2677 = vshrl.u32 %v2676, 7
    %v2678 = vsub.s32 0, %v2677
    %v2679 = vrot.slane %v2674, %v2678
    %v2685 = vunpack.c.l.b16 %v2670
    %v2686 = vunpack.c.l.b16 %v2671
    %v2687 = vunpack.c.l.b16 %v2672
    %v2688 = vunpack.c.l.b16 %v2673
    %v2689 = vpack.c.b16 %v2686, %v2685
    %v2690 = vpack.c.b16 %v2688, %v2687
    %v2694 = vsel %vm409, %v2669, 0
    %2696 = vmatprep.subr.bf16.mxu0 0
    %2697 = vmatpush1.bf16.msra.mxu0 %v2689
    %2698 = vmatprep.subr.bf16.mxu0 0
    %2699 = vmatpush1.bf16.msra.mxu0 %v2690
    %2700 = vmatprep.subr.bf16.mxu0 0
    %2701 = vmatpush1.bf16.msra.mxu0 0
    %2702 = vmatprep.subr.bf16.mxu0 0
    %2703 = vmatpush1.bf16.msra.mxu0 0
    %2704 = vmatprep.subr.bf16.mxu0 0
    %2705 = vmatpush1.bf16.msra.mxu0 0
    %2706 = vmatprep.subr.bf16.mxu0 0
    %2707 = vmatpush1.bf16.msra.mxu0 0
    %2708 = vmatprep.subr.bf16.mxu0 0
    %2709 = vmatpush1.bf16.msra.mxu0 0
    %2710 = vmatprep.subr.bf16.mxu0 0
    %2711 = vmatpush1.bf16.msra.mxu0 0
    %2712 = vmatprep.subr.bf16.mxu0 0
    %2713 = vmatpush1.bf16.msra.mxu0 0
    %2714 = vmatprep.subr.bf16.mxu0 0
    %2715 = vmatpush1.bf16.msra.mxu0 0
    %2716 = vmatprep.subr.bf16.mxu0 0
    %2717 = vmatpush1.bf16.msra.mxu0 0
    %2718 = vmatprep.subr.bf16.mxu0 0
    %2719 = vmatpush1.bf16.msra.mxu0 0
    %2720 = vmatprep.subr.bf16.mxu0 0
    %2721 = vmatpush1.bf16.msra.mxu0 0
    %2722 = vmatprep.subr.bf16.mxu0 0
    %2723 = vmatpush1.bf16.msra.mxu0 0
    %2724 = vmatprep.subr.bf16.mxu0 0
    %2725 = vmatpush1.bf16.msra.mxu0 0
    %2726 = vmatprep.subr.bf16.mxu0 0
    %2727 = vmatpush1.bf16.msra.mxu0 0
    %2728 = vmatprep.mubr.bf16.mxu0 0
    %2729 = vmatmul.mubr.bf16.gmra.mrb[0].mxu0 %v2694
    %v2730 = vpop.f32.mrb[0].mxu0
    %v2731 = vadd.f32 %v2679, %v2730
    %v2732 = vpop.f32.mrb[0].mxu0
    %v2733 = vpop.f32.mrb[0].mxu0
    %v2734 = vpop.f32.mrb[0].mxu0
    %2735 = vdwg.mxu0
    %v2736 = vmax.f32 %v2731, 0.0
    %v2737 = vand.u32 2147483647, %v2731
    %v2738 = vsub.f32 0.0, %v2737
    %v2739 = vmul.f32 %v2738, 1.442695
    %v2740 = vpow.pop %v2739
    %v2741 = vadd.f32 %v2740, 1.0
    %v2742 = vlog2.pop %v2741
    %v2743 = vmul.f32 %v2742, 0.6931472
    %v2744 = vadd.f32 %v2736, %v2743
    %v2745 = vld [vmem:[#allocation31] sm:$0xff]
    %v2746 = vld [vmem:[#allocation31 + $0x8] sm:$0xf]
    %v2747 = vld [vmem:[#allocation32] sm:$0xff]
    %v2748 = vld [vmem:[#allocation32 + $0x8] sm:$0xf]
    %vm2749 = vcmask 97280
    %v2751 = vsel %vm2749, %v2744, 0
    %v2754 = vsel %vm654, %v2748, 0
    %2756 = vmatprep.subr.mxu0 0.0
    %2757 = vmatpush1.msra.mxu0 %v2747
    %2758 = vmatprep.subr.mxu0 0.0
    %2759 = vmatpush1.msra.mxu0 %v2754
    %2760 = vmatprep.subr.mxu0 0.0
    %2761 = vmatpush1.msra.mxu0 0.0
    %2762 = vmatprep.subr.mxu0 0.0
    %2763 = vmatpush1.msra.mxu0 0.0
    %2764 = vmatprep.subr.mxu0 0.0
    %2765 = vmatpush1.msra.mxu0 0.0
    %2766 = vmatprep.subr.mxu0 0.0
    %2767 = vmatpush1.msra.mxu0 0.0
    %2768 = vmatprep.subr.mxu0 0.0
    %2769 = vmatpush1.msra.mxu0 0.0
    %2770 = vmatprep.subr.mxu0 0.0
    %2771 = vmatpush1.msra.mxu0 0.0
    %2772 = vmatprep.subr.mxu0 0.0
    %2773 = vmatpush1.msra.mxu0 0.0
    %2774 = vmatprep.subr.mxu0 0.0
    %2775 = vmatpush1.msra.mxu0 0.0
    %2776 = vmatprep.subr.mxu0 0.0
    %2777 = vmatpush1.msra.mxu0 0.0
    %2778 = vmatprep.subr.mxu0 0.0
    %2779 = vmatpush1.msra.mxu0 0.0
    %2780 = vmatprep.subr.mxu0 0.0
    %2781 = vmatpush1.msra.mxu0 0.0
    %2782 = vmatprep.subr.mxu0 0.0
    %2783 = vmatpush1.msra.mxu0 0.0
    %2784 = vmatprep.subr.mxu0 0.0
    %2785 = vmatpush1.msra.mxu0 0.0
    %2786 = vmatprep.subr.mxu0 0.0
    %2787 = vmatpush1.msra.mxu0 0.0
    %2788 = vmatprep.subr.mxu0 0.0
    %2789 = vmatpush1.msra.mxu0 0.0
    %2790 = vmatprep.subr.mxu0 0.0
    %2791 = vmatpush1.msra.mxu0 0.0
    %2792 = vmatprep.subr.mxu0 0.0
    %2793 = vmatpush1.msra.mxu0 0.0
    %2794 = vmatprep.subr.mxu0 0.0
    %2795 = vmatpush1.msra.mxu0 0.0
    %2796 = vmatprep.subr.mxu0 0.0
    %2797 = vmatpush1.msra.mxu0 0.0
    %2798 = vmatprep.subr.mxu0 0.0
    %2799 = vmatpush1.msra.mxu0 0.0
    %2800 = vmatprep.subr.mxu0 0.0
    %2801 = vmatpush1.msra.mxu0 0.0
    %2802 = vmatprep.subr.mxu0 0.0
    %2803 = vmatpush1.msra.mxu0 0.0
    %2804 = vmatprep.subr.mxu0 0.0
    %2805 = vmatpush1.msra.mxu0 0.0
    %2806 = vmatprep.subr.mxu0 0.0
    %2807 = vmatpush1.msra.mxu0 0.0
    %2808 = vmatprep.subr.mxu0 0.0
    %2809 = vmatpush1.msra.mxu0 0.0
    %2810 = vmatprep.subr.mxu0 0.0
    %2811 = vmatpush1.msra.mxu0 0.0
    %2812 = vmatprep.subr.mxu0 0.0
    %2813 = vmatpush1.msra.mxu0 0.0
    %2814 = vmatprep.subr.mxu0 0.0
    %2815 = vmatpush1.msra.mxu0 0.0
    %2816 = vmatprep.subr.mxu0 0.0
    %2817 = vmatpush1.msra.mxu0 0.0
    %2818 = vmatprep.subr.mxu0 0.0
    %2819 = vmatpush1.msra.mxu0 0.0
    %2820 = vmatprep.mubr.f32.mxu0 0.0
    %2821 = vmatmul.mubr.f32.gmra.mrb[0].mxu0 %v2751
    %v2822 = vpop.f32.mrb[0].mxu0
    %v2823 = vadd.f32 0.0, %v2822
    %v2824 = vpop.f32.mrb[0].mxu0
    %2825 = vdwg.mxu0
    %v2827 = vsel %vm2749, %v2731, 0
    %v2830 = vsel %vm654, %v2746, 0
    %2832 = vmatprep.subr.mxu0 0.0
    %2833 = vmatpush1.msra.mxu0 %v2745
    %2834 = vmatprep.subr.mxu0 0.0
    %2835 = vmatpush1.msra.mxu0 %v2830
    %2836 = vmatprep.subr.mxu0 0.0
    %2837 = vmatpush1.msra.mxu0 0.0
    %2838 = vmatprep.subr.mxu0 0.0
    %2839 = vmatpush1.msra.mxu0 0.0
    %2840 = vmatprep.subr.mxu0 0.0
    %2841 = vmatpush1.msra.mxu0 0.0
    %2842 = vmatprep.subr.mxu0 0.0
    %2843 = vmatpush1.msra.mxu0 0.0
    %2844 = vmatprep.subr.mxu0 0.0
    %2845 = vmatpush1.msra.mxu0 0.0
    %2846 = vmatprep.subr.mxu0 0.0
    %2847 = vmatpush1.msra.mxu0 0.0
    %2848 = vmatprep.subr.mxu0 0.0
    %2849 = vmatpush1.msra.mxu0 0.0
    %2850 = vmatprep.subr.mxu0 0.0
    %2851 = vmatpush1.msra.mxu0 0.0
    %2852 = vmatprep.subr.mxu0 0.0
    %2853 = vmatpush1.msra.mxu0 0.0
    %2854 = vmatprep.subr.mxu0 0.0
    %2855 = vmatpush1.msra.mxu0 0.0
    %2856 = vmatprep.subr.mxu0 0.0
    %2857 = vmatpush1.msra.mxu0 0.0
    %2858 = vmatprep.subr.mxu0 0.0
    %2859 = vmatpush1.msra.mxu0 0.0
    %2860 = vmatprep.subr.mxu0 0.0
    %2861 = vmatpush1.msra.mxu0 0.0
    %2862 = vmatprep.subr.mxu0 0.0
    %2863 = vmatpush1.msra.mxu0 0.0
    %2864 = vmatprep.subr.mxu0 0.0
    %2865 = vmatpush1.msra.mxu0 0.0
    %2866 = vmatprep.subr.mxu0 0.0
    %2867 = vmatpush1.msra.mxu0 0.0
    %2868 = vmatprep.subr.mxu0 0.0
    %2869 = vmatpush1.msra.mxu0 0.0
    %2870 = vmatprep.subr.mxu0 0.0
    %2871 = vmatpush1.msra.mxu0 0.0
    %2872 = vmatprep.subr.mxu0 0.0
    %2873 = vmatpush1.msra.mxu0 0.0
    %2874 = vmatprep.subr.mxu0 0.0
    %2875 = vmatpush1.msra.mxu0 0.0
    %2876 = vmatprep.subr.mxu0 0.0
    %2877 = vmatpush1.msra.mxu0 0.0
    %2878 = vmatprep.subr.mxu0 0.0
    %2879 = vmatpush1.msra.mxu0 0.0
    %2880 = vmatprep.subr.mxu0 0.0
    %2881 = vmatpush1.msra.mxu0 0.0
    %2882 = vmatprep.subr.mxu0 0.0
    %2883 = vmatpush1.msra.mxu0 0.0
    %2884 = vmatprep.subr.mxu0 0.0
    %2885 = vmatpush1.msra.mxu0 0.0
    %2886 = vmatprep.subr.mxu0 0.0
    %2887 = vmatpush1.msra.mxu0 0.0
    %2888 = vmatprep.subr.mxu0 0.0
    %2889 = vmatpush1.msra.mxu0 0.0
    %2890 = vmatprep.subr.mxu0 0.0
    %2891 = vmatpush1.msra.mxu0 0.0
    %2892 = vmatprep.subr.mxu0 0.0
    %2893 = vmatpush1.msra.mxu0 0.0
    %2894 = vmatprep.subr.mxu0 0.0
    %2895 = vmatpush1.msra.mxu0 0.0
    %2896 = vmatprep.mubr.f32.mxu0 0.0
    %2897 = vmatmul.mubr.f32.gmra.mrb[0].mxu0 %v2827
    %v2898 = vpop.f32.mrb[0].mxu0
    %v2899 = vadd.f32 %v2823, %v2898
    %v2900 = vpop.f32.mrb[0].mxu0
    %2901 = vdwg.mxu0
    %vm2902 = vcmask 91136
    %2903 = vst.msk [vmem:[%s71] sm:$0x3] %vm2902, %v2899
    // Predicated region
    $region222: #{deep_quant_reg_forward.1} parent=1 // pred_check
      _
    $region223: #{deep_quant_reg_forward.1} parent=1 // pred_check_branch
      %2905 = sbr.rel (0) target = $region225
    $region224: #{deep_quant_reg_forward.1} parent=1 // pred_region
      _
    $region225: #{deep_quant_reg_forward.1} parent=1 // pred_fallthru
      _
    // Predicated region
    $region226: #{deep_quant_reg_forward.1} parent=1 // pred_check
      _
    $region227: #{deep_quant_reg_forward.1} parent=1 // pred_check_branch
      %2907 = sbr.rel (0) target = $region229
    $region228: #{deep_quant_reg_forward.1} parent=1 // pred_region
      _
    $region229: #{deep_quant_reg_forward.1} parent=1 // pred_fallthru
      _
    %2908 = vsyncpa [#allocation4], 1
    %2909 = vsyncpa [#allocation6], 1
    %2910 = vsyncpa [#allocation9], 1
    %2911 = vsyncpa [#allocation12], 1
    %2912 = vsyncpa [#allocation15], 1
    %2913 = vsyncpa [#allocation18], 1
    %2914 = vsyncpa [#allocation21], 1
    %2915 = vsyncpa [#allocation24], 1
    %2916 = vsyncpa [#allocation27], 1
    %2917 = vsyncpa [#allocation30], 1
    %2918 = vsyncpa [#allocation33], 1

</llo_original>
